<compile_context>
chip_gen: v5e
topology: v5e:2x2
jax: 0.10.0
libtpu: 0.0.40
codegen_flags: <defaults>
</compile_context>

<pallas_src>
import functools

import jax
import jax.numpy as jnp
from jax.experimental import pallas as pl
from jax.experimental.pallas import tpu as pltpu

LANE = 128
SUBLANE = 8


def _round_up(n, m):
    return ((n + m - 1) // m) * m


# ----------------------------------------------------------------------------- kernel

def _vae_kernel(x_ref, eps_ref,
                w11_ref, b11_ref, w12_ref, b12_ref,
                w2122_ref, b2122_ref,
                w31_ref, b31_ref, w32_ref, b32_ref,
                w4_ref, b4_ref,
                out_ref, *, zp):
    """Whole VAE forward for one batch tile, entirely in VMEM."""
    cdt = w11_ref.dtype                 # MXU compute dtype (bf16)
    f32 = jnp.float32

    x = x_ref[...]                      # (TB, Xp)  cdt
    eps = eps_ref[...]                  # (TB, Zp)  f32

    # ---- encoder ----
    h = jnp.dot(x, w11_ref[...], preferred_element_type=f32) + b11_ref[...]
    h = jnp.maximum(h, 0.0)
    h = jnp.dot(h.astype(cdt), w12_ref[...], preferred_element_type=f32) + b12_ref[...]
    h = jnp.maximum(h, 0.0)

    # fused mu|logvar projection: one wide MXU matmul instead of two narrow ones
    ml = jnp.dot(h.astype(cdt), w2122_ref[...], preferred_element_type=f32) + b2122_ref[...]
    mu = ml[:, :zp]                     # static, lane-aligned slices
    logvar = ml[:, zp:]

    # ---- reparameterize: z = mu + eps * exp(0.5 * logvar)  (f32, exp on EUP) ----
    z = mu + eps * jnp.exp(0.5 * logvar)

    # ---- decoder ----
    d = jnp.dot(z.astype(cdt), w31_ref[...], preferred_element_type=f32) + b31_ref[...]
    d = jnp.maximum(d, 0.0)
    d = jnp.dot(d.astype(cdt), w32_ref[...], preferred_element_type=f32) + b32_ref[...]
    d = jnp.maximum(d, 0.0)
    logits = jnp.dot(d.astype(cdt), w4_ref[...], preferred_element_type=f32) + b4_ref[...]

    out_ref[...] = jax.nn.sigmoid(logits).astype(out_ref.dtype)


# ------------------------------------------------------------------- spec helpers

_BUFFERED = getattr(pl, "Buffered", None)


def _resident(shape):
    """Weights/biases: constant block index -> same VMEM tile every grid step.
    Single-buffered (pl.Buffered(1)): the second pipeline buffer would never be
    used for a constant index_map, so drop it and reclaim ~3 MiB of weight VMEM."""
    idx = lambda i: (0, 0)
    if _BUFFERED is not None:
        try:
            return pl.BlockSpec(shape, idx, pipeline_mode=_BUFFERED(1))
        except TypeError:               # older pallas without pipeline_mode kwarg
            pass
    return pl.BlockSpec(shape, idx)


def _stream(shape):
    """Batch-streamed operands (x, eps, out): tile i per grid step, double-buffered."""
    return pl.BlockSpec(shape, lambda i: (i, 0))


# -------------------------------------------------------------- one-time weight prep

def prepare_vae_params(params, *, x_dim, compute_dtype=jnp.bfloat16):
    """Pad to lane multiples, cast to the MXU dtype, and fuse fc21|fc22 ONCE.

    Hoisted out of the per-call forward so each call does not re-read ~5 MB of
    f32 weights and re-write bf16 copies before the kernel starts.
    """
    (w11, b11, w12, b12, w21, b21, w22, b22,
     w31, b31, w32, b32, w4, b4) = params
    h_dim = w11.shape[1]
    z_dim = w21.shape[1]

    xp = _round_up(x_dim, LANE)
    hp = _round_up(h_dim, LANE)
    zp = _round_up(z_dim, LANE)
    cdt = compute_dtype

    def padw(w, r, c):
        w = jnp.asarray(w, jnp.float32)
        return jnp.pad(w, ((0, r - w.shape[0]), (0, c - w.shape[1]))).astype(cdt)

    def padb(bv, c):
        bv = jnp.asarray(bv, jnp.float32).reshape(1, -1)
        return jnp.pad(bv, ((0, 0), (0, c - bv.shape[1])))        # biases stay f32

    padded = (
        padw(w11, xp, hp), padb(b11, hp),
        padw(w12, hp, hp), padb(b12, hp),
        # fused mu|logvar weights: (Hp, 2*Zp); padded columns are zero -> pads stay 0
        jnp.concatenate([padw(w21, hp, zp), padw(w22, hp, zp)], axis=1),
        jnp.concatenate([padb(b21, zp), padb(b22, zp)], axis=1),
        padw(w31, zp, hp), padb(b31, hp),
        padw(w32, hp, hp), padb(b32, hp),
        padw(w4, hp, xp), padb(b4, xp),
    )
    dims = (x_dim, z_dim, xp, hp, zp)
    return jax.device_put(padded), dims


def choose_batch_tile(batch, *, tb_max=512):
    """Pick the batch tile TB.

    Big (up to tb_max=512) to amortize the ~0.35 us per-grid-step overhead and the
    256-wide MXU weight pushes; but small enough that the 'parallel' grid has >= 2
    tiles whenever the batch allows, so both TensorCores get work on v7x."""
    bp8 = _round_up(max(int(batch), 1), SUBLANE)
    if bp8 >= 2 * tb_max:
        return tb_max
    if bp8 >= 32:                       # split into >=2 tiles, keep sublane-friendly
        return min(_round_up(pl.cdiv(bp8, 2), 16), tb_max)
    return bp8                          # tiny batch: one tile equal to the padded batch


# ----------------------------------------------------------------------------- forward

@functools.partial(jax.jit, static_argnames=("dims", "tb", "out_dtype"))
def vae_forward(x, eps, padded_params, *, dims, tb=512, out_dtype=jnp.float32):
    """VAE.forward: yhat = decode(reparameterize(encode(x.view(-1, x_dim))))."""
    x_dim, z_dim, xp, hp, zp = dims
    (w11p, b11p, w12p, b12p, w2122p, b2122p,
     w31p, b31p, w32p, b32p, w4p, b4p) = padded_params
    cdt = w11p.dtype
    wsize = jnp.dtype(cdt).itemsize
    osize = jnp.dtype(out_dtype).itemsize

    x2d = x.reshape(-1, x_dim).astype(jnp.float32)       # x.view(-1, x_dim)
    b = x2d.shape[0]
    bp = _round_up(max(b, tb), tb)                        # pad batch to a multiple of TB

    xpd = jnp.pad(x2d, ((0, bp - b), (0, xp - x_dim))).astype(cdt)
    epsd = jnp.pad(eps.astype(jnp.float32), ((0, bp - b), (0, zp - z_dim)))

    in_specs = [
        _stream((tb, xp)),                                   # x tile
        _stream((tb, zp)),                                   # eps tile
        _resident((xp, hp)), _resident((1, hp)),             # fc11
        _resident((hp, hp)), _resident((1, hp)),             # fc12
        _resident((hp, 2 * zp)), _resident((1, 2 * zp)),     # fc21|fc22 fused
        _resident((zp, hp)), _resident((1, hp)),             # fc31
        _resident((hp, hp)), _resident((1, hp)),             # fc32
        _resident((hp, xp)), _resident((1, xp)),             # fc4
    ]

    # ---- derived VMEM budget (weights single-buffered, streams double-buffered) ----
    weight_elems = xp * hp + hp * hp + hp * 2 * zp + zp * hp + hp * hp + hp * xp
    bias_bytes = 4 * (3 * hp + 2 * zp + xp)
    resident_bytes = wsize * weight_elems + bias_bytes
    stream_bytes = 2 * tb * (xp * wsize + zp * 4 + xp * osize)
    scratch_bytes = 4 * tb * (4 * hp + 3 * zp + xp)          # f32 intermediates (rough)
    vmem_limit = int(min(2 * (resident_bytes + stream_bytes + scratch_bytes) + (8 << 20),
                         48 << 20))

    # advisory cost estimate so XLA schedules the custom call well
    cost = pl.CostEstimate(
        flops=2 * bp * weight_elems,
        transcendentals=bp * (zp + xp),                       # exp + sigmoid
        bytes_accessed=resident_bytes + bp * (xp * wsize + zp * 4 + xp * osize),
    )

    out = pl.pallas_call(
        functools.partial(_vae_kernel, zp=zp),
        out_shape=jax.ShapeDtypeStruct((bp, xp), out_dtype),
        grid_spec=pltpu.PrefetchScalarGridSpec(
            num_scalar_prefetch=0,
            grid=(bp // tb,),
            in_specs=in_specs,
            out_specs=_stream((tb, xp)),
        ),
        compiler_params=pltpu.CompilerParams(
            dimension_semantics=("parallel",),     # independent batch tiles (dual-TC on v7x)
            vmem_limit_bytes=vmem_limit,
        ),
        cost_estimate=cost,
    )(xpd, epsd,
      w11p, b11p, w12p, b12p,
      w2122p, b2122p,
      w31p, b31p, w32p, b32p,
      w4p, b4p)

    return out[:b, :x_dim].astype(jnp.float32)


# ----------------------------------------------------------------------------- demo

def init_linear(key, fan_in, fan_out):
    """PyTorch nn.Linear default init: U(-1/sqrt(in), 1/sqrt(in)).
    Weight is returned already transposed to (in, out); bias as (1, out)."""
    kw, kb = jax.random.split(key)
    bound = 1.0 / jnp.sqrt(jnp.float32(fan_in))
    w_t = jax.random.uniform(kw, (fan_in, fan_out), jnp.float32, -bound, bound)
    b = jax.random.uniform(kb, (1, fan_out), jnp.float32, -bound, bound)
    return w_t, b


if __name__ == "__main__":
    # Module defaults: x_dim=640, h_dim=400, z_dim=20.
    x_dim, h_dim, z_dim = 640, 400, 20
    batch_outer, batch_inner = 2, 4        # x: (2, 4, 640) -> view(-1, 640) = (8, 640)

    key = jax.random.PRNGKey(0)
    keys = jax.random.split(key, 9)

    w11, b11 = init_linear(keys[0], x_dim, h_dim)
    w12, b12 = init_linear(keys[1], h_dim, h_dim)
    w21, b21 = init_linear(keys[2], h_dim, z_dim)
    w22, b22 = init_linear(keys[3], h_dim, z_dim)
    w31, b31 = init_linear(keys[4], z_dim, h_dim)
    w32, b32 = init_linear(keys[5], h_dim, h_dim)
    w4,  b4  = init_linear(keys[6], h_dim, x_dim)
    params = (w11, b11, w12, b12, w21, b21, w22, b22,
              w31, b31, w32, b32, w4, b4)

    x = jax.random.normal(keys[7], (batch_outer, batch_inner, x_dim), jnp.float32)
    B = batch_outer * batch_inner
    eps = jax.random.normal(keys[8], (B, z_dim), jnp.float32)   # torch.randn_like(std)

    # One-time weight prep (hoisted out of the per-call forward).
    padded_params, dims = prepare_vae_params(params, x_dim=x_dim)
    tb = choose_batch_tile(B)

    yhat = vae_forward(x, eps, padded_params, dims=dims, tb=tb)
    yhat = jax.block_until_ready(yhat)
    assert yhat.shape == (B, x_dim)

    # Reference 1: same math with the same bf16 matmul inputs / f32 accumulation.
    def ref_bf16(x, eps, params):
        (w11, b11, w12, b12, w21, b21, w22, b22,
         w31, b31, w32, b32, w4, b4) = params
        cdt = jnp.bfloat16
        lin = lambda a, w, bias: jnp.dot(a.astype(cdt), w.astype(cdt),
                                         preferred_element_type=jnp.float32) + bias
        xv = x.reshape(-1, x_dim)
        h = jax.nn.relu(lin(xv, w11, b11))
        h = jax.nn.relu(lin(h, w12, b12))
        mu, logvar = lin(h, w21, b21), lin(h, w22, b22)
        z = mu + eps * jnp.exp(0.5 * logvar)
        d = jax.nn.relu(lin(z, w31, b31))
        d = jax.nn.relu(lin(d, w32, b32))
        return jax.nn.sigmoid(lin(d, w4, b4))

    # Reference 2: pure f32 math (the PyTorch semantics).
    def ref_f32(x, eps, params):
        (w11, b11, w12, b12, w21, b21, w22, b22,
         w31, b31, w32, b32, w4, b4) = params
        xv = x.reshape(-1, x_dim)
        h = jax.nn.relu(xv @ w11 + b11)
        h = jax.nn.relu(h @ w12 + b12)
        mu, logvar = h @ w21 + b21, h @ w22 + b22
        z = mu + eps * jnp.exp(0.5 * logvar)
        d = jax.nn.relu(z @ w31 + b31)
        d = jax.nn.relu(d @ w32 + b32)
        return jax.nn.sigmoid(d @ w4 + b4)

    assert jnp.allclose(yhat, ref_bf16(x, eps, params), atol=2e-3, rtol=2e-3)
    assert jnp.allclose(yhat, ref_f32(x, eps, params), atol=3e-2, rtol=3e-2)

    print("KERNEL_OK")
</pallas_src>

<mosaic_0001>
module attributes {stable_mosaic.version = 11 : i64} {
  func.func @_vae_kernel(%arg0: i32, %arg1: memref<8x640xbf16, #tpu.memory_space<vmem>>, %arg2: memref<8x128xf32, #tpu.memory_space<vmem>>, %arg3: memref<640x512xbf16, #tpu.memory_space<vmem>>, %arg4: memref<1x512xf32, #tpu.memory_space<vmem>>, %arg5: memref<512x512xbf16, #tpu.memory_space<vmem>>, %arg6: memref<1x512xf32, #tpu.memory_space<vmem>>, %arg7: memref<512x256xbf16, #tpu.memory_space<vmem>>, %arg8: memref<1x256xf32, #tpu.memory_space<vmem>>, %arg9: memref<128x512xbf16, #tpu.memory_space<vmem>>, %arg10: memref<1x512xf32, #tpu.memory_space<vmem>>, %arg11: memref<512x512xbf16, #tpu.memory_space<vmem>>, %arg12: memref<1x512xf32, #tpu.memory_space<vmem>>, %arg13: memref<512x640xbf16, #tpu.memory_space<vmem>>, %arg14: memref<1x640xf32, #tpu.memory_space<vmem>>, %arg15: memref<8x640xf32, #tpu.memory_space<vmem>>) attributes {dimension_semantics = [#tpu.dimension_semantics<parallel>], iteration_bounds = array<i64: 1>, scalar_prefetch = 0 : i64, scratch_operands = 0 : i64, tpu.core_type = #tpu.core_type<tc>, window_params = [{transform_indices = @transform_0, window_bounds = array<i64: 8, 640>}, {transform_indices = @transform_1, window_bounds = array<i64: 8, 128>}, {pipeline_mode = #tpu.pipeline_mode<synchronous>, transform_indices = @transform_2, window_bounds = array<i64: 640, 512>}, {pipeline_mode = #tpu.pipeline_mode<synchronous>, transform_indices = @transform_3, window_bounds = array<i64: 1, 512>}, {pipeline_mode = #tpu.pipeline_mode<synchronous>, transform_indices = @transform_4, window_bounds = array<i64: 512, 512>}, {pipeline_mode = #tpu.pipeline_mode<synchronous>, transform_indices = @transform_5, window_bounds = array<i64: 1, 512>}, {pipeline_mode = #tpu.pipeline_mode<synchronous>, transform_indices = @transform_6, window_bounds = array<i64: 512, 256>}, {pipeline_mode = #tpu.pipeline_mode<synchronous>, transform_indices = @transform_7, window_bounds = array<i64: 1, 256>}, {pipeline_mode = #tpu.pipeline_mode<synchronous>, transform_indices = @transform_8, window_bounds = array<i64: 128, 512>}, {pipeline_mode = #tpu.pipeline_mode<synchronous>, transform_indices = @transform_9, window_bounds = array<i64: 1, 512>}, {pipeline_mode = #tpu.pipeline_mode<synchronous>, transform_indices = @transform_10, window_bounds = array<i64: 512, 512>}, {pipeline_mode = #tpu.pipeline_mode<synchronous>, transform_indices = @transform_11, window_bounds = array<i64: 1, 512>}, {pipeline_mode = #tpu.pipeline_mode<synchronous>, transform_indices = @transform_12, window_bounds = array<i64: 512, 640>}, {pipeline_mode = #tpu.pipeline_mode<synchronous>, transform_indices = @transform_13, window_bounds = array<i64: 1, 640>}, {transform_indices = @transform_14, window_bounds = array<i64: 8, 640>}]} {
    %c0 = arith.constant 0 : index
    %c0_0 = arith.constant 0 : index
    %0 = vector.load %arg1[%c0, %c0_0] : memref<8x640xbf16, #tpu.memory_space<vmem>>, vector<8x640xbf16>
    %c0_1 = arith.constant 0 : index
    %c0_2 = arith.constant 0 : index
    %1 = vector.load %arg2[%c0_1, %c0_2] : memref<8x128xf32, #tpu.memory_space<vmem>>, vector<8x128xf32>
    %c0_3 = arith.constant 0 : index
    %c0_4 = arith.constant 0 : index
    %2 = vector.load %arg3[%c0_3, %c0_4] : memref<640x512xbf16, #tpu.memory_space<vmem>>, vector<640x512xbf16>
    %cst = arith.constant dense<0.000000e+00> : vector<8x512xf32>
    %3 = tpu.matmul %0, %2, %cst {dimension_numbers = #tpu.dot_dimension_numbers<[1], [0], [0], [1], [0, 0, 1, 1], [], []>} : vector<8x640xbf16>, vector<640x512xbf16>, vector<8x512xf32> -> vector<8x512xf32>
    %c0_5 = arith.constant 0 : index
    %c0_6 = arith.constant 0 : index
    %4 = vector.load %arg4[%c0_5, %c0_6] : memref<1x512xf32, #tpu.memory_space<vmem>>, vector<1x512xf32>
    %5 = vector.broadcast %4 : vector<1x512xf32> to vector<8x512xf32>
    %6 = arith.addf %3, %5 : vector<8x512xf32>
    %cst_7 = arith.constant 0.000000e+00 : f32
    %7 = vector.broadcast %cst_7 : f32 to vector<8x512xf32>
    %8 = arith.maximumf %6, %7 : vector<8x512xf32>
    %9 = arith.truncf %8 : vector<8x512xf32> to vector<8x512xbf16>
    %c0_8 = arith.constant 0 : index
    %c0_9 = arith.constant 0 : index
    %10 = vector.load %arg5[%c0_8, %c0_9] : memref<512x512xbf16, #tpu.memory_space<vmem>>, vector<512x512xbf16>
    %cst_10 = arith.constant dense<0.000000e+00> : vector<8x512xf32>
    %11 = tpu.matmul %9, %10, %cst_10 {dimension_numbers = #tpu.dot_dimension_numbers<[1], [0], [0], [1], [0, 0, 1, 1], [], []>} : vector<8x512xbf16>, vector<512x512xbf16>, vector<8x512xf32> -> vector<8x512xf32>
    %c0_11 = arith.constant 0 : index
    %c0_12 = arith.constant 0 : index
    %12 = vector.load %arg6[%c0_11, %c0_12] : memref<1x512xf32, #tpu.memory_space<vmem>>, vector<1x512xf32>
    %13 = vector.broadcast %12 : vector<1x512xf32> to vector<8x512xf32>
    %14 = arith.addf %11, %13 : vector<8x512xf32>
    %cst_13 = arith.constant 0.000000e+00 : f32
    %15 = vector.broadcast %cst_13 : f32 to vector<8x512xf32>
    %16 = arith.maximumf %14, %15 : vector<8x512xf32>
    %17 = arith.truncf %16 : vector<8x512xf32> to vector<8x512xbf16>
    %c0_14 = arith.constant 0 : index
    %c0_15 = arith.constant 0 : index
    %18 = vector.load %arg7[%c0_14, %c0_15] : memref<512x256xbf16, #tpu.memory_space<vmem>>, vector<512x256xbf16>
    %cst_16 = arith.constant dense<0.000000e+00> : vector<8x256xf32>
    %19 = tpu.matmul %17, %18, %cst_16 {dimension_numbers = #tpu.dot_dimension_numbers<[1], [0], [0], [1], [0, 0, 1, 1], [], []>} : vector<8x512xbf16>, vector<512x256xbf16>, vector<8x256xf32> -> vector<8x256xf32>
    %c0_17 = arith.constant 0 : index
    %c0_18 = arith.constant 0 : index
    %20 = vector.load %arg8[%c0_17, %c0_18] : memref<1x256xf32, #tpu.memory_space<vmem>>, vector<1x256xf32>
    %21 = vector.broadcast %20 : vector<1x256xf32> to vector<8x256xf32>
    %22 = arith.addf %19, %21 : vector<8x256xf32>
    %23 = vector.extract_strided_slice %22 {offsets = [0, 0], sizes = [8, 128], strides = [1, 1]} : vector<8x256xf32> to vector<8x128xf32>
    %24 = vector.extract_strided_slice %22 {offsets = [0, 128], sizes = [8, 128], strides = [1, 1]} : vector<8x256xf32> to vector<8x128xf32>
    %cst_19 = arith.constant 5.000000e-01 : f32
    %25 = vector.broadcast %cst_19 : f32 to vector<8x128xf32>
    %26 = arith.mulf %25, %24 : vector<8x128xf32>
    %27 = math.exp %26 : vector<8x128xf32>
    %28 = arith.mulf %1, %27 : vector<8x128xf32>
    %29 = arith.addf %23, %28 : vector<8x128xf32>
    %30 = arith.truncf %29 : vector<8x128xf32> to vector<8x128xbf16>
    %c0_20 = arith.constant 0 : index
    %c0_21 = arith.constant 0 : index
    %31 = vector.load %arg9[%c0_20, %c0_21] : memref<128x512xbf16, #tpu.memory_space<vmem>>, vector<128x512xbf16>
    %cst_22 = arith.constant dense<0.000000e+00> : vector<8x512xf32>
    %32 = tpu.matmul %30, %31, %cst_22 {dimension_numbers = #tpu.dot_dimension_numbers<[1], [0], [0], [1], [0, 0, 1, 1], [], []>} : vector<8x128xbf16>, vector<128x512xbf16>, vector<8x512xf32> -> vector<8x512xf32>
    %c0_23 = arith.constant 0 : index
    %c0_24 = arith.constant 0 : index
    %33 = vector.load %arg10[%c0_23, %c0_24] : memref<1x512xf32, #tpu.memory_space<vmem>>, vector<1x512xf32>
    %34 = vector.broadcast %33 : vector<1x512xf32> to vector<8x512xf32>
    %35 = arith.addf %32, %34 : vector<8x512xf32>
    %cst_25 = arith.constant 0.000000e+00 : f32
    %36 = vector.broadcast %cst_25 : f32 to vector<8x512xf32>
    %37 = arith.maximumf %35, %36 : vector<8x512xf32>
    %38 = arith.truncf %37 : vector<8x512xf32> to vector<8x512xbf16>
    %c0_26 = arith.constant 0 : index
    %c0_27 = arith.constant 0 : index
    %39 = vector.load %arg11[%c0_26, %c0_27] : memref<512x512xbf16, #tpu.memory_space<vmem>>, vector<512x512xbf16>
    %cst_28 = arith.constant dense<0.000000e+00> : vector<8x512xf32>
    %40 = tpu.matmul %38, %39, %cst_28 {dimension_numbers = #tpu.dot_dimension_numbers<[1], [0], [0], [1], [0, 0, 1, 1], [], []>} : vector<8x512xbf16>, vector<512x512xbf16>, vector<8x512xf32> -> vector<8x512xf32>
    %c0_29 = arith.constant 0 : index
    %c0_30 = arith.constant 0 : index
    %41 = vector.load %arg12[%c0_29, %c0_30] : memref<1x512xf32, #tpu.memory_space<vmem>>, vector<1x512xf32>
    %42 = vector.broadcast %41 : vector<1x512xf32> to vector<8x512xf32>
    %43 = arith.addf %40, %42 : vector<8x512xf32>
    %cst_31 = arith.constant 0.000000e+00 : f32
    %44 = vector.broadcast %cst_31 : f32 to vector<8x512xf32>
    %45 = arith.maximumf %43, %44 : vector<8x512xf32>
    %46 = arith.truncf %45 : vector<8x512xf32> to vector<8x512xbf16>
    %c0_32 = arith.constant 0 : index
    %c0_33 = arith.constant 0 : index
    %47 = vector.load %arg13[%c0_32, %c0_33] : memref<512x640xbf16, #tpu.memory_space<vmem>>, vector<512x640xbf16>
    %cst_34 = arith.constant dense<0.000000e+00> : vector<8x640xf32>
    %48 = tpu.matmul %46, %47, %cst_34 {dimension_numbers = #tpu.dot_dimension_numbers<[1], [0], [0], [1], [0, 0, 1, 1], [], []>} : vector<8x512xbf16>, vector<512x640xbf16>, vector<8x640xf32> -> vector<8x640xf32>
    %c0_35 = arith.constant 0 : index
    %c0_36 = arith.constant 0 : index
    %49 = vector.load %arg14[%c0_35, %c0_36] : memref<1x640xf32, #tpu.memory_space<vmem>>, vector<1x640xf32>
    %50 = vector.broadcast %49 : vector<1x640xf32> to vector<8x640xf32>
    %51 = arith.addf %48, %50 : vector<8x640xf32>
    %52 = arith.negf %51 : vector<8x640xf32>
    %53 = math.exp %52 : vector<8x640xf32>
    %cst_37 = arith.constant 1.000000e+00 : f32
    %54 = vector.broadcast %cst_37 : f32 to vector<8x640xf32>
    %55 = arith.addf %54, %53 : vector<8x640xf32>
    %56 = arith.divf %54, %55 : vector<8x640xf32>
    %c0_38 = arith.constant 0 : index
    %c0_39 = arith.constant 0 : index
    %57 = vector.load %arg15[%c0_38, %c0_39] : memref<8x640xf32, #tpu.memory_space<vmem>>, vector<8x640xf32>
    tpu.vector_store %arg15[%c0_38, %c0_39], %56 {strides = array<i32>} : memref<8x640xf32, #tpu.memory_space<vmem>>, vector<8x640xf32>,
    return
  }
  func.func @transform_0(%arg0: i32) -> (i32, i32) {
    %c0_i32 = arith.constant 0 : i32
    %c0_i32_0 = arith.constant 0 : i32
    return %arg0, %c0_i32 : i32, i32
  }
  func.func @transform_1(%arg0: i32) -> (i32, i32) {
    %c0_i32 = arith.constant 0 : i32
    %c0_i32_0 = arith.constant 0 : i32
    return %arg0, %c0_i32 : i32, i32
  }
  func.func @transform_2(%arg0: i32) -> (i32, i32) {
    %c0_i32 = arith.constant 0 : i32
    %c0_i32_0 = arith.constant 0 : i32
    %c0_i32_1 = arith.constant 0 : i32
    return %c0_i32, %c0_i32_0 : i32, i32
  }
  func.func @transform_3(%arg0: i32) -> (i32, i32) {
    %c0_i32 = arith.constant 0 : i32
    %c0_i32_0 = arith.constant 0 : i32
    %c0_i32_1 = arith.constant 0 : i32
    return %c0_i32, %c0_i32_0 : i32, i32
  }
  func.func @transform_4(%arg0: i32) -> (i32, i32) {
    %c0_i32 = arith.constant 0 : i32
    %c0_i32_0 = arith.constant 0 : i32
    %c0_i32_1 = arith.constant 0 : i32
    return %c0_i32, %c0_i32_0 : i32, i32
  }
  func.func @transform_5(%arg0: i32) -> (i32, i32) {
    %c0_i32 = arith.constant 0 : i32
    %c0_i32_0 = arith.constant 0 : i32
    %c0_i32_1 = arith.constant 0 : i32
    return %c0_i32, %c0_i32_0 : i32, i32
  }
  func.func @transform_6(%arg0: i32) -> (i32, i32) {
    %c0_i32 = arith.constant 0 : i32
    %c0_i32_0 = arith.constant 0 : i32
    %c0_i32_1 = arith.constant 0 : i32
    return %c0_i32, %c0_i32_0 : i32, i32
  }
  func.func @transform_7(%arg0: i32) -> (i32, i32) {
    %c0_i32 = arith.constant 0 : i32
    %c0_i32_0 = arith.constant 0 : i32
    %c0_i32_1 = arith.constant 0 : i32
    return %c0_i32, %c0_i32_0 : i32, i32
  }
  func.func @transform_8(%arg0: i32) -> (i32, i32) {
    %c0_i32 = arith.constant 0 : i32
    %c0_i32_0 = arith.constant 0 : i32
    %c0_i32_1 = arith.constant 0 : i32
    return %c0_i32, %c0_i32_0 : i32, i32
  }
  func.func @transform_9(%arg0: i32) -> (i32, i32) {
    %c0_i32 = arith.constant 0 : i32
    %c0_i32_0 = arith.constant 0 : i32
    %c0_i32_1 = arith.constant 0 : i32
    return %c0_i32, %c0_i32_0 : i32, i32
  }
  func.func @transform_10(%arg0: i32) -> (i32, i32) {
    %c0_i32 = arith.constant 0 : i32
    %c0_i32_0 = arith.constant 0 : i32
    %c0_i32_1 = arith.constant 0 : i32
    return %c0_i32, %c0_i32_0 : i32, i32
  }
  func.func @transform_11(%arg0: i32) -> (i32, i32) {
    %c0_i32 = arith.constant 0 : i32
    %c0_i32_0 = arith.constant 0 : i32
    %c0_i32_1 = arith.constant 0 : i32
    return %c0_i32, %c0_i32_0 : i32, i32
  }
  func.func @transform_12(%arg0: i32) -> (i32, i32) {
    %c0_i32 = arith.constant 0 : i32
    %c0_i32_0 = arith.constant 0 : i32
    %c0_i32_1 = arith.constant 0 : i32
    return %c0_i32, %c0_i32_0 : i32, i32
  }
  func.func @transform_13(%arg0: i32) -> (i32, i32) {
    %c0_i32 = arith.constant 0 : i32
    %c0_i32_0 = arith.constant 0 : i32
    %c0_i32_1 = arith.constant 0 : i32
    return %c0_i32, %c0_i32_0 : i32, i32
  }
  func.func @transform_14(%arg0: i32) -> (i32, i32) {
    %c0_i32 = arith.constant 0 : i32
    %c0_i32_0 = arith.constant 0 : i32
    return %arg0, %c0_i32 : i32, i32
  }
}

</mosaic_0001>

<llo_original>
// kernel: vae_forward.1
$region0: #{vae_forward.1}
  #allocation0 [shape = 'u32[]', space=smem, size = 0x4, offset = 0x4, fixed_abs, tag = 'smem constant byte address 0x4 - core index']
  #allocation1 [shape = 'u32[72,128]{1,0:T(1,128)}', space=vmem, size = 0x9000, scoped, tag = 'internal scratch']
  %s0 = inlined_call_operand.vmem [shape: bf16[8,640], index: 0, kind: input, shape index: {}]
  %s1 = inlined_call_operand.vmem [shape: f32[8,128], index: 1, kind: input, shape index: {}]
  %s2 = inlined_call_operand.hbm [shape: bf16[640,512], index: 2, kind: input, shape index: {}]
  %s3 = inlined_call_operand.vmem [shape: f32[1,512], index: 3, kind: input, shape index: {}]
  %s4 = inlined_call_operand.hbm [shape: bf16[512,512], index: 4, kind: input, shape index: {}]
  %s5 = inlined_call_operand.vmem [shape: f32[1,512], index: 5, kind: input, shape index: {}]
  %s6 = inlined_call_operand.hbm [shape: bf16[512,256], index: 6, kind: input, shape index: {}]
  %s7 = inlined_call_operand.vmem [shape: f32[1,256], index: 7, kind: input, shape index: {}]
  %s8 = inlined_call_operand.hbm [shape: bf16[128,512], index: 8, kind: input, shape index: {}]
  %s9 = inlined_call_operand.vmem [shape: f32[1,512], index: 9, kind: input, shape index: {}]
  %s10 = inlined_call_operand.hbm [shape: bf16[512,512], index: 10, kind: input, shape index: {}]
  %s11 = inlined_call_operand.vmem [shape: f32[1,512], index: 11, kind: input, shape index: {}]
  %s12 = inlined_call_operand.hbm [shape: bf16[512,640], index: 12, kind: input, shape index: {}]
  %s13 = inlined_call_operand.vmem [shape: f32[1,640], index: 13, kind: input, shape index: {}]
  %s14 = inlined_call_operand.hbm [shape: f32[8,640], index: 14, kind: output, shape index: {}]
  %s15 = sld [smem:[#allocation0]]
  $region90: #{vae_forward.1} parent=0
    _
  %s17 = ssub.s32 1, %s15
  %s18 = scalar_select 0, %s17, %s15
  $region1: #{vae_forward.1} parent=0
    #allocation2 [shape = 'u8[655360]{0}', space=vmem, size = 0xa0000, scoped, tag = 'input window, operand 2, single buffered']
    #allocation3 [shape = 's32[1]{0}', space=sflag, size = 0x4, scoped, tag = 'scoped memory for vae_forward.1']
    #allocation4 [shape = 's32[1]{0}', space=sflag, size = 0x4, scoped, tag = 'scoped memory for vae_forward.1']
    #allocation5 [shape = 'u8[524288]{0}', space=vmem, size = 0x80000, scoped, tag = 'input window, operand 4, single buffered']
    #allocation6 [shape = 's32[1]{0}', space=sflag, size = 0x4, scoped, tag = 'scoped memory for vae_forward.1']
    #allocation7 [shape = 'u8[262144]{0}', space=vmem, size = 0x40000, scoped, tag = 'input window, operand 6, single buffered']
    #allocation8 [shape = 'u8[131072]{0}', space=vmem, size = 0x20000, scoped, tag = 'input window, operand 8, single buffered']
    #allocation9 [shape = 's32[1]{0}', space=sflag, size = 0x4, scoped, tag = 'scoped memory for vae_forward.1']
    #allocation10 [shape = 'u8[524288]{0}', space=vmem, size = 0x80000, scoped, tag = 'input window, operand 10, single buffered']
    #allocation11 [shape = 'u8[655360]{0}', space=vmem, size = 0xa0000, scoped, tag = 'input window, operand 12, single buffered']
    #allocation12 [shape = 's32[1]{0}', space=sflag, size = 0x4, scoped, tag = 'scoped memory for vae_forward.1']
    #allocation13 [shape = 'u8[20480]{0}', space=vmem, size = 0x5000, scoped, tag = 'output window, operand 0, single buffered']
    %19 = vsyncpa [#allocation3], 0
    %20 = vsyncpa [#allocation6], 0
    %21 = vsyncpa [#allocation9], 0
    %22 = vsyncpa [#allocation12], 0
    %23 = vsyncpa [#allocation4], 0
    // Predicated region
    $region2: #{vae_forward.1} parent=1 // pred_check
      _
    $region3: #{vae_forward.1} parent=1 // pred_check_branch
      %25 = sbr.rel (0) target = $region5
    $region4: #{vae_forward.1} parent=1 // pred_region
      _
    $region5: #{vae_forward.1} parent=1 // pred_fallthru
      _
    // Predicated region
    $region6: #{vae_forward.1} parent=1 // pred_check
      _
    $region7: #{vae_forward.1} parent=1 // pred_check_branch
      %27 = sbr.rel (0) target = $region9
    $region8: #{vae_forward.1} parent=1 // pred_region
      _
    $region9: #{vae_forward.1} parent=1 // pred_fallthru
      _
    // Predicated region
    $region10: #{vae_forward.1} parent=1 // pred_check
      _
    $region11: #{vae_forward.1} parent=1 // pred_check_branch
      %29 = sbr.rel (0) target = $region13
    $region12: #{vae_forward.1} parent=1 // pred_region
      %31 = vsyncadd [#allocation3], 0
      %s32 = sshll.u32 %s2, 4
      %s33 = int_to_ptr.hbm [resolvable:$true] %s32
      %s34 = sshll.u32 [#allocation2], 4
      %s35 = int_to_ptr.vmem [resolvable:$true] %s34
      %40 = dma.hbm_to_vmem [thread:$0]  %s33, 20480, %s35, [#allocation3], 256, 256, 16
    $region13: #{vae_forward.1} parent=1 // pred_fallthru
      _
    // Predicated region
    $region14: #{vae_forward.1} parent=1 // pred_check
      _
    $region15: #{vae_forward.1} parent=1 // pred_check_branch
      %42 = sbr.rel (0) target = $region17
    $region16: #{vae_forward.1} parent=1 // pred_region
      _
    $region17: #{vae_forward.1} parent=1 // pred_fallthru
      _
    // Predicated region
    $region18: #{vae_forward.1} parent=1 // pred_check
      _
    $region19: #{vae_forward.1} parent=1 // pred_check_branch
      %44 = sbr.rel (0) target = $region21
    $region20: #{vae_forward.1} parent=1 // pred_region
      %46 = vsyncadd [#allocation6], 0
      %s47 = sshll.u32 %s4, 4
      %s48 = int_to_ptr.hbm [resolvable:$true] %s47
      %s49 = sshll.u32 [#allocation5], 4
      %s50 = int_to_ptr.vmem [resolvable:$true] %s49
      %55 = dma.hbm_to_vmem [thread:$0]  %s48, 16384, %s50, [#allocation6], 256, 256, 16
    $region21: #{vae_forward.1} parent=1 // pred_fallthru
      _
    // Predicated region
    $region22: #{vae_forward.1} parent=1 // pred_check
      _
    $region23: #{vae_forward.1} parent=1 // pred_check_branch
      %57 = sbr.rel (0) target = $region25
    $region24: #{vae_forward.1} parent=1 // pred_region
      _
    $region25: #{vae_forward.1} parent=1 // pred_fallthru
      _
    // Predicated region
    $region26: #{vae_forward.1} parent=1 // pred_check
      _
    $region27: #{vae_forward.1} parent=1 // pred_check_branch
      %59 = sbr.rel (0) target = $region29
    $region28: #{vae_forward.1} parent=1 // pred_region
      %61 = vsyncadd [#allocation6], 0
      %s62 = sshll.u32 %s6, 4
      %s63 = int_to_ptr.hbm [resolvable:$true] %s62
      %s64 = sshll.u32 [#allocation7], 4
      %s65 = int_to_ptr.vmem [resolvable:$true] %s64
      %70 = dma.hbm_to_vmem [thread:$0]  %s63, 8192, %s65, [#allocation6], 128, 128, 8
    $region29: #{vae_forward.1} parent=1 // pred_fallthru
      _
    // Predicated region
    $region30: #{vae_forward.1} parent=1 // pred_check
      _
    $region31: #{vae_forward.1} parent=1 // pred_check_branch
      %72 = sbr.rel (0) target = $region33
    $region32: #{vae_forward.1} parent=1 // pred_region
      _
    $region33: #{vae_forward.1} parent=1 // pred_fallthru
      _
    // Predicated region
    $region34: #{vae_forward.1} parent=1 // pred_check
      _
    $region35: #{vae_forward.1} parent=1 // pred_check_branch
      %74 = sbr.rel (0) target = $region37
    $region36: #{vae_forward.1} parent=1 // pred_region
      %76 = vsyncadd [#allocation9], 0
      %s77 = sshll.u32 %s8, 4
      %s78 = int_to_ptr.hbm [resolvable:$true] %s77
      %s79 = sshll.u32 [#allocation8], 4
      %s80 = int_to_ptr.vmem [resolvable:$true] %s79
      %85 = dma.hbm_to_vmem [thread:$0]  %s78, 4096, %s80, [#allocation9], 256, 256, 16
    $region37: #{vae_forward.1} parent=1 // pred_fallthru
      _
    // Predicated region
    $region38: #{vae_forward.1} parent=1 // pred_check
      _
    $region39: #{vae_forward.1} parent=1 // pred_check_branch
      %87 = sbr.rel (0) target = $region41
    $region40: #{vae_forward.1} parent=1 // pred_region
      _
    $region41: #{vae_forward.1} parent=1 // pred_fallthru
      _
    // Predicated region
    $region42: #{vae_forward.1} parent=1 // pred_check
      _
    $region43: #{vae_forward.1} parent=1 // pred_check_branch
      %89 = sbr.rel (0) target = $region45
    $region44: #{vae_forward.1} parent=1 // pred_region
      %91 = vsyncadd [#allocation9], 0
      %s92 = sshll.u32 %s10, 4
      %s93 = int_to_ptr.hbm [resolvable:$true] %s92
      %s94 = sshll.u32 [#allocation10], 4
      %s95 = int_to_ptr.vmem [resolvable:$true] %s94
      %100 = dma.hbm_to_vmem [thread:$0]  %s93, 16384, %s95, [#allocation9], 256, 256, 16
    $region45: #{vae_forward.1} parent=1 // pred_fallthru
      _
    // Predicated region
    $region46: #{vae_forward.1} parent=1 // pred_check
      _
    $region47: #{vae_forward.1} parent=1 // pred_check_branch
      %102 = sbr.rel (0) target = $region49
    $region48: #{vae_forward.1} parent=1 // pred_region
      _
    $region49: #{vae_forward.1} parent=1 // pred_fallthru
      _
    // Predicated region
    $region50: #{vae_forward.1} parent=1 // pred_check
      _
    $region51: #{vae_forward.1} parent=1 // pred_check_branch
      %104 = sbr.rel (0) target = $region53
    $region52: #{vae_forward.1} parent=1 // pred_region
      %106 = vsyncadd [#allocation12], 0
      %s107 = sshll.u32 %s12, 4
      %s108 = int_to_ptr.hbm [resolvable:$true] %s107
      %s109 = sshll.u32 [#allocation11], 4
      %s110 = int_to_ptr.vmem [resolvable:$true] %s109
      %115 = dma.hbm_to_vmem [thread:$0]  %s108, 20480, %s110, [#allocation12], 320, 320, 20
    $region53: #{vae_forward.1} parent=1 // pred_fallthru
      _
    // Predicated region
    $region54: #{vae_forward.1} parent=1 // pred_check
      _
    $region55: #{vae_forward.1} parent=1 // pred_check_branch
      %117 = sbr.rel (0) target = $region57
    $region56: #{vae_forward.1} parent=1 // pred_region
      _
    $region57: #{vae_forward.1} parent=1 // pred_fallthru
      _
    // Predicated region
    $region58: #{vae_forward.1} parent=1 // pred_check
      _
    $region59: #{vae_forward.1} parent=1 // pred_check_branch
      %119 = sbr.rel (0) target = $region61
    $region60: #{vae_forward.1} parent=1 // pred_region
      %121 = dma.done [#allocation3], 20480
    $region61: #{vae_forward.1} parent=1 // pred_fallthru
      _
    // Predicated region
    $region62: #{vae_forward.1} parent=1 // pred_check
      _
    $region63: #{vae_forward.1} parent=1 // pred_check_branch
      %123 = sbr.rel (0) target = $region65
    $region64: #{vae_forward.1} parent=1 // pred_region
      %125 = dma.done [#allocation6], 16384
    $region65: #{vae_forward.1} parent=1 // pred_fallthru
      _
    // Predicated region
    $region66: #{vae_forward.1} parent=1 // pred_check
      _
    $region67: #{vae_forward.1} parent=1 // pred_check_branch
      %127 = sbr.rel (0) target = $region69
    $region68: #{vae_forward.1} parent=1 // pred_region
      %129 = dma.done [#allocation6], 8192
    $region69: #{vae_forward.1} parent=1 // pred_fallthru
      _
    // Predicated region
    $region70: #{vae_forward.1} parent=1 // pred_check
      _
    $region71: #{vae_forward.1} parent=1 // pred_check_branch
      %131 = sbr.rel (0) target = $region73
    $region72: #{vae_forward.1} parent=1 // pred_region
      %133 = dma.done [#allocation9], 4096
    $region73: #{vae_forward.1} parent=1 // pred_fallthru
      _
    // Predicated region
    $region74: #{vae_forward.1} parent=1 // pred_check
      _
    $region75: #{vae_forward.1} parent=1 // pred_check_branch
      %135 = sbr.rel (0) target = $region77
    $region76: #{vae_forward.1} parent=1 // pred_region
      %137 = dma.done [#allocation9], 16384
    $region77: #{vae_forward.1} parent=1 // pred_fallthru
      _
    // Predicated region
    $region78: #{vae_forward.1} parent=1 // pred_check
      _
    $region79: #{vae_forward.1} parent=1 // pred_check_branch
      %139 = sbr.rel (0) target = $region81
    $region80: #{vae_forward.1} parent=1 // pred_region
      %141 = dma.done [#allocation12], 20480
    $region81: #{vae_forward.1} parent=1 // pred_fallthru
      _
    %v142 = vld [vmem:[%s0] sm:$0xff]
    %v143 = vld [vmem:[%s0 + $0x8] sm:$0xff]
    %v144 = vld [vmem:[%s0 + $0x10] sm:$0xf]
    %v145 = vld [vmem:[%s1] sm:$0xff]
    %v146 = vld [vmem:[#allocation2] sm:$0xff]
    %v147 = vld [vmem:[#allocation2 + $0x8] sm:$0xff]
    %v148 = vld [vmem:[#allocation2 + $0x10] sm:$0xff]
    %v149 = vld [vmem:[#allocation2 + $0x18] sm:$0xff]
    %v150 = vld [vmem:[#allocation2 + $0x20] sm:$0xff]
    %v151 = vld [vmem:[#allocation2 + $0x28] sm:$0xff]
    %v152 = vld [vmem:[#allocation2 + $0x30] sm:$0xff]
    %v153 = vld [vmem:[#allocation2 + $0x38] sm:$0xff]
    %v154 = vld [vmem:[#allocation2 + $0x40] sm:$0xff]
    %v155 = vld [vmem:[#allocation2 + $0x48] sm:$0xff]
    %v156 = vld [vmem:[#allocation2 + $0x50] sm:$0xff]
    %v157 = vld [vmem:[#allocation2 + $0x58] sm:$0xff]
    %v158 = vld [vmem:[#allocation2 + $0x60] sm:$0xff]
    %v159 = vld [vmem:[#allocation2 + $0x68] sm:$0xff]
    %v160 = vld [vmem:[#allocation2 + $0x70] sm:$0xff]
    %v161 = vld [vmem:[#allocation2 + $0x78] sm:$0xff]
    %v162 = vld [vmem:[#allocation2 + $0x80] sm:$0xff]
    %v163 = vld [vmem:[#allocation2 + $0x88] sm:$0xff]
    %v164 = vld [vmem:[#allocation2 + $0x90] sm:$0xff]
    %v165 = vld [vmem:[#allocation2 + $0x98] sm:$0xff]
    %v166 = vld [vmem:[#allocation2 + $0xa0] sm:$0xff]
    %v167 = vld [vmem:[#allocation2 + $0xa8] sm:$0xff]
    %v168 = vld [vmem:[#allocation2 + $0xb0] sm:$0xff]
    %v169 = vld [vmem:[#allocation2 + $0xb8] sm:$0xff]
    %v170 = vld [vmem:[#allocation2 + $0xc0] sm:$0xff]
    %v171 = vld [vmem:[#allocation2 + $0xc8] sm:$0xff]
    %v172 = vld [vmem:[#allocation2 + $0xd0] sm:$0xff]
    %v173 = vld [vmem:[#allocation2 + $0xd8] sm:$0xff]
    %v174 = vld [vmem:[#allocation2 + $0xe0] sm:$0xff]
    %v175 = vld [vmem:[#allocation2 + $0xe8] sm:$0xff]
    %v176 = vld [vmem:[#allocation2 + $0xf0] sm:$0xff]
    %v177 = vld [vmem:[#allocation2 + $0xf8] sm:$0xff]
    %v178 = vld [vmem:[#allocation2 + $0x100] sm:$0xff]
    %v179 = vld [vmem:[#allocation2 + $0x108] sm:$0xff]
    %v180 = vld [vmem:[#allocation2 + $0x110] sm:$0xff]
    %v181 = vld [vmem:[#allocation2 + $0x118] sm:$0xff]
    %v182 = vld [vmem:[#allocation2 + $0x120] sm:$0xff]
    %v183 = vld [vmem:[#allocation2 + $0x128] sm:$0xff]
    %v184 = vld [vmem:[#allocation2 + $0x130] sm:$0xff]
    %v185 = vld [vmem:[#allocation2 + $0x138] sm:$0xff]
    %v186 = vld [vmem:[#allocation2 + $0x140] sm:$0xff]
    %v187 = vld [vmem:[#allocation2 + $0x148] sm:$0xff]
    %v188 = vld [vmem:[#allocation2 + $0x150] sm:$0xff]
    %v189 = vld [vmem:[#allocation2 + $0x158] sm:$0xff]
    %v190 = vld [vmem:[#allocation2 + $0x160] sm:$0xff]
    %v191 = vld [vmem:[#allocation2 + $0x168] sm:$0xff]
    %v192 = vld [vmem:[#allocation2 + $0x170] sm:$0xff]
    %v193 = vld [vmem:[#allocation2 + $0x178] sm:$0xff]
    %v194 = vld [vmem:[#allocation2 + $0x180] sm:$0xff]
    %v195 = vld [vmem:[#allocation2 + $0x188] sm:$0xff]
    %v196 = vld [vmem:[#allocation2 + $0x190] sm:$0xff]
    %v197 = vld [vmem:[#allocation2 + $0x198] sm:$0xff]
    %v198 = vld [vmem:[#allocation2 + $0x1a0] sm:$0xff]
    %v199 = vld [vmem:[#allocation2 + $0x1a8] sm:$0xff]
    %v200 = vld [vmem:[#allocation2 + $0x1b0] sm:$0xff]
    %v201 = vld [vmem:[#allocation2 + $0x1b8] sm:$0xff]
    %v202 = vld [vmem:[#allocation2 + $0x1c0] sm:$0xff]
    %v203 = vld [vmem:[#allocation2 + $0x1c8] sm:$0xff]
    %v204 = vld [vmem:[#allocation2 + $0x1d0] sm:$0xff]
    %v205 = vld [vmem:[#allocation2 + $0x1d8] sm:$0xff]
    %v206 = vld [vmem:[#allocation2 + $0x1e0] sm:$0xff]
    %v207 = vld [vmem:[#allocation2 + $0x1e8] sm:$0xff]
    %v208 = vld [vmem:[#allocation2 + $0x1f0] sm:$0xff]
    %v209 = vld [vmem:[#allocation2 + $0x1f8] sm:$0xff]
    %v210 = vld [vmem:[#allocation2 + $0x200] sm:$0xff]
    %v211 = vld [vmem:[#allocation2 + $0x208] sm:$0xff]
    %v212 = vld [vmem:[#allocation2 + $0x210] sm:$0xff]
    %v213 = vld [vmem:[#allocation2 + $0x218] sm:$0xff]
    %v214 = vld [vmem:[#allocation2 + $0x220] sm:$0xff]
    %v215 = vld [vmem:[#allocation2 + $0x228] sm:$0xff]
    %v216 = vld [vmem:[#allocation2 + $0x230] sm:$0xff]
    %v217 = vld [vmem:[#allocation2 + $0x238] sm:$0xff]
    %v218 = vld [vmem:[#allocation2 + $0x240] sm:$0xff]
    %v219 = vld [vmem:[#allocation2 + $0x248] sm:$0xff]
    %v220 = vld [vmem:[#allocation2 + $0x250] sm:$0xff]
    %v221 = vld [vmem:[#allocation2 + $0x258] sm:$0xff]
    %v222 = vld [vmem:[#allocation2 + $0x260] sm:$0xff]
    %v223 = vld [vmem:[#allocation2 + $0x268] sm:$0xff]
    %v224 = vld [vmem:[#allocation2 + $0x270] sm:$0xff]
    %v225 = vld [vmem:[#allocation2 + $0x278] sm:$0xff]
    %v226 = vld [vmem:[#allocation2 + $0x280] sm:$0xff]
    %v227 = vld [vmem:[#allocation2 + $0x288] sm:$0xff]
    %v228 = vld [vmem:[#allocation2 + $0x290] sm:$0xff]
    %v229 = vld [vmem:[#allocation2 + $0x298] sm:$0xff]
    %v230 = vld [vmem:[#allocation2 + $0x2a0] sm:$0xff]
    %v231 = vld [vmem:[#allocation2 + $0x2a8] sm:$0xff]
    %v232 = vld [vmem:[#allocation2 + $0x2b0] sm:$0xff]
    %v233 = vld [vmem:[#allocation2 + $0x2b8] sm:$0xff]
    %v234 = vld [vmem:[#allocation2 + $0x2c0] sm:$0xff]
    %v235 = vld [vmem:[#allocation2 + $0x2c8] sm:$0xff]
    %v236 = vld [vmem:[#allocation2 + $0x2d0] sm:$0xff]
    %v237 = vld [vmem:[#allocation2 + $0x2d8] sm:$0xff]
    %v238 = vld [vmem:[#allocation2 + $0x2e0] sm:$0xff]
    %v239 = vld [vmem:[#allocation2 + $0x2e8] sm:$0xff]
    %v240 = vld [vmem:[#allocation2 + $0x2f0] sm:$0xff]
    %v241 = vld [vmem:[#allocation2 + $0x2f8] sm:$0xff]
    %v242 = vld [vmem:[#allocation2 + $0x300] sm:$0xff]
    %v243 = vld [vmem:[#allocation2 + $0x308] sm:$0xff]
    %v244 = vld [vmem:[#allocation2 + $0x310] sm:$0xff]
    %v245 = vld [vmem:[#allocation2 + $0x318] sm:$0xff]
    %v246 = vld [vmem:[#allocation2 + $0x320] sm:$0xff]
    %v247 = vld [vmem:[#allocation2 + $0x328] sm:$0xff]
    %v248 = vld [vmem:[#allocation2 + $0x330] sm:$0xff]
    %v249 = vld [vmem:[#allocation2 + $0x338] sm:$0xff]
    %v250 = vld [vmem:[#allocation2 + $0x340] sm:$0xff]
    %v251 = vld [vmem:[#allocation2 + $0x348] sm:$0xff]
    %v252 = vld [vmem:[#allocation2 + $0x350] sm:$0xff]
    %v253 = vld [vmem:[#allocation2 + $0x358] sm:$0xff]
    %v254 = vld [vmem:[#allocation2 + $0x360] sm:$0xff]
    %v255 = vld [vmem:[#allocation2 + $0x368] sm:$0xff]
    %v256 = vld [vmem:[#allocation2 + $0x370] sm:$0xff]
    %v257 = vld [vmem:[#allocation2 + $0x378] sm:$0xff]
    %v258 = vld [vmem:[#allocation2 + $0x380] sm:$0xff]
    %v259 = vld [vmem:[#allocation2 + $0x388] sm:$0xff]
    %v260 = vld [vmem:[#allocation2 + $0x390] sm:$0xff]
    %v261 = vld [vmem:[#allocation2 + $0x398] sm:$0xff]
    %v262 = vld [vmem:[#allocation2 + $0x3a0] sm:$0xff]
    %v263 = vld [vmem:[#allocation2 + $0x3a8] sm:$0xff]
    %v264 = vld [vmem:[#allocation2 + $0x3b0] sm:$0xff]
    %v265 = vld [vmem:[#allocation2 + $0x3b8] sm:$0xff]
    %v266 = vld [vmem:[#allocation2 + $0x3c0] sm:$0xff]
    %v267 = vld [vmem:[#allocation2 + $0x3c8] sm:$0xff]
    %v268 = vld [vmem:[#allocation2 + $0x3d0] sm:$0xff]
    %v269 = vld [vmem:[#allocation2 + $0x3d8] sm:$0xff]
    %v270 = vld [vmem:[#allocation2 + $0x3e0] sm:$0xff]
    %v271 = vld [vmem:[#allocation2 + $0x3e8] sm:$0xff]
    %v272 = vld [vmem:[#allocation2 + $0x3f0] sm:$0xff]
    %v273 = vld [vmem:[#allocation2 + $0x3f8] sm:$0xff]
    %v274 = vld [vmem:[#allocation2 + $0x400] sm:$0xff]
    %v275 = vld [vmem:[#allocation2 + $0x408] sm:$0xff]
    %v276 = vld [vmem:[#allocation2 + $0x410] sm:$0xff]
    %v277 = vld [vmem:[#allocation2 + $0x418] sm:$0xff]
    %v278 = vld [vmem:[#allocation2 + $0x420] sm:$0xff]
    %v279 = vld [vmem:[#allocation2 + $0x428] sm:$0xff]
    %v280 = vld [vmem:[#allocation2 + $0x430] sm:$0xff]
    %v281 = vld [vmem:[#allocation2 + $0x438] sm:$0xff]
    %v282 = vld [vmem:[#allocation2 + $0x440] sm:$0xff]
    %v283 = vld [vmem:[#allocation2 + $0x448] sm:$0xff]
    %v284 = vld [vmem:[#allocation2 + $0x450] sm:$0xff]
    %v285 = vld [vmem:[#allocation2 + $0x458] sm:$0xff]
    %v286 = vld [vmem:[#allocation2 + $0x460] sm:$0xff]
    %v287 = vld [vmem:[#allocation2 + $0x468] sm:$0xff]
    %v288 = vld [vmem:[#allocation2 + $0x470] sm:$0xff]
    %v289 = vld [vmem:[#allocation2 + $0x478] sm:$0xff]
    %v290 = vld [vmem:[#allocation2 + $0x480] sm:$0xff]
    %v291 = vld [vmem:[#allocation2 + $0x488] sm:$0xff]
    %v292 = vld [vmem:[#allocation2 + $0x490] sm:$0xff]
    %v293 = vld [vmem:[#allocation2 + $0x498] sm:$0xff]
    %v294 = vld [vmem:[#allocation2 + $0x4a0] sm:$0xff]
    %v295 = vld [vmem:[#allocation2 + $0x4a8] sm:$0xff]
    %v296 = vld [vmem:[#allocation2 + $0x4b0] sm:$0xff]
    %v297 = vld [vmem:[#allocation2 + $0x4b8] sm:$0xff]
    %v298 = vld [vmem:[#allocation2 + $0x4c0] sm:$0xff]
    %v299 = vld [vmem:[#allocation2 + $0x4c8] sm:$0xff]
    %v300 = vld [vmem:[#allocation2 + $0x4d0] sm:$0xff]
    %v301 = vld [vmem:[#allocation2 + $0x4d8] sm:$0xff]
    %v302 = vld [vmem:[#allocation2 + $0x4e0] sm:$0xff]
    %v303 = vld [vmem:[#allocation2 + $0x4e8] sm:$0xff]
    %v304 = vld [vmem:[#allocation2 + $0x4f0] sm:$0xff]
    %v305 = vld [vmem:[#allocation2 + $0x4f8] sm:$0xff]
    %v306 = vld [vmem:[%s3] sm:$0xf]
    %v308 = vperm.slane %v306, 0
    %v309 = vperm.slane %v306, 1
    %v310 = vperm.slane %v306, 2
    %v311 = vperm.slane %v306, 3
    %v319 = vunpack.c.l.b16 %v142
    %v320 = vunpack.c.h.b16 %v142
    %v321 = vunpack.c.l.b16 %v143
    %v322 = vunpack.c.h.b16 %v143
    %v323 = vunpack.c.l.b16 %v144
    %v324 = vpack.c.b16 %v319, %v319
    %v325 = vpack.c.b16 %v320, %v320
    %v326 = vpack.c.b16 %v321, %v321
    %v327 = vpack.c.b16 %v322, %v322
    %v328 = vpack.c.b16 %v323, %v323
    %v494 = vunpack.c.l.b16 %v146
    %v495 = vunpack.c.h.b16 %v146
    %v496 = vunpack.c.l.b16 %v147
    %v497 = vunpack.c.h.b16 %v147
    %v498 = vunpack.c.l.b16 %v148
    %v499 = vunpack.c.h.b16 %v148
    %v500 = vunpack.c.l.b16 %v149
    %v501 = vunpack.c.h.b16 %v149
    %v502 = vunpack.c.l.b16 %v150
    %v503 = vunpack.c.h.b16 %v150
    %v504 = vunpack.c.l.b16 %v151
    %v505 = vunpack.c.h.b16 %v151
    %v506 = vunpack.c.l.b16 %v152
    %v507 = vunpack.c.h.b16 %v152
    %v508 = vunpack.c.l.b16 %v153
    %v509 = vunpack.c.h.b16 %v153
    %v510 = vunpack.c.l.b16 %v154
    %v511 = vunpack.c.h.b16 %v154
    %v512 = vunpack.c.l.b16 %v155
    %v513 = vunpack.c.h.b16 %v155
    %v514 = vunpack.c.l.b16 %v156
    %v515 = vunpack.c.h.b16 %v156
    %v516 = vunpack.c.l.b16 %v157
    %v517 = vunpack.c.h.b16 %v157
    %v518 = vunpack.c.l.b16 %v158
    %v519 = vunpack.c.h.b16 %v158
    %v520 = vunpack.c.l.b16 %v159
    %v521 = vunpack.c.h.b16 %v159
    %v522 = vunpack.c.l.b16 %v160
    %v523 = vunpack.c.h.b16 %v160
    %v524 = vunpack.c.l.b16 %v161
    %v525 = vunpack.c.h.b16 %v161
    %v526 = vunpack.c.l.b16 %v162
    %v527 = vunpack.c.h.b16 %v162
    %v528 = vunpack.c.l.b16 %v163
    %v529 = vunpack.c.h.b16 %v163
    %v530 = vunpack.c.l.b16 %v164
    %v531 = vunpack.c.h.b16 %v164
    %v532 = vunpack.c.l.b16 %v165
    %v533 = vunpack.c.h.b16 %v165
    %v534 = vunpack.c.l.b16 %v166
    %v535 = vunpack.c.h.b16 %v166
    %v536 = vunpack.c.l.b16 %v167
    %v537 = vunpack.c.h.b16 %v167
    %v538 = vunpack.c.l.b16 %v168
    %v539 = vunpack.c.h.b16 %v168
    %v540 = vunpack.c.l.b16 %v169
    %v541 = vunpack.c.h.b16 %v169
    %v542 = vunpack.c.l.b16 %v170
    %v543 = vunpack.c.h.b16 %v170
    %v544 = vunpack.c.l.b16 %v171
    %v545 = vunpack.c.h.b16 %v171
    %v546 = vunpack.c.l.b16 %v172
    %v547 = vunpack.c.h.b16 %v172
    %v548 = vunpack.c.l.b16 %v173
    %v549 = vunpack.c.h.b16 %v173
    %v550 = vunpack.c.l.b16 %v174
    %v551 = vunpack.c.h.b16 %v174
    %v552 = vunpack.c.l.b16 %v175
    %v553 = vunpack.c.h.b16 %v175
    %v554 = vunpack.c.l.b16 %v176
    %v555 = vunpack.c.h.b16 %v176
    %v556 = vunpack.c.l.b16 %v177
    %v557 = vunpack.c.h.b16 %v177
    %v558 = vunpack.c.l.b16 %v178
    %v559 = vunpack.c.h.b16 %v178
    %v560 = vunpack.c.l.b16 %v179
    %v561 = vunpack.c.h.b16 %v179
    %v562 = vunpack.c.l.b16 %v180
    %v563 = vunpack.c.h.b16 %v180
    %v564 = vunpack.c.l.b16 %v181
    %v565 = vunpack.c.h.b16 %v181
    %v566 = vunpack.c.l.b16 %v182
    %v567 = vunpack.c.h.b16 %v182
    %v568 = vunpack.c.l.b16 %v183
    %v569 = vunpack.c.h.b16 %v183
    %v570 = vunpack.c.l.b16 %v184
    %v571 = vunpack.c.h.b16 %v184
    %v572 = vunpack.c.l.b16 %v185
    %v573 = vunpack.c.h.b16 %v185
    %v574 = vunpack.c.l.b16 %v186
    %v575 = vunpack.c.h.b16 %v186
    %v576 = vunpack.c.l.b16 %v187
    %v577 = vunpack.c.h.b16 %v187
    %v578 = vunpack.c.l.b16 %v188
    %v579 = vunpack.c.h.b16 %v188
    %v580 = vunpack.c.l.b16 %v189
    %v581 = vunpack.c.h.b16 %v189
    %v582 = vunpack.c.l.b16 %v190
    %v583 = vunpack.c.h.b16 %v190
    %v584 = vunpack.c.l.b16 %v191
    %v585 = vunpack.c.h.b16 %v191
    %v586 = vunpack.c.l.b16 %v192
    %v587 = vunpack.c.h.b16 %v192
    %v588 = vunpack.c.l.b16 %v193
    %v589 = vunpack.c.h.b16 %v193
    %v590 = vunpack.c.l.b16 %v194
    %v591 = vunpack.c.h.b16 %v194
    %v592 = vunpack.c.l.b16 %v195
    %v593 = vunpack.c.h.b16 %v195
    %v594 = vunpack.c.l.b16 %v196
    %v595 = vunpack.c.h.b16 %v196
    %v596 = vunpack.c.l.b16 %v197
    %v597 = vunpack.c.h.b16 %v197
    %v598 = vunpack.c.l.b16 %v198
    %v599 = vunpack.c.h.b16 %v198
    %v600 = vunpack.c.l.b16 %v199
    %v601 = vunpack.c.h.b16 %v199
    %v602 = vunpack.c.l.b16 %v200
    %v603 = vunpack.c.h.b16 %v200
    %v604 = vunpack.c.l.b16 %v201
    %v605 = vunpack.c.h.b16 %v201
    %v606 = vunpack.c.l.b16 %v202
    %v607 = vunpack.c.h.b16 %v202
    %v608 = vunpack.c.l.b16 %v203
    %v609 = vunpack.c.h.b16 %v203
    %v610 = vunpack.c.l.b16 %v204
    %v611 = vunpack.c.h.b16 %v204
    %v612 = vunpack.c.l.b16 %v205
    %v613 = vunpack.c.h.b16 %v205
    %v614 = vunpack.c.l.b16 %v206
    %v615 = vunpack.c.h.b16 %v206
    %v616 = vunpack.c.l.b16 %v207
    %v617 = vunpack.c.h.b16 %v207
    %v618 = vunpack.c.l.b16 %v208
    %v619 = vunpack.c.h.b16 %v208
    %v620 = vunpack.c.l.b16 %v209
    %v621 = vunpack.c.h.b16 %v209
    %v622 = vunpack.c.l.b16 %v210
    %v623 = vunpack.c.h.b16 %v210
    %v624 = vunpack.c.l.b16 %v211
    %v625 = vunpack.c.h.b16 %v211
    %v626 = vunpack.c.l.b16 %v212
    %v627 = vunpack.c.h.b16 %v212
    %v628 = vunpack.c.l.b16 %v213
    %v629 = vunpack.c.h.b16 %v213
    %v630 = vunpack.c.l.b16 %v214
    %v631 = vunpack.c.h.b16 %v214
    %v632 = vunpack.c.l.b16 %v215
    %v633 = vunpack.c.h.b16 %v215
    %v634 = vunpack.c.l.b16 %v216
    %v635 = vunpack.c.h.b16 %v216
    %v636 = vunpack.c.l.b16 %v217
    %v637 = vunpack.c.h.b16 %v217
    %v638 = vunpack.c.l.b16 %v218
    %v639 = vunpack.c.h.b16 %v218
    %v640 = vunpack.c.l.b16 %v219
    %v641 = vunpack.c.h.b16 %v219
    %v642 = vunpack.c.l.b16 %v220
    %v643 = vunpack.c.h.b16 %v220
    %v644 = vunpack.c.l.b16 %v221
    %v645 = vunpack.c.h.b16 %v221
    %v646 = vunpack.c.l.b16 %v222
    %v647 = vunpack.c.h.b16 %v222
    %v648 = vunpack.c.l.b16 %v223
    %v649 = vunpack.c.h.b16 %v223
    %v650 = vunpack.c.l.b16 %v224
    %v651 = vunpack.c.h.b16 %v224
    %v652 = vunpack.c.l.b16 %v225
    %v653 = vunpack.c.h.b16 %v225
    %v654 = vunpack.c.l.b16 %v226
    %v655 = vunpack.c.h.b16 %v226
    %v656 = vunpack.c.l.b16 %v227
    %v657 = vunpack.c.h.b16 %v227
    %v658 = vunpack.c.l.b16 %v228
    %v659 = vunpack.c.h.b16 %v228
    %v660 = vunpack.c.l.b16 %v229
    %v661 = vunpack.c.h.b16 %v229
    %v662 = vunpack.c.l.b16 %v230
    %v663 = vunpack.c.h.b16 %v230
    %v664 = vunpack.c.l.b16 %v231
    %v665 = vunpack.c.h.b16 %v231
    %v666 = vunpack.c.l.b16 %v232
    %v667 = vunpack.c.h.b16 %v232
    %v668 = vunpack.c.l.b16 %v233
    %v669 = vunpack.c.h.b16 %v233
    %v670 = vunpack.c.l.b16 %v234
    %v671 = vunpack.c.h.b16 %v234
    %v672 = vunpack.c.l.b16 %v235
    %v673 = vunpack.c.h.b16 %v235
    %v674 = vunpack.c.l.b16 %v236
    %v675 = vunpack.c.h.b16 %v236
    %v676 = vunpack.c.l.b16 %v237
    %v677 = vunpack.c.h.b16 %v237
    %v678 = vunpack.c.l.b16 %v238
    %v679 = vunpack.c.h.b16 %v238
    %v680 = vunpack.c.l.b16 %v239
    %v681 = vunpack.c.h.b16 %v239
    %v682 = vunpack.c.l.b16 %v240
    %v683 = vunpack.c.h.b16 %v240
    %v684 = vunpack.c.l.b16 %v241
    %v685 = vunpack.c.h.b16 %v241
    %v686 = vunpack.c.l.b16 %v242
    %v687 = vunpack.c.h.b16 %v242
    %v688 = vunpack.c.l.b16 %v243
    %v689 = vunpack.c.h.b16 %v243
    %v690 = vunpack.c.l.b16 %v244
    %v691 = vunpack.c.h.b16 %v244
    %v692 = vunpack.c.l.b16 %v245
    %v693 = vunpack.c.h.b16 %v245
    %v694 = vunpack.c.l.b16 %v246
    %v695 = vunpack.c.h.b16 %v246
    %v696 = vunpack.c.l.b16 %v247
    %v697 = vunpack.c.h.b16 %v247
    %v698 = vunpack.c.l.b16 %v248
    %v699 = vunpack.c.h.b16 %v248
    %v700 = vunpack.c.l.b16 %v249
    %v701 = vunpack.c.h.b16 %v249
    %v702 = vunpack.c.l.b16 %v250
    %v703 = vunpack.c.h.b16 %v250
    %v704 = vunpack.c.l.b16 %v251
    %v705 = vunpack.c.h.b16 %v251
    %v706 = vunpack.c.l.b16 %v252
    %v707 = vunpack.c.h.b16 %v252
    %v708 = vunpack.c.l.b16 %v253
    %v709 = vunpack.c.h.b16 %v253
    %v710 = vunpack.c.l.b16 %v254
    %v711 = vunpack.c.h.b16 %v254
    %v712 = vunpack.c.l.b16 %v255
    %v713 = vunpack.c.h.b16 %v255
    %v714 = vunpack.c.l.b16 %v256
    %v715 = vunpack.c.h.b16 %v256
    %v716 = vunpack.c.l.b16 %v257
    %v717 = vunpack.c.h.b16 %v257
    %v718 = vunpack.c.l.b16 %v258
    %v719 = vunpack.c.h.b16 %v258
    %v720 = vunpack.c.l.b16 %v259
    %v721 = vunpack.c.h.b16 %v259
    %v722 = vunpack.c.l.b16 %v260
    %v723 = vunpack.c.h.b16 %v260
    %v724 = vunpack.c.l.b16 %v261
    %v725 = vunpack.c.h.b16 %v261
    %v726 = vunpack.c.l.b16 %v262
    %v727 = vunpack.c.h.b16 %v262
    %v728 = vunpack.c.l.b16 %v263
    %v729 = vunpack.c.h.b16 %v263
    %v730 = vunpack.c.l.b16 %v264
    %v731 = vunpack.c.h.b16 %v264
    %v732 = vunpack.c.l.b16 %v265
    %v733 = vunpack.c.h.b16 %v265
    %v734 = vunpack.c.l.b16 %v266
    %v735 = vunpack.c.h.b16 %v266
    %v736 = vunpack.c.l.b16 %v267
    %v737 = vunpack.c.h.b16 %v267
    %v738 = vunpack.c.l.b16 %v268
    %v739 = vunpack.c.h.b16 %v268
    %v740 = vunpack.c.l.b16 %v269
    %v741 = vunpack.c.h.b16 %v269
    %v742 = vunpack.c.l.b16 %v270
    %v743 = vunpack.c.h.b16 %v270
    %v744 = vunpack.c.l.b16 %v271
    %v745 = vunpack.c.h.b16 %v271
    %v746 = vunpack.c.l.b16 %v272
    %v747 = vunpack.c.h.b16 %v272
    %v748 = vunpack.c.l.b16 %v273
    %v749 = vunpack.c.h.b16 %v273
    %v750 = vunpack.c.l.b16 %v274
    %v751 = vunpack.c.h.b16 %v274
    %v752 = vunpack.c.l.b16 %v275
    %v753 = vunpack.c.h.b16 %v275
    %v754 = vunpack.c.l.b16 %v276
    %v755 = vunpack.c.h.b16 %v276
    %v756 = vunpack.c.l.b16 %v277
    %v757 = vunpack.c.h.b16 %v277
    %v758 = vunpack.c.l.b16 %v278
    %v759 = vunpack.c.h.b16 %v278
    %v760 = vunpack.c.l.b16 %v279
    %v761 = vunpack.c.h.b16 %v279
    %v762 = vunpack.c.l.b16 %v280
    %v763 = vunpack.c.h.b16 %v280
    %v764 = vunpack.c.l.b16 %v281
    %v765 = vunpack.c.h.b16 %v281
    %v766 = vunpack.c.l.b16 %v282
    %v767 = vunpack.c.h.b16 %v282
    %v768 = vunpack.c.l.b16 %v283
    %v769 = vunpack.c.h.b16 %v283
    %v770 = vunpack.c.l.b16 %v284
    %v771 = vunpack.c.h.b16 %v284
    %v772 = vunpack.c.l.b16 %v285
    %v773 = vunpack.c.h.b16 %v285
    %v774 = vunpack.c.l.b16 %v286
    %v775 = vunpack.c.h.b16 %v286
    %v776 = vunpack.c.l.b16 %v287
    %v777 = vunpack.c.h.b16 %v287
    %v778 = vunpack.c.l.b16 %v288
    %v779 = vunpack.c.h.b16 %v288
    %v780 = vunpack.c.l.b16 %v289
    %v781 = vunpack.c.h.b16 %v289
    %v782 = vunpack.c.l.b16 %v290
    %v783 = vunpack.c.h.b16 %v290
    %v784 = vunpack.c.l.b16 %v291
    %v785 = vunpack.c.h.b16 %v291
    %v786 = vunpack.c.l.b16 %v292
    %v787 = vunpack.c.h.b16 %v292
    %v788 = vunpack.c.l.b16 %v293
    %v789 = vunpack.c.h.b16 %v293
    %v790 = vunpack.c.l.b16 %v294
    %v791 = vunpack.c.h.b16 %v294
    %v792 = vunpack.c.l.b16 %v295
    %v793 = vunpack.c.h.b16 %v295
    %v794 = vunpack.c.l.b16 %v296
    %v795 = vunpack.c.h.b16 %v296
    %v796 = vunpack.c.l.b16 %v297
    %v797 = vunpack.c.h.b16 %v297
    %v798 = vunpack.c.l.b16 %v298
    %v799 = vunpack.c.h.b16 %v298
    %v800 = vunpack.c.l.b16 %v299
    %v801 = vunpack.c.h.b16 %v299
    %v802 = vunpack.c.l.b16 %v300
    %v803 = vunpack.c.h.b16 %v300
    %v804 = vunpack.c.l.b16 %v301
    %v805 = vunpack.c.h.b16 %v301
    %v806 = vunpack.c.l.b16 %v302
    %v807 = vunpack.c.h.b16 %v302
    %v808 = vunpack.c.l.b16 %v303
    %v809 = vunpack.c.h.b16 %v303
    %v810 = vunpack.c.l.b16 %v304
    %v811 = vunpack.c.h.b16 %v304
    %v812 = vunpack.c.l.b16 %v305
    %v813 = vunpack.c.h.b16 %v305
    %v814 = vpack.c.b16 %v498, %v494
    %v815 = vpack.c.b16 %v499, %v495
    %v816 = vpack.c.b16 %v500, %v496
    %v817 = vpack.c.b16 %v501, %v497
    %v818 = vpack.c.b16 %v506, %v502
    %v819 = vpack.c.b16 %v507, %v503
    %v820 = vpack.c.b16 %v508, %v504
    %v821 = vpack.c.b16 %v509, %v505
    %v822 = vpack.c.b16 %v514, %v510
    %v823 = vpack.c.b16 %v515, %v511
    %v824 = vpack.c.b16 %v516, %v512
    %v825 = vpack.c.b16 %v517, %v513
    %v826 = vpack.c.b16 %v522, %v518
    %v827 = vpack.c.b16 %v523, %v519
    %v828 = vpack.c.b16 %v524, %v520
    %v829 = vpack.c.b16 %v525, %v521
    %v830 = vpack.c.b16 %v530, %v526
    %v831 = vpack.c.b16 %v531, %v527
    %v832 = vpack.c.b16 %v532, %v528
    %v833 = vpack.c.b16 %v533, %v529
    %v834 = vpack.c.b16 %v538, %v534
    %v835 = vpack.c.b16 %v539, %v535
    %v836 = vpack.c.b16 %v540, %v536
    %v837 = vpack.c.b16 %v541, %v537
    %v838 = vpack.c.b16 %v546, %v542
    %v839 = vpack.c.b16 %v547, %v543
    %v840 = vpack.c.b16 %v548, %v544
    %v841 = vpack.c.b16 %v549, %v545
    %v842 = vpack.c.b16 %v554, %v550
    %v843 = vpack.c.b16 %v555, %v551
    %v844 = vpack.c.b16 %v556, %v552
    %v845 = vpack.c.b16 %v557, %v553
    %v846 = vpack.c.b16 %v562, %v558
    %v847 = vpack.c.b16 %v563, %v559
    %v848 = vpack.c.b16 %v564, %v560
    %v849 = vpack.c.b16 %v565, %v561
    %v850 = vpack.c.b16 %v570, %v566
    %v851 = vpack.c.b16 %v571, %v567
    %v852 = vpack.c.b16 %v572, %v568
    %v853 = vpack.c.b16 %v573, %v569
    %v854 = vpack.c.b16 %v578, %v574
    %v855 = vpack.c.b16 %v579, %v575
    %v856 = vpack.c.b16 %v580, %v576
    %v857 = vpack.c.b16 %v581, %v577
    %v858 = vpack.c.b16 %v586, %v582
    %v859 = vpack.c.b16 %v587, %v583
    %v860 = vpack.c.b16 %v588, %v584
    %v861 = vpack.c.b16 %v589, %v585
    %v862 = vpack.c.b16 %v594, %v590
    %v863 = vpack.c.b16 %v595, %v591
    %v864 = vpack.c.b16 %v596, %v592
    %v865 = vpack.c.b16 %v597, %v593
    %v866 = vpack.c.b16 %v602, %v598
    %v867 = vpack.c.b16 %v603, %v599
    %v868 = vpack.c.b16 %v604, %v600
    %v869 = vpack.c.b16 %v605, %v601
    %v870 = vpack.c.b16 %v610, %v606
    %v871 = vpack.c.b16 %v611, %v607
    %v872 = vpack.c.b16 %v612, %v608
    %v873 = vpack.c.b16 %v613, %v609
    %v874 = vpack.c.b16 %v618, %v614
    %v875 = vpack.c.b16 %v619, %v615
    %v876 = vpack.c.b16 %v620, %v616
    %v877 = vpack.c.b16 %v621, %v617
    %v878 = vpack.c.b16 %v626, %v622
    %v879 = vpack.c.b16 %v627, %v623
    %v880 = vpack.c.b16 %v628, %v624
    %v881 = vpack.c.b16 %v629, %v625
    %v882 = vpack.c.b16 %v634, %v630
    %v883 = vpack.c.b16 %v635, %v631
    %v884 = vpack.c.b16 %v636, %v632
    %v885 = vpack.c.b16 %v637, %v633
    %v886 = vpack.c.b16 %v642, %v638
    %v887 = vpack.c.b16 %v643, %v639
    %v888 = vpack.c.b16 %v644, %v640
    %v889 = vpack.c.b16 %v645, %v641
    %v890 = vpack.c.b16 %v650, %v646
    %v891 = vpack.c.b16 %v651, %v647
    %v892 = vpack.c.b16 %v652, %v648
    %v893 = vpack.c.b16 %v653, %v649
    %v894 = vpack.c.b16 %v658, %v654
    %v895 = vpack.c.b16 %v659, %v655
    %v896 = vpack.c.b16 %v660, %v656
    %v897 = vpack.c.b16 %v661, %v657
    %v898 = vpack.c.b16 %v666, %v662
    %v899 = vpack.c.b16 %v667, %v663
    %v900 = vpack.c.b16 %v668, %v664
    %v901 = vpack.c.b16 %v669, %v665
    %v902 = vpack.c.b16 %v674, %v670
    %v903 = vpack.c.b16 %v675, %v671
    %v904 = vpack.c.b16 %v676, %v672
    %v905 = vpack.c.b16 %v677, %v673
    %v906 = vpack.c.b16 %v682, %v678
    %v907 = vpack.c.b16 %v683, %v679
    %v908 = vpack.c.b16 %v684, %v680
    %v909 = vpack.c.b16 %v685, %v681
    %v910 = vpack.c.b16 %v690, %v686
    %v911 = vpack.c.b16 %v691, %v687
    %v912 = vpack.c.b16 %v692, %v688
    %v913 = vpack.c.b16 %v693, %v689
    %v914 = vpack.c.b16 %v698, %v694
    %v915 = vpack.c.b16 %v699, %v695
    %v916 = vpack.c.b16 %v700, %v696
    %v917 = vpack.c.b16 %v701, %v697
    %v918 = vpack.c.b16 %v706, %v702
    %v919 = vpack.c.b16 %v707, %v703
    %v920 = vpack.c.b16 %v708, %v704
    %v921 = vpack.c.b16 %v709, %v705
    %v922 = vpack.c.b16 %v714, %v710
    %v923 = vpack.c.b16 %v715, %v711
    %v924 = vpack.c.b16 %v716, %v712
    %v925 = vpack.c.b16 %v717, %v713
    %v926 = vpack.c.b16 %v722, %v718
    %v927 = vpack.c.b16 %v723, %v719
    %v928 = vpack.c.b16 %v724, %v720
    %v929 = vpack.c.b16 %v725, %v721
    %v930 = vpack.c.b16 %v730, %v726
    %v931 = vpack.c.b16 %v731, %v727
    %v932 = vpack.c.b16 %v732, %v728
    %v933 = vpack.c.b16 %v733, %v729
    %v934 = vpack.c.b16 %v738, %v734
    %v935 = vpack.c.b16 %v739, %v735
    %v936 = vpack.c.b16 %v740, %v736
    %v937 = vpack.c.b16 %v741, %v737
    %v938 = vpack.c.b16 %v746, %v742
    %v939 = vpack.c.b16 %v747, %v743
    %v940 = vpack.c.b16 %v748, %v744
    %v941 = vpack.c.b16 %v749, %v745
    %v942 = vpack.c.b16 %v754, %v750
    %v943 = vpack.c.b16 %v755, %v751
    %v944 = vpack.c.b16 %v756, %v752
    %v945 = vpack.c.b16 %v757, %v753
    %v946 = vpack.c.b16 %v762, %v758
    %v947 = vpack.c.b16 %v763, %v759
    %v948 = vpack.c.b16 %v764, %v760
    %v949 = vpack.c.b16 %v765, %v761
    %v950 = vpack.c.b16 %v770, %v766
    %v951 = vpack.c.b16 %v771, %v767
    %v952 = vpack.c.b16 %v772, %v768
    %v953 = vpack.c.b16 %v773, %v769
    %v954 = vpack.c.b16 %v778, %v774
    %v955 = vpack.c.b16 %v779, %v775
    %v956 = vpack.c.b16 %v780, %v776
    %v957 = vpack.c.b16 %v781, %v777
    %v958 = vpack.c.b16 %v786, %v782
    %v959 = vpack.c.b16 %v787, %v783
    %v960 = vpack.c.b16 %v788, %v784
    %v961 = vpack.c.b16 %v789, %v785
    %v962 = vpack.c.b16 %v794, %v790
    %v963 = vpack.c.b16 %v795, %v791
    %v964 = vpack.c.b16 %v796, %v792
    %v965 = vpack.c.b16 %v797, %v793
    %v966 = vpack.c.b16 %v802, %v798
    %v967 = vpack.c.b16 %v803, %v799
    %v968 = vpack.c.b16 %v804, %v800
    %v969 = vpack.c.b16 %v805, %v801
    %v970 = vpack.c.b16 %v810, %v806
    %v971 = vpack.c.b16 %v811, %v807
    %v972 = vpack.c.b16 %v812, %v808
    %v973 = vpack.c.b16 %v813, %v809
    %1134 = vmatpush.bf16.msra.mxu0 %v842
    %1135 = vmatpush.bf16.msra.mxu0 %v838
    %1136 = vmatpush.bf16.msra.mxu0 %v834
    %1137 = vmatpush.bf16.msra.mxu0 %v830
    %1138 = vmatpush.bf16.msra.mxu0 %v826
    %1139 = vmatpush.bf16.msra.mxu0 %v822
    %1140 = vmatpush.bf16.msra.mxu0 %v818
    %1141 = vmatpush.bf16.msra.mxu0 %v814
    %1142 = vmatmul.bf16.gmra.mxu0 %v324
    %v1143 = vpop.f32.mrf.mxu0
    %v1144 = vadd.f32 %v308, %v1143
    %v1145 = vpop.f32.mrf.mxu0
    %1146 = vdwg.mxu0
    %1147 = vmatpush.bf16.msra.mxu0 %v874
    %1148 = vmatpush.bf16.msra.mxu0 %v870
    %1149 = vmatpush.bf16.msra.mxu0 %v866
    %1150 = vmatpush.bf16.msra.mxu0 %v862
    %1151 = vmatpush.bf16.msra.mxu0 %v858
    %1152 = vmatpush.bf16.msra.mxu0 %v854
    %1153 = vmatpush.bf16.msra.mxu0 %v850
    %1154 = vmatpush.bf16.msra.mxu0 %v846
    %1155 = vmatmul.bf16.gmra.mxu0 %v325
    %v1156 = vpop.f32.mrf.mxu0
    %v1157 = vadd.f32 %v1144, %v1156
    %v1158 = vpop.f32.mrf.mxu0
    %1159 = vdwg.mxu0
    %1160 = vmatpush.bf16.msra.mxu0 %v906
    %1161 = vmatpush.bf16.msra.mxu0 %v902
    %1162 = vmatpush.bf16.msra.mxu0 %v898
    %1163 = vmatpush.bf16.msra.mxu0 %v894
    %1164 = vmatpush.bf16.msra.mxu0 %v890
    %1165 = vmatpush.bf16.msra.mxu0 %v886
    %1166 = vmatpush.bf16.msra.mxu0 %v882
    %1167 = vmatpush.bf16.msra.mxu0 %v878
    %1168 = vmatmul.bf16.gmra.mxu0 %v326
    %v1169 = vpop.f32.mrf.mxu0
    %v1170 = vadd.f32 %v1157, %v1169
    %v1171 = vpop.f32.mrf.mxu0
    %1172 = vdwg.mxu0
    %1173 = vmatpush.bf16.msra.mxu0 %v938
    %1174 = vmatpush.bf16.msra.mxu0 %v934
    %1175 = vmatpush.bf16.msra.mxu0 %v930
    %1176 = vmatpush.bf16.msra.mxu0 %v926
    %1177 = vmatpush.bf16.msra.mxu0 %v922
    %1178 = vmatpush.bf16.msra.mxu0 %v918
    %1179 = vmatpush.bf16.msra.mxu0 %v914
    %1180 = vmatpush.bf16.msra.mxu0 %v910
    %1181 = vmatmul.bf16.gmra.mxu0 %v327
    %v1182 = vpop.f32.mrf.mxu0
    %v1183 = vadd.f32 %v1170, %v1182
    %v1184 = vpop.f32.mrf.mxu0
    %1185 = vdwg.mxu0
    %1186 = vmatpush.bf16.msra.mxu0 %v970
    %1187 = vmatpush.bf16.msra.mxu0 %v966
    %1188 = vmatpush.bf16.msra.mxu0 %v962
    %1189 = vmatpush.bf16.msra.mxu0 %v958
    %1190 = vmatpush.bf16.msra.mxu0 %v954
    %1191 = vmatpush.bf16.msra.mxu0 %v950
    %1192 = vmatpush.bf16.msra.mxu0 %v946
    %1193 = vmatpush.bf16.msra.mxu0 %v942
    %1194 = vmatmul.bf16.gmra.mxu0 %v328
    %v1195 = vpop.f32.mrf.mxu0
    %v1196 = vadd.f32 %v1183, %v1195
    %v1197 = vpop.f32.mrf.mxu0
    %1198 = vdwg.mxu0
    %1199 = vmatpush.bf16.msra.mxu0 %v843
    %1200 = vmatpush.bf16.msra.mxu0 %v839
    %1201 = vmatpush.bf16.msra.mxu0 %v835
    %1202 = vmatpush.bf16.msra.mxu0 %v831
    %1203 = vmatpush.bf16.msra.mxu0 %v827
    %1204 = vmatpush.bf16.msra.mxu0 %v823
    %1205 = vmatpush.bf16.msra.mxu0 %v819
    %1206 = vmatpush.bf16.msra.mxu0 %v815
    %1207 = vmatmul.bf16.gmra.mxu0 %v324
    %v1208 = vpop.f32.mrf.mxu0
    %v1209 = vadd.f32 %v309, %v1208
    %v1210 = vpop.f32.mrf.mxu0
    %1211 = vdwg.mxu0
    %1212 = vmatpush.bf16.msra.mxu0 %v875
    %1213 = vmatpush.bf16.msra.mxu0 %v871
    %1214 = vmatpush.bf16.msra.mxu0 %v867
    %1215 = vmatpush.bf16.msra.mxu0 %v863
    %1216 = vmatpush.bf16.msra.mxu0 %v859
    %1217 = vmatpush.bf16.msra.mxu0 %v855
    %1218 = vmatpush.bf16.msra.mxu0 %v851
    %1219 = vmatpush.bf16.msra.mxu0 %v847
    %1220 = vmatmul.bf16.gmra.mxu0 %v325
    %v1221 = vpop.f32.mrf.mxu0
    %v1222 = vadd.f32 %v1209, %v1221
    %v1223 = vpop.f32.mrf.mxu0
    %1224 = vdwg.mxu0
    %1225 = vmatpush.bf16.msra.mxu0 %v907
    %1226 = vmatpush.bf16.msra.mxu0 %v903
    %1227 = vmatpush.bf16.msra.mxu0 %v899
    %1228 = vmatpush.bf16.msra.mxu0 %v895
    %1229 = vmatpush.bf16.msra.mxu0 %v891
    %1230 = vmatpush.bf16.msra.mxu0 %v887
    %1231 = vmatpush.bf16.msra.mxu0 %v883
    %1232 = vmatpush.bf16.msra.mxu0 %v879
    %1233 = vmatmul.bf16.gmra.mxu0 %v326
    %v1234 = vpop.f32.mrf.mxu0
    %v1235 = vadd.f32 %v1222, %v1234
    %v1236 = vpop.f32.mrf.mxu0
    %1237 = vdwg.mxu0
    %1238 = vmatpush.bf16.msra.mxu0 %v939
    %1239 = vmatpush.bf16.msra.mxu0 %v935
    %1240 = vmatpush.bf16.msra.mxu0 %v931
    %1241 = vmatpush.bf16.msra.mxu0 %v927
    %1242 = vmatpush.bf16.msra.mxu0 %v923
    %1243 = vmatpush.bf16.msra.mxu0 %v919
    %1244 = vmatpush.bf16.msra.mxu0 %v915
    %1245 = vmatpush.bf16.msra.mxu0 %v911
    %1246 = vmatmul.bf16.gmra.mxu0 %v327
    %v1247 = vpop.f32.mrf.mxu0
    %v1248 = vadd.f32 %v1235, %v1247
    %v1249 = vpop.f32.mrf.mxu0
    %1250 = vdwg.mxu0
    %1251 = vmatpush.bf16.msra.mxu0 %v971
    %1252 = vmatpush.bf16.msra.mxu0 %v967
    %1253 = vmatpush.bf16.msra.mxu0 %v963
    %1254 = vmatpush.bf16.msra.mxu0 %v959
    %1255 = vmatpush.bf16.msra.mxu0 %v955
    %1256 = vmatpush.bf16.msra.mxu0 %v951
    %1257 = vmatpush.bf16.msra.mxu0 %v947
    %1258 = vmatpush.bf16.msra.mxu0 %v943
    %1259 = vmatmul.bf16.gmra.mxu0 %v328
    %v1260 = vpop.f32.mrf.mxu0
    %v1261 = vadd.f32 %v1248, %v1260
    %v1262 = vpop.f32.mrf.mxu0
    %1263 = vdwg.mxu0
    %1264 = vmatpush.bf16.msra.mxu0 %v844
    %1265 = vmatpush.bf16.msra.mxu0 %v840
    %1266 = vmatpush.bf16.msra.mxu0 %v836
    %1267 = vmatpush.bf16.msra.mxu0 %v832
    %1268 = vmatpush.bf16.msra.mxu0 %v828
    %1269 = vmatpush.bf16.msra.mxu0 %v824
    %1270 = vmatpush.bf16.msra.mxu0 %v820
    %1271 = vmatpush.bf16.msra.mxu0 %v816
    %1272 = vmatmul.bf16.gmra.mxu0 %v324
    %v1273 = vpop.f32.mrf.mxu0
    %v1274 = vadd.f32 %v310, %v1273
    %v1275 = vpop.f32.mrf.mxu0
    %1276 = vdwg.mxu0
    %1277 = vmatpush.bf16.msra.mxu0 %v876
    %1278 = vmatpush.bf16.msra.mxu0 %v872
    %1279 = vmatpush.bf16.msra.mxu0 %v868
    %1280 = vmatpush.bf16.msra.mxu0 %v864
    %1281 = vmatpush.bf16.msra.mxu0 %v860
    %1282 = vmatpush.bf16.msra.mxu0 %v856
    %1283 = vmatpush.bf16.msra.mxu0 %v852
    %1284 = vmatpush.bf16.msra.mxu0 %v848
    %1285 = vmatmul.bf16.gmra.mxu0 %v325
    %v1286 = vpop.f32.mrf.mxu0
    %v1287 = vadd.f32 %v1274, %v1286
    %v1288 = vpop.f32.mrf.mxu0
    %1289 = vdwg.mxu0
    %1290 = vmatpush.bf16.msra.mxu0 %v908
    %1291 = vmatpush.bf16.msra.mxu0 %v904
    %1292 = vmatpush.bf16.msra.mxu0 %v900
    %1293 = vmatpush.bf16.msra.mxu0 %v896
    %1294 = vmatpush.bf16.msra.mxu0 %v892
    %1295 = vmatpush.bf16.msra.mxu0 %v888
    %1296 = vmatpush.bf16.msra.mxu0 %v884
    %1297 = vmatpush.bf16.msra.mxu0 %v880
    %1298 = vmatmul.bf16.gmra.mxu0 %v326
    %v1299 = vpop.f32.mrf.mxu0
    %v1300 = vadd.f32 %v1287, %v1299
    %v1301 = vpop.f32.mrf.mxu0
    %1302 = vdwg.mxu0
    %1303 = vmatpush.bf16.msra.mxu0 %v940
    %1304 = vmatpush.bf16.msra.mxu0 %v936
    %1305 = vmatpush.bf16.msra.mxu0 %v932
    %1306 = vmatpush.bf16.msra.mxu0 %v928
    %1307 = vmatpush.bf16.msra.mxu0 %v924
    %1308 = vmatpush.bf16.msra.mxu0 %v920
    %1309 = vmatpush.bf16.msra.mxu0 %v916
    %1310 = vmatpush.bf16.msra.mxu0 %v912
    %1311 = vmatmul.bf16.gmra.mxu0 %v327
    %v1312 = vpop.f32.mrf.mxu0
    %v1313 = vadd.f32 %v1300, %v1312
    %v1314 = vpop.f32.mrf.mxu0
    %1315 = vdwg.mxu0
    %1316 = vmatpush.bf16.msra.mxu0 %v972
    %1317 = vmatpush.bf16.msra.mxu0 %v968
    %1318 = vmatpush.bf16.msra.mxu0 %v964
    %1319 = vmatpush.bf16.msra.mxu0 %v960
    %1320 = vmatpush.bf16.msra.mxu0 %v956
    %1321 = vmatpush.bf16.msra.mxu0 %v952
    %1322 = vmatpush.bf16.msra.mxu0 %v948
    %1323 = vmatpush.bf16.msra.mxu0 %v944
    %1324 = vmatmul.bf16.gmra.mxu0 %v328
    %v1325 = vpop.f32.mrf.mxu0
    %v1326 = vadd.f32 %v1313, %v1325
    %v1327 = vpop.f32.mrf.mxu0
    %1328 = vdwg.mxu0
    %1329 = vmatpush.bf16.msra.mxu0 %v845
    %1330 = vmatpush.bf16.msra.mxu0 %v841
    %1331 = vmatpush.bf16.msra.mxu0 %v837
    %1332 = vmatpush.bf16.msra.mxu0 %v833
    %1333 = vmatpush.bf16.msra.mxu0 %v829
    %1334 = vmatpush.bf16.msra.mxu0 %v825
    %1335 = vmatpush.bf16.msra.mxu0 %v821
    %1336 = vmatpush.bf16.msra.mxu0 %v817
    %1337 = vmatmul.bf16.gmra.mxu0 %v324
    %v1338 = vpop.f32.mrf.mxu0
    %v1339 = vadd.f32 %v311, %v1338
    %v1340 = vpop.f32.mrf.mxu0
    %1341 = vdwg.mxu0
    %1342 = vmatpush.bf16.msra.mxu0 %v877
    %1343 = vmatpush.bf16.msra.mxu0 %v873
    %1344 = vmatpush.bf16.msra.mxu0 %v869
    %1345 = vmatpush.bf16.msra.mxu0 %v865
    %1346 = vmatpush.bf16.msra.mxu0 %v861
    %1347 = vmatpush.bf16.msra.mxu0 %v857
    %1348 = vmatpush.bf16.msra.mxu0 %v853
    %1349 = vmatpush.bf16.msra.mxu0 %v849
    %1350 = vmatmul.bf16.gmra.mxu0 %v325
    %v1351 = vpop.f32.mrf.mxu0
    %v1352 = vadd.f32 %v1339, %v1351
    %v1353 = vpop.f32.mrf.mxu0
    %1354 = vdwg.mxu0
    %1355 = vmatpush.bf16.msra.mxu0 %v909
    %1356 = vmatpush.bf16.msra.mxu0 %v905
    %1357 = vmatpush.bf16.msra.mxu0 %v901
    %1358 = vmatpush.bf16.msra.mxu0 %v897
    %1359 = vmatpush.bf16.msra.mxu0 %v893
    %1360 = vmatpush.bf16.msra.mxu0 %v889
    %1361 = vmatpush.bf16.msra.mxu0 %v885
    %1362 = vmatpush.bf16.msra.mxu0 %v881
    %1363 = vmatmul.bf16.gmra.mxu0 %v326
    %v1364 = vpop.f32.mrf.mxu0
    %v1365 = vadd.f32 %v1352, %v1364
    %v1366 = vpop.f32.mrf.mxu0
    %1367 = vdwg.mxu0
    %1368 = vmatpush.bf16.msra.mxu0 %v941
    %1369 = vmatpush.bf16.msra.mxu0 %v937
    %1370 = vmatpush.bf16.msra.mxu0 %v933
    %1371 = vmatpush.bf16.msra.mxu0 %v929
    %1372 = vmatpush.bf16.msra.mxu0 %v925
    %1373 = vmatpush.bf16.msra.mxu0 %v921
    %1374 = vmatpush.bf16.msra.mxu0 %v917
    %1375 = vmatpush.bf16.msra.mxu0 %v913
    %1376 = vmatmul.bf16.gmra.mxu0 %v327
    %v1377 = vpop.f32.mrf.mxu0
    %v1378 = vadd.f32 %v1365, %v1377
    %v1379 = vpop.f32.mrf.mxu0
    %1380 = vdwg.mxu0
    %1381 = vmatpush.bf16.msra.mxu0 %v973
    %1382 = vmatpush.bf16.msra.mxu0 %v969
    %1383 = vmatpush.bf16.msra.mxu0 %v965
    %1384 = vmatpush.bf16.msra.mxu0 %v961
    %1385 = vmatpush.bf16.msra.mxu0 %v957
    %1386 = vmatpush.bf16.msra.mxu0 %v953
    %1387 = vmatpush.bf16.msra.mxu0 %v949
    %1388 = vmatpush.bf16.msra.mxu0 %v945
    %1389 = vmatmul.bf16.gmra.mxu0 %v328
    %v1390 = vpop.f32.mrf.mxu0
    %v1391 = vadd.f32 %v1378, %v1390
    %v1392 = vpop.f32.mrf.mxu0
    %1393 = vdwg.mxu0
    %v1394 = vmax.f32 %v1196, 0.0
    %v1395 = vmax.f32 %v1261, 0.0
    %v1396 = vmax.f32 %v1326, 0.0
    %v1397 = vmax.f32 %v1391, 0.0
    %v1398 = vpack.c.bf16 %v1394, %v1394
    %v1399 = vpack.c.bf16 %v1395, %v1395
    %v1400 = vpack.c.bf16 %v1396, %v1396
    %v1401 = vpack.c.bf16 %v1397, %v1397
    %v1402 = vld [vmem:[#allocation5] sm:$0xff]
    %v1403 = vld [vmem:[#allocation5 + $0x8] sm:$0xff]
    %v1404 = vld [vmem:[#allocation5 + $0x10] sm:$0xff]
    %v1405 = vld [vmem:[#allocation5 + $0x18] sm:$0xff]
    %v1406 = vld [vmem:[#allocation5 + $0x20] sm:$0xff]
    %v1407 = vld [vmem:[#allocation5 + $0x28] sm:$0xff]
    %v1408 = vld [vmem:[#allocation5 + $0x30] sm:$0xff]
    %v1409 = vld [vmem:[#allocation5 + $0x38] sm:$0xff]
    %v1410 = vld [vmem:[#allocation5 + $0x40] sm:$0xff]
    %v1411 = vld [vmem:[#allocation5 + $0x48] sm:$0xff]
    %v1412 = vld [vmem:[#allocation5 + $0x50] sm:$0xff]
    %v1413 = vld [vmem:[#allocation5 + $0x58] sm:$0xff]
    %v1414 = vld [vmem:[#allocation5 + $0x60] sm:$0xff]
    %v1415 = vld [vmem:[#allocation5 + $0x68] sm:$0xff]
    %v1416 = vld [vmem:[#allocation5 + $0x70] sm:$0xff]
    %v1417 = vld [vmem:[#allocation5 + $0x78] sm:$0xff]
    %v1418 = vld [vmem:[#allocation5 + $0x80] sm:$0xff]
    %v1419 = vld [vmem:[#allocation5 + $0x88] sm:$0xff]
    %v1420 = vld [vmem:[#allocation5 + $0x90] sm:$0xff]
    %v1421 = vld [vmem:[#allocation5 + $0x98] sm:$0xff]
    %v1422 = vld [vmem:[#allocation5 + $0xa0] sm:$0xff]
    %v1423 = vld [vmem:[#allocation5 + $0xa8] sm:$0xff]
    %v1424 = vld [vmem:[#allocation5 + $0xb0] sm:$0xff]
    %v1425 = vld [vmem:[#allocation5 + $0xb8] sm:$0xff]
    %v1426 = vld [vmem:[#allocation5 + $0xc0] sm:$0xff]
    %v1427 = vld [vmem:[#allocation5 + $0xc8] sm:$0xff]
    %v1428 = vld [vmem:[#allocation5 + $0xd0] sm:$0xff]
    %v1429 = vld [vmem:[#allocation5 + $0xd8] sm:$0xff]
    %v1430 = vld [vmem:[#allocation5 + $0xe0] sm:$0xff]
    %v1431 = vld [vmem:[#allocation5 + $0xe8] sm:$0xff]
    %v1432 = vld [vmem:[#allocation5 + $0xf0] sm:$0xff]
    %v1433 = vld [vmem:[#allocation5 + $0xf8] sm:$0xff]
    %v1434 = vld [vmem:[#allocation5 + $0x100] sm:$0xff]
    %v1435 = vld [vmem:[#allocation5 + $0x108] sm:$0xff]
    %v1436 = vld [vmem:[#allocation5 + $0x110] sm:$0xff]
    %v1437 = vld [vmem:[#allocation5 + $0x118] sm:$0xff]
    %v1438 = vld [vmem:[#allocation5 + $0x120] sm:$0xff]
    %v1439 = vld [vmem:[#allocation5 + $0x128] sm:$0xff]
    %v1440 = vld [vmem:[#allocation5 + $0x130] sm:$0xff]
    %v1441 = vld [vmem:[#allocation5 + $0x138] sm:$0xff]
    %v1442 = vld [vmem:[#allocation5 + $0x140] sm:$0xff]
    %v1443 = vld [vmem:[#allocation5 + $0x148] sm:$0xff]
    %v1444 = vld [vmem:[#allocation5 + $0x150] sm:$0xff]
    %v1445 = vld [vmem:[#allocation5 + $0x158] sm:$0xff]
    %v1446 = vld [vmem:[#allocation5 + $0x160] sm:$0xff]
    %v1447 = vld [vmem:[#allocation5 + $0x168] sm:$0xff]
    %v1448 = vld [vmem:[#allocation5 + $0x170] sm:$0xff]
    %v1449 = vld [vmem:[#allocation5 + $0x178] sm:$0xff]
    %v1450 = vld [vmem:[#allocation5 + $0x180] sm:$0xff]
    %v1451 = vld [vmem:[#allocation5 + $0x188] sm:$0xff]
    %v1452 = vld [vmem:[#allocation5 + $0x190] sm:$0xff]
    %v1453 = vld [vmem:[#allocation5 + $0x198] sm:$0xff]
    %v1454 = vld [vmem:[#allocation5 + $0x1a0] sm:$0xff]
    %v1455 = vld [vmem:[#allocation5 + $0x1a8] sm:$0xff]
    %v1456 = vld [vmem:[#allocation5 + $0x1b0] sm:$0xff]
    %v1457 = vld [vmem:[#allocation5 + $0x1b8] sm:$0xff]
    %v1458 = vld [vmem:[#allocation5 + $0x1c0] sm:$0xff]
    %v1459 = vld [vmem:[#allocation5 + $0x1c8] sm:$0xff]
    %v1460 = vld [vmem:[#allocation5 + $0x1d0] sm:$0xff]
    %v1461 = vld [vmem:[#allocation5 + $0x1d8] sm:$0xff]
    %v1462 = vld [vmem:[#allocation5 + $0x1e0] sm:$0xff]
    %v1463 = vld [vmem:[#allocation5 + $0x1e8] sm:$0xff]
    %v1464 = vld [vmem:[#allocation5 + $0x1f0] sm:$0xff]
    %v1465 = vld [vmem:[#allocation5 + $0x1f8] sm:$0xff]
    %v1466 = vld [vmem:[#allocation5 + $0x200] sm:$0xff]
    %v1467 = vld [vmem:[#allocation5 + $0x208] sm:$0xff]
    %v1468 = vld [vmem:[#allocation5 + $0x210] sm:$0xff]
    %v1469 = vld [vmem:[#allocation5 + $0x218] sm:$0xff]
    %v1470 = vld [vmem:[#allocation5 + $0x220] sm:$0xff]
    %v1471 = vld [vmem:[#allocation5 + $0x228] sm:$0xff]
    %v1472 = vld [vmem:[#allocation5 + $0x230] sm:$0xff]
    %v1473 = vld [vmem:[#allocation5 + $0x238] sm:$0xff]
    %v1474 = vld [vmem:[#allocation5 + $0x240] sm:$0xff]
    %v1475 = vld [vmem:[#allocation5 + $0x248] sm:$0xff]
    %v1476 = vld [vmem:[#allocation5 + $0x250] sm:$0xff]
    %v1477 = vld [vmem:[#allocation5 + $0x258] sm:$0xff]
    %v1478 = vld [vmem:[#allocation5 + $0x260] sm:$0xff]
    %v1479 = vld [vmem:[#allocation5 + $0x268] sm:$0xff]
    %v1480 = vld [vmem:[#allocation5 + $0x270] sm:$0xff]
    %v1481 = vld [vmem:[#allocation5 + $0x278] sm:$0xff]
    %v1482 = vld [vmem:[#allocation5 + $0x280] sm:$0xff]
    %v1483 = vld [vmem:[#allocation5 + $0x288] sm:$0xff]
    %v1484 = vld [vmem:[#allocation5 + $0x290] sm:$0xff]
    %v1485 = vld [vmem:[#allocation5 + $0x298] sm:$0xff]
    %v1486 = vld [vmem:[#allocation5 + $0x2a0] sm:$0xff]
    %v1487 = vld [vmem:[#allocation5 + $0x2a8] sm:$0xff]
    %v1488 = vld [vmem:[#allocation5 + $0x2b0] sm:$0xff]
    %v1489 = vld [vmem:[#allocation5 + $0x2b8] sm:$0xff]
    %v1490 = vld [vmem:[#allocation5 + $0x2c0] sm:$0xff]
    %v1491 = vld [vmem:[#allocation5 + $0x2c8] sm:$0xff]
    %v1492 = vld [vmem:[#allocation5 + $0x2d0] sm:$0xff]
    %v1493 = vld [vmem:[#allocation5 + $0x2d8] sm:$0xff]
    %v1494 = vld [vmem:[#allocation5 + $0x2e0] sm:$0xff]
    %v1495 = vld [vmem:[#allocation5 + $0x2e8] sm:$0xff]
    %v1496 = vld [vmem:[#allocation5 + $0x2f0] sm:$0xff]
    %v1497 = vld [vmem:[#allocation5 + $0x2f8] sm:$0xff]
    %v1498 = vld [vmem:[#allocation5 + $0x300] sm:$0xff]
    %v1499 = vld [vmem:[#allocation5 + $0x308] sm:$0xff]
    %v1500 = vld [vmem:[#allocation5 + $0x310] sm:$0xff]
    %v1501 = vld [vmem:[#allocation5 + $0x318] sm:$0xff]
    %v1502 = vld [vmem:[#allocation5 + $0x320] sm:$0xff]
    %v1503 = vld [vmem:[#allocation5 + $0x328] sm:$0xff]
    %v1504 = vld [vmem:[#allocation5 + $0x330] sm:$0xff]
    %v1505 = vld [vmem:[#allocation5 + $0x338] sm:$0xff]
    %v1506 = vld [vmem:[#allocation5 + $0x340] sm:$0xff]
    %v1507 = vld [vmem:[#allocation5 + $0x348] sm:$0xff]
    %v1508 = vld [vmem:[#allocation5 + $0x350] sm:$0xff]
    %v1509 = vld [vmem:[#allocation5 + $0x358] sm:$0xff]
    %v1510 = vld [vmem:[#allocation5 + $0x360] sm:$0xff]
    %v1511 = vld [vmem:[#allocation5 + $0x368] sm:$0xff]
    %v1512 = vld [vmem:[#allocation5 + $0x370] sm:$0xff]
    %v1513 = vld [vmem:[#allocation5 + $0x378] sm:$0xff]
    %v1514 = vld [vmem:[#allocation5 + $0x380] sm:$0xff]
    %v1515 = vld [vmem:[#allocation5 + $0x388] sm:$0xff]
    %v1516 = vld [vmem:[#allocation5 + $0x390] sm:$0xff]
    %v1517 = vld [vmem:[#allocation5 + $0x398] sm:$0xff]
    %v1518 = vld [vmem:[#allocation5 + $0x3a0] sm:$0xff]
    %v1519 = vld [vmem:[#allocation5 + $0x3a8] sm:$0xff]
    %v1520 = vld [vmem:[#allocation5 + $0x3b0] sm:$0xff]
    %v1521 = vld [vmem:[#allocation5 + $0x3b8] sm:$0xff]
    %v1522 = vld [vmem:[#allocation5 + $0x3c0] sm:$0xff]
    %v1523 = vld [vmem:[#allocation5 + $0x3c8] sm:$0xff]
    %v1524 = vld [vmem:[#allocation5 + $0x3d0] sm:$0xff]
    %v1525 = vld [vmem:[#allocation5 + $0x3d8] sm:$0xff]
    %v1526 = vld [vmem:[#allocation5 + $0x3e0] sm:$0xff]
    %v1527 = vld [vmem:[#allocation5 + $0x3e8] sm:$0xff]
    %v1528 = vld [vmem:[#allocation5 + $0x3f0] sm:$0xff]
    %v1529 = vld [vmem:[#allocation5 + $0x3f8] sm:$0xff]
    %v1530 = vld [vmem:[%s5] sm:$0xf]
    %v1532 = vperm.slane %v1530, 0
    %v1533 = vperm.slane %v1530, 1
    %v1534 = vperm.slane %v1530, 2
    %v1535 = vperm.slane %v1530, 3
    %v1668 = vunpack.c.l.b16 %v1402
    %v1669 = vunpack.c.h.b16 %v1402
    %v1670 = vunpack.c.l.b16 %v1403
    %v1671 = vunpack.c.h.b16 %v1403
    %v1672 = vunpack.c.l.b16 %v1404
    %v1673 = vunpack.c.h.b16 %v1404
    %v1674 = vunpack.c.l.b16 %v1405
    %v1675 = vunpack.c.h.b16 %v1405
    %v1676 = vunpack.c.l.b16 %v1406
    %v1677 = vunpack.c.h.b16 %v1406
    %v1678 = vunpack.c.l.b16 %v1407
    %v1679 = vunpack.c.h.b16 %v1407
    %v1680 = vunpack.c.l.b16 %v1408
    %v1681 = vunpack.c.h.b16 %v1408
    %v1682 = vunpack.c.l.b16 %v1409
    %v1683 = vunpack.c.h.b16 %v1409
    %v1684 = vunpack.c.l.b16 %v1410
    %v1685 = vunpack.c.h.b16 %v1410
    %v1686 = vunpack.c.l.b16 %v1411
    %v1687 = vunpack.c.h.b16 %v1411
    %v1688 = vunpack.c.l.b16 %v1412
    %v1689 = vunpack.c.h.b16 %v1412
    %v1690 = vunpack.c.l.b16 %v1413
    %v1691 = vunpack.c.h.b16 %v1413
    %v1692 = vunpack.c.l.b16 %v1414
    %v1693 = vunpack.c.h.b16 %v1414
    %v1694 = vunpack.c.l.b16 %v1415
    %v1695 = vunpack.c.h.b16 %v1415
    %v1696 = vunpack.c.l.b16 %v1416
    %v1697 = vunpack.c.h.b16 %v1416
    %v1698 = vunpack.c.l.b16 %v1417
    %v1699 = vunpack.c.h.b16 %v1417
    %v1700 = vunpack.c.l.b16 %v1418
    %v1701 = vunpack.c.h.b16 %v1418
    %v1702 = vunpack.c.l.b16 %v1419
    %v1703 = vunpack.c.h.b16 %v1419
    %v1704 = vunpack.c.l.b16 %v1420
    %v1705 = vunpack.c.h.b16 %v1420
    %v1706 = vunpack.c.l.b16 %v1421
    %v1707 = vunpack.c.h.b16 %v1421
    %v1708 = vunpack.c.l.b16 %v1422
    %v1709 = vunpack.c.h.b16 %v1422
    %v1710 = vunpack.c.l.b16 %v1423
    %v1711 = vunpack.c.h.b16 %v1423
    %v1712 = vunpack.c.l.b16 %v1424
    %v1713 = vunpack.c.h.b16 %v1424
    %v1714 = vunpack.c.l.b16 %v1425
    %v1715 = vunpack.c.h.b16 %v1425
    %v1716 = vunpack.c.l.b16 %v1426
    %v1717 = vunpack.c.h.b16 %v1426
    %v1718 = vunpack.c.l.b16 %v1427
    %v1719 = vunpack.c.h.b16 %v1427
    %v1720 = vunpack.c.l.b16 %v1428
    %v1721 = vunpack.c.h.b16 %v1428
    %v1722 = vunpack.c.l.b16 %v1429
    %v1723 = vunpack.c.h.b16 %v1429
    %v1724 = vunpack.c.l.b16 %v1430
    %v1725 = vunpack.c.h.b16 %v1430
    %v1726 = vunpack.c.l.b16 %v1431
    %v1727 = vunpack.c.h.b16 %v1431
    %v1728 = vunpack.c.l.b16 %v1432
    %v1729 = vunpack.c.h.b16 %v1432
    %v1730 = vunpack.c.l.b16 %v1433
    %v1731 = vunpack.c.h.b16 %v1433
    %v1732 = vunpack.c.l.b16 %v1434
    %v1733 = vunpack.c.h.b16 %v1434
    %v1734 = vunpack.c.l.b16 %v1435
    %v1735 = vunpack.c.h.b16 %v1435
    %v1736 = vunpack.c.l.b16 %v1436
    %v1737 = vunpack.c.h.b16 %v1436
    %v1738 = vunpack.c.l.b16 %v1437
    %v1739 = vunpack.c.h.b16 %v1437
    %v1740 = vunpack.c.l.b16 %v1438
    %v1741 = vunpack.c.h.b16 %v1438
    %v1742 = vunpack.c.l.b16 %v1439
    %v1743 = vunpack.c.h.b16 %v1439
    %v1744 = vunpack.c.l.b16 %v1440
    %v1745 = vunpack.c.h.b16 %v1440
    %v1746 = vunpack.c.l.b16 %v1441
    %v1747 = vunpack.c.h.b16 %v1441
    %v1748 = vunpack.c.l.b16 %v1442
    %v1749 = vunpack.c.h.b16 %v1442
    %v1750 = vunpack.c.l.b16 %v1443
    %v1751 = vunpack.c.h.b16 %v1443
    %v1752 = vunpack.c.l.b16 %v1444
    %v1753 = vunpack.c.h.b16 %v1444
    %v1754 = vunpack.c.l.b16 %v1445
    %v1755 = vunpack.c.h.b16 %v1445
    %v1756 = vunpack.c.l.b16 %v1446
    %v1757 = vunpack.c.h.b16 %v1446
    %v1758 = vunpack.c.l.b16 %v1447
    %v1759 = vunpack.c.h.b16 %v1447
    %v1760 = vunpack.c.l.b16 %v1448
    %v1761 = vunpack.c.h.b16 %v1448
    %v1762 = vunpack.c.l.b16 %v1449
    %v1763 = vunpack.c.h.b16 %v1449
    %v1764 = vunpack.c.l.b16 %v1450
    %v1765 = vunpack.c.h.b16 %v1450
    %v1766 = vunpack.c.l.b16 %v1451
    %v1767 = vunpack.c.h.b16 %v1451
    %v1768 = vunpack.c.l.b16 %v1452
    %v1769 = vunpack.c.h.b16 %v1452
    %v1770 = vunpack.c.l.b16 %v1453
    %v1771 = vunpack.c.h.b16 %v1453
    %v1772 = vunpack.c.l.b16 %v1454
    %v1773 = vunpack.c.h.b16 %v1454
    %v1774 = vunpack.c.l.b16 %v1455
    %v1775 = vunpack.c.h.b16 %v1455
    %v1776 = vunpack.c.l.b16 %v1456
    %v1777 = vunpack.c.h.b16 %v1456
    %v1778 = vunpack.c.l.b16 %v1457
    %v1779 = vunpack.c.h.b16 %v1457
    %v1780 = vunpack.c.l.b16 %v1458
    %v1781 = vunpack.c.h.b16 %v1458
    %v1782 = vunpack.c.l.b16 %v1459
    %v1783 = vunpack.c.h.b16 %v1459
    %v1784 = vunpack.c.l.b16 %v1460
    %v1785 = vunpack.c.h.b16 %v1460
    %v1786 = vunpack.c.l.b16 %v1461
    %v1787 = vunpack.c.h.b16 %v1461
    %v1788 = vunpack.c.l.b16 %v1462
    %v1789 = vunpack.c.h.b16 %v1462
    %v1790 = vunpack.c.l.b16 %v1463
    %v1791 = vunpack.c.h.b16 %v1463
    %v1792 = vunpack.c.l.b16 %v1464
    %v1793 = vunpack.c.h.b16 %v1464
    %v1794 = vunpack.c.l.b16 %v1465
    %v1795 = vunpack.c.h.b16 %v1465
    %v1796 = vunpack.c.l.b16 %v1466
    %v1797 = vunpack.c.h.b16 %v1466
    %v1798 = vunpack.c.l.b16 %v1467
    %v1799 = vunpack.c.h.b16 %v1467
    %v1800 = vunpack.c.l.b16 %v1468
    %v1801 = vunpack.c.h.b16 %v1468
    %v1802 = vunpack.c.l.b16 %v1469
    %v1803 = vunpack.c.h.b16 %v1469
    %v1804 = vunpack.c.l.b16 %v1470
    %v1805 = vunpack.c.h.b16 %v1470
    %v1806 = vunpack.c.l.b16 %v1471
    %v1807 = vunpack.c.h.b16 %v1471
    %v1808 = vunpack.c.l.b16 %v1472
    %v1809 = vunpack.c.h.b16 %v1472
    %v1810 = vunpack.c.l.b16 %v1473
    %v1811 = vunpack.c.h.b16 %v1473
    %v1812 = vunpack.c.l.b16 %v1474
    %v1813 = vunpack.c.h.b16 %v1474
    %v1814 = vunpack.c.l.b16 %v1475
    %v1815 = vunpack.c.h.b16 %v1475
    %v1816 = vunpack.c.l.b16 %v1476
    %v1817 = vunpack.c.h.b16 %v1476
    %v1818 = vunpack.c.l.b16 %v1477
    %v1819 = vunpack.c.h.b16 %v1477
    %v1820 = vunpack.c.l.b16 %v1478
    %v1821 = vunpack.c.h.b16 %v1478
    %v1822 = vunpack.c.l.b16 %v1479
    %v1823 = vunpack.c.h.b16 %v1479
    %v1824 = vunpack.c.l.b16 %v1480
    %v1825 = vunpack.c.h.b16 %v1480
    %v1826 = vunpack.c.l.b16 %v1481
    %v1827 = vunpack.c.h.b16 %v1481
    %v1828 = vunpack.c.l.b16 %v1482
    %v1829 = vunpack.c.h.b16 %v1482
    %v1830 = vunpack.c.l.b16 %v1483
    %v1831 = vunpack.c.h.b16 %v1483
    %v1832 = vunpack.c.l.b16 %v1484
    %v1833 = vunpack.c.h.b16 %v1484
    %v1834 = vunpack.c.l.b16 %v1485
    %v1835 = vunpack.c.h.b16 %v1485
    %v1836 = vunpack.c.l.b16 %v1486
    %v1837 = vunpack.c.h.b16 %v1486
    %v1838 = vunpack.c.l.b16 %v1487
    %v1839 = vunpack.c.h.b16 %v1487
    %v1840 = vunpack.c.l.b16 %v1488
    %v1841 = vunpack.c.h.b16 %v1488
    %v1842 = vunpack.c.l.b16 %v1489
    %v1843 = vunpack.c.h.b16 %v1489
    %v1844 = vunpack.c.l.b16 %v1490
    %v1845 = vunpack.c.h.b16 %v1490
    %v1846 = vunpack.c.l.b16 %v1491
    %v1847 = vunpack.c.h.b16 %v1491
    %v1848 = vunpack.c.l.b16 %v1492
    %v1849 = vunpack.c.h.b16 %v1492
    %v1850 = vunpack.c.l.b16 %v1493
    %v1851 = vunpack.c.h.b16 %v1493
    %v1852 = vunpack.c.l.b16 %v1494
    %v1853 = vunpack.c.h.b16 %v1494
    %v1854 = vunpack.c.l.b16 %v1495
    %v1855 = vunpack.c.h.b16 %v1495
    %v1856 = vunpack.c.l.b16 %v1496
    %v1857 = vunpack.c.h.b16 %v1496
    %v1858 = vunpack.c.l.b16 %v1497
    %v1859 = vunpack.c.h.b16 %v1497
    %v1860 = vunpack.c.l.b16 %v1498
    %v1861 = vunpack.c.h.b16 %v1498
    %v1862 = vunpack.c.l.b16 %v1499
    %v1863 = vunpack.c.h.b16 %v1499
    %v1864 = vunpack.c.l.b16 %v1500
    %v1865 = vunpack.c.h.b16 %v1500
    %v1866 = vunpack.c.l.b16 %v1501
    %v1867 = vunpack.c.h.b16 %v1501
    %v1868 = vunpack.c.l.b16 %v1502
    %v1869 = vunpack.c.h.b16 %v1502
    %v1870 = vunpack.c.l.b16 %v1503
    %v1871 = vunpack.c.h.b16 %v1503
    %v1872 = vunpack.c.l.b16 %v1504
    %v1873 = vunpack.c.h.b16 %v1504
    %v1874 = vunpack.c.l.b16 %v1505
    %v1875 = vunpack.c.h.b16 %v1505
    %v1876 = vunpack.c.l.b16 %v1506
    %v1877 = vunpack.c.h.b16 %v1506
    %v1878 = vunpack.c.l.b16 %v1507
    %v1879 = vunpack.c.h.b16 %v1507
    %v1880 = vunpack.c.l.b16 %v1508
    %v1881 = vunpack.c.h.b16 %v1508
    %v1882 = vunpack.c.l.b16 %v1509
    %v1883 = vunpack.c.h.b16 %v1509
    %v1884 = vunpack.c.l.b16 %v1510
    %v1885 = vunpack.c.h.b16 %v1510
    %v1886 = vunpack.c.l.b16 %v1511
    %v1887 = vunpack.c.h.b16 %v1511
    %v1888 = vunpack.c.l.b16 %v1512
    %v1889 = vunpack.c.h.b16 %v1512
    %v1890 = vunpack.c.l.b16 %v1513
    %v1891 = vunpack.c.h.b16 %v1513
    %v1892 = vunpack.c.l.b16 %v1514
    %v1893 = vunpack.c.h.b16 %v1514
    %v1894 = vunpack.c.l.b16 %v1515
    %v1895 = vunpack.c.h.b16 %v1515
    %v1896 = vunpack.c.l.b16 %v1516
    %v1897 = vunpack.c.h.b16 %v1516
    %v1898 = vunpack.c.l.b16 %v1517
    %v1899 = vunpack.c.h.b16 %v1517
    %v1900 = vunpack.c.l.b16 %v1518
    %v1901 = vunpack.c.h.b16 %v1518
    %v1902 = vunpack.c.l.b16 %v1519
    %v1903 = vunpack.c.h.b16 %v1519
    %v1904 = vunpack.c.l.b16 %v1520
    %v1905 = vunpack.c.h.b16 %v1520
    %v1906 = vunpack.c.l.b16 %v1521
    %v1907 = vunpack.c.h.b16 %v1521
    %v1908 = vunpack.c.l.b16 %v1522
    %v1909 = vunpack.c.h.b16 %v1522
    %v1910 = vunpack.c.l.b16 %v1523
    %v1911 = vunpack.c.h.b16 %v1523
    %v1912 = vunpack.c.l.b16 %v1524
    %v1913 = vunpack.c.h.b16 %v1524
    %v1914 = vunpack.c.l.b16 %v1525
    %v1915 = vunpack.c.h.b16 %v1525
    %v1916 = vunpack.c.l.b16 %v1526
    %v1917 = vunpack.c.h.b16 %v1526
    %v1918 = vunpack.c.l.b16 %v1527
    %v1919 = vunpack.c.h.b16 %v1527
    %v1920 = vunpack.c.l.b16 %v1528
    %v1921 = vunpack.c.h.b16 %v1528
    %v1922 = vunpack.c.l.b16 %v1529
    %v1923 = vunpack.c.h.b16 %v1529
    %v1924 = vpack.c.b16 %v1672, %v1668
    %v1925 = vpack.c.b16 %v1673, %v1669
    %v1926 = vpack.c.b16 %v1674, %v1670
    %v1927 = vpack.c.b16 %v1675, %v1671
    %v1928 = vpack.c.b16 %v1680, %v1676
    %v1929 = vpack.c.b16 %v1681, %v1677
    %v1930 = vpack.c.b16 %v1682, %v1678
    %v1931 = vpack.c.b16 %v1683, %v1679
    %v1932 = vpack.c.b16 %v1688, %v1684
    %v1933 = vpack.c.b16 %v1689, %v1685
    %v1934 = vpack.c.b16 %v1690, %v1686
    %v1935 = vpack.c.b16 %v1691, %v1687
    %v1936 = vpack.c.b16 %v1696, %v1692
    %v1937 = vpack.c.b16 %v1697, %v1693
    %v1938 = vpack.c.b16 %v1698, %v1694
    %v1939 = vpack.c.b16 %v1699, %v1695
    %v1940 = vpack.c.b16 %v1704, %v1700
    %v1941 = vpack.c.b16 %v1705, %v1701
    %v1942 = vpack.c.b16 %v1706, %v1702
    %v1943 = vpack.c.b16 %v1707, %v1703
    %v1944 = vpack.c.b16 %v1712, %v1708
    %v1945 = vpack.c.b16 %v1713, %v1709
    %v1946 = vpack.c.b16 %v1714, %v1710
    %v1947 = vpack.c.b16 %v1715, %v1711
    %v1948 = vpack.c.b16 %v1720, %v1716
    %v1949 = vpack.c.b16 %v1721, %v1717
    %v1950 = vpack.c.b16 %v1722, %v1718
    %v1951 = vpack.c.b16 %v1723, %v1719
    %v1952 = vpack.c.b16 %v1728, %v1724
    %v1953 = vpack.c.b16 %v1729, %v1725
    %v1954 = vpack.c.b16 %v1730, %v1726
    %v1955 = vpack.c.b16 %v1731, %v1727
    %v1956 = vpack.c.b16 %v1736, %v1732
    %v1957 = vpack.c.b16 %v1737, %v1733
    %v1958 = vpack.c.b16 %v1738, %v1734
    %v1959 = vpack.c.b16 %v1739, %v1735
    %v1960 = vpack.c.b16 %v1744, %v1740
    %v1961 = vpack.c.b16 %v1745, %v1741
    %v1962 = vpack.c.b16 %v1746, %v1742
    %v1963 = vpack.c.b16 %v1747, %v1743
    %v1964 = vpack.c.b16 %v1752, %v1748
    %v1965 = vpack.c.b16 %v1753, %v1749
    %v1966 = vpack.c.b16 %v1754, %v1750
    %v1967 = vpack.c.b16 %v1755, %v1751
    %v1968 = vpack.c.b16 %v1760, %v1756
    %v1969 = vpack.c.b16 %v1761, %v1757
    %v1970 = vpack.c.b16 %v1762, %v1758
    %v1971 = vpack.c.b16 %v1763, %v1759
    %v1972 = vpack.c.b16 %v1768, %v1764
    %v1973 = vpack.c.b16 %v1769, %v1765
    %v1974 = vpack.c.b16 %v1770, %v1766
    %v1975 = vpack.c.b16 %v1771, %v1767
    %v1976 = vpack.c.b16 %v1776, %v1772
    %v1977 = vpack.c.b16 %v1777, %v1773
    %v1978 = vpack.c.b16 %v1778, %v1774
    %v1979 = vpack.c.b16 %v1779, %v1775
    %v1980 = vpack.c.b16 %v1784, %v1780
    %v1981 = vpack.c.b16 %v1785, %v1781
    %v1982 = vpack.c.b16 %v1786, %v1782
    %v1983 = vpack.c.b16 %v1787, %v1783
    %v1984 = vpack.c.b16 %v1792, %v1788
    %v1985 = vpack.c.b16 %v1793, %v1789
    %v1986 = vpack.c.b16 %v1794, %v1790
    %v1987 = vpack.c.b16 %v1795, %v1791
    %v1988 = vpack.c.b16 %v1800, %v1796
    %v1989 = vpack.c.b16 %v1801, %v1797
    %v1990 = vpack.c.b16 %v1802, %v1798
    %v1991 = vpack.c.b16 %v1803, %v1799
    %v1992 = vpack.c.b16 %v1808, %v1804
    %v1993 = vpack.c.b16 %v1809, %v1805
    %v1994 = vpack.c.b16 %v1810, %v1806
    %v1995 = vpack.c.b16 %v1811, %v1807
    %v1996 = vpack.c.b16 %v1816, %v1812
    %v1997 = vpack.c.b16 %v1817, %v1813
    %v1998 = vpack.c.b16 %v1818, %v1814
    %v1999 = vpack.c.b16 %v1819, %v1815
    %v2000 = vpack.c.b16 %v1824, %v1820
    %v2001 = vpack.c.b16 %v1825, %v1821
    %v2002 = vpack.c.b16 %v1826, %v1822
    %v2003 = vpack.c.b16 %v1827, %v1823
    %v2004 = vpack.c.b16 %v1832, %v1828
    %v2005 = vpack.c.b16 %v1833, %v1829
    %v2006 = vpack.c.b16 %v1834, %v1830
    %v2007 = vpack.c.b16 %v1835, %v1831
    %v2008 = vpack.c.b16 %v1840, %v1836
    %v2009 = vpack.c.b16 %v1841, %v1837
    %v2010 = vpack.c.b16 %v1842, %v1838
    %v2011 = vpack.c.b16 %v1843, %v1839
    %v2012 = vpack.c.b16 %v1848, %v1844
    %v2013 = vpack.c.b16 %v1849, %v1845
    %v2014 = vpack.c.b16 %v1850, %v1846
    %v2015 = vpack.c.b16 %v1851, %v1847
    %v2016 = vpack.c.b16 %v1856, %v1852
    %v2017 = vpack.c.b16 %v1857, %v1853
    %v2018 = vpack.c.b16 %v1858, %v1854
    %v2019 = vpack.c.b16 %v1859, %v1855
    %v2020 = vpack.c.b16 %v1864, %v1860
    %v2021 = vpack.c.b16 %v1865, %v1861
    %v2022 = vpack.c.b16 %v1866, %v1862
    %v2023 = vpack.c.b16 %v1867, %v1863
    %v2024 = vpack.c.b16 %v1872, %v1868
    %v2025 = vpack.c.b16 %v1873, %v1869
    %v2026 = vpack.c.b16 %v1874, %v1870
    %v2027 = vpack.c.b16 %v1875, %v1871
    %v2028 = vpack.c.b16 %v1880, %v1876
    %v2029 = vpack.c.b16 %v1881, %v1877
    %v2030 = vpack.c.b16 %v1882, %v1878
    %v2031 = vpack.c.b16 %v1883, %v1879
    %v2032 = vpack.c.b16 %v1888, %v1884
    %v2033 = vpack.c.b16 %v1889, %v1885
    %v2034 = vpack.c.b16 %v1890, %v1886
    %v2035 = vpack.c.b16 %v1891, %v1887
    %v2036 = vpack.c.b16 %v1896, %v1892
    %v2037 = vpack.c.b16 %v1897, %v1893
    %v2038 = vpack.c.b16 %v1898, %v1894
    %v2039 = vpack.c.b16 %v1899, %v1895
    %v2040 = vpack.c.b16 %v1904, %v1900
    %v2041 = vpack.c.b16 %v1905, %v1901
    %v2042 = vpack.c.b16 %v1906, %v1902
    %v2043 = vpack.c.b16 %v1907, %v1903
    %v2044 = vpack.c.b16 %v1912, %v1908
    %v2045 = vpack.c.b16 %v1913, %v1909
    %v2046 = vpack.c.b16 %v1914, %v1910
    %v2047 = vpack.c.b16 %v1915, %v1911
    %v2048 = vpack.c.b16 %v1920, %v1916
    %v2049 = vpack.c.b16 %v1921, %v1917
    %v2050 = vpack.c.b16 %v1922, %v1918
    %v2051 = vpack.c.b16 %v1923, %v1919
    %2180 = vmatpush.bf16.msra.mxu0 %v1952
    %2181 = vmatpush.bf16.msra.mxu0 %v1948
    %2182 = vmatpush.bf16.msra.mxu0 %v1944
    %2183 = vmatpush.bf16.msra.mxu0 %v1940
    %2184 = vmatpush.bf16.msra.mxu0 %v1936
    %2185 = vmatpush.bf16.msra.mxu0 %v1932
    %2186 = vmatpush.bf16.msra.mxu0 %v1928
    %2187 = vmatpush.bf16.msra.mxu0 %v1924
    %2188 = vmatmul.bf16.gmra.mxu0 %v1398
    %v2189 = vpop.f32.mrf.mxu0
    %v2190 = vadd.f32 %v1532, %v2189
    %v2191 = vpop.f32.mrf.mxu0
    %2192 = vdwg.mxu0
    %2193 = vmatpush.bf16.msra.mxu0 %v1984
    %2194 = vmatpush.bf16.msra.mxu0 %v1980
    %2195 = vmatpush.bf16.msra.mxu0 %v1976
    %2196 = vmatpush.bf16.msra.mxu0 %v1972
    %2197 = vmatpush.bf16.msra.mxu0 %v1968
    %2198 = vmatpush.bf16.msra.mxu0 %v1964
    %2199 = vmatpush.bf16.msra.mxu0 %v1960
    %2200 = vmatpush.bf16.msra.mxu0 %v1956
    %2201 = vmatmul.bf16.gmra.mxu0 %v1399
    %v2202 = vpop.f32.mrf.mxu0
    %v2203 = vadd.f32 %v2190, %v2202
    %v2204 = vpop.f32.mrf.mxu0
    %2205 = vdwg.mxu0
    %2206 = vmatpush.bf16.msra.mxu0 %v2016
    %2207 = vmatpush.bf16.msra.mxu0 %v2012
    %2208 = vmatpush.bf16.msra.mxu0 %v2008
    %2209 = vmatpush.bf16.msra.mxu0 %v2004
    %2210 = vmatpush.bf16.msra.mxu0 %v2000
    %2211 = vmatpush.bf16.msra.mxu0 %v1996
    %2212 = vmatpush.bf16.msra.mxu0 %v1992
    %2213 = vmatpush.bf16.msra.mxu0 %v1988
    %2214 = vmatmul.bf16.gmra.mxu0 %v1400
    %v2215 = vpop.f32.mrf.mxu0
    %v2216 = vadd.f32 %v2203, %v2215
    %v2217 = vpop.f32.mrf.mxu0
    %2218 = vdwg.mxu0
    %2219 = vmatpush.bf16.msra.mxu0 %v2048
    %2220 = vmatpush.bf16.msra.mxu0 %v2044
    %2221 = vmatpush.bf16.msra.mxu0 %v2040
    %2222 = vmatpush.bf16.msra.mxu0 %v2036
    %2223 = vmatpush.bf16.msra.mxu0 %v2032
    %2224 = vmatpush.bf16.msra.mxu0 %v2028
    %2225 = vmatpush.bf16.msra.mxu0 %v2024
    %2226 = vmatpush.bf16.msra.mxu0 %v2020
    %2227 = vmatmul.bf16.gmra.mxu0 %v1401
    %v2228 = vpop.f32.mrf.mxu0
    %v2229 = vadd.f32 %v2216, %v2228
    %v2230 = vpop.f32.mrf.mxu0
    %2231 = vdwg.mxu0
    %2232 = vmatpush.bf16.msra.mxu0 %v1953
    %2233 = vmatpush.bf16.msra.mxu0 %v1949
    %2234 = vmatpush.bf16.msra.mxu0 %v1945
    %2235 = vmatpush.bf16.msra.mxu0 %v1941
    %2236 = vmatpush.bf16.msra.mxu0 %v1937
    %2237 = vmatpush.bf16.msra.mxu0 %v1933
    %2238 = vmatpush.bf16.msra.mxu0 %v1929
    %2239 = vmatpush.bf16.msra.mxu0 %v1925
    %2240 = vmatmul.bf16.gmra.mxu0 %v1398
    %v2241 = vpop.f32.mrf.mxu0
    %v2242 = vadd.f32 %v1533, %v2241
    %v2243 = vpop.f32.mrf.mxu0
    %2244 = vdwg.mxu0
    %2245 = vmatpush.bf16.msra.mxu0 %v1985
    %2246 = vmatpush.bf16.msra.mxu0 %v1981
    %2247 = vmatpush.bf16.msra.mxu0 %v1977
    %2248 = vmatpush.bf16.msra.mxu0 %v1973
    %2249 = vmatpush.bf16.msra.mxu0 %v1969
    %2250 = vmatpush.bf16.msra.mxu0 %v1965
    %2251 = vmatpush.bf16.msra.mxu0 %v1961
    %2252 = vmatpush.bf16.msra.mxu0 %v1957
    %2253 = vmatmul.bf16.gmra.mxu0 %v1399
    %v2254 = vpop.f32.mrf.mxu0
    %v2255 = vadd.f32 %v2242, %v2254
    %v2256 = vpop.f32.mrf.mxu0
    %2257 = vdwg.mxu0
    %2258 = vmatpush.bf16.msra.mxu0 %v2017
    %2259 = vmatpush.bf16.msra.mxu0 %v2013
    %2260 = vmatpush.bf16.msra.mxu0 %v2009
    %2261 = vmatpush.bf16.msra.mxu0 %v2005
    %2262 = vmatpush.bf16.msra.mxu0 %v2001
    %2263 = vmatpush.bf16.msra.mxu0 %v1997
    %2264 = vmatpush.bf16.msra.mxu0 %v1993
    %2265 = vmatpush.bf16.msra.mxu0 %v1989
    %2266 = vmatmul.bf16.gmra.mxu0 %v1400
    %v2267 = vpop.f32.mrf.mxu0
    %v2268 = vadd.f32 %v2255, %v2267
    %v2269 = vpop.f32.mrf.mxu0
    %2270 = vdwg.mxu0
    %2271 = vmatpush.bf16.msra.mxu0 %v2049
    %2272 = vmatpush.bf16.msra.mxu0 %v2045
    %2273 = vmatpush.bf16.msra.mxu0 %v2041
    %2274 = vmatpush.bf16.msra.mxu0 %v2037
    %2275 = vmatpush.bf16.msra.mxu0 %v2033
    %2276 = vmatpush.bf16.msra.mxu0 %v2029
    %2277 = vmatpush.bf16.msra.mxu0 %v2025
    %2278 = vmatpush.bf16.msra.mxu0 %v2021
    %2279 = vmatmul.bf16.gmra.mxu0 %v1401
    %v2280 = vpop.f32.mrf.mxu0
    %v2281 = vadd.f32 %v2268, %v2280
    %v2282 = vpop.f32.mrf.mxu0
    %2283 = vdwg.mxu0
    %2284 = vmatpush.bf16.msra.mxu0 %v1954
    %2285 = vmatpush.bf16.msra.mxu0 %v1950
    %2286 = vmatpush.bf16.msra.mxu0 %v1946
    %2287 = vmatpush.bf16.msra.mxu0 %v1942
    %2288 = vmatpush.bf16.msra.mxu0 %v1938
    %2289 = vmatpush.bf16.msra.mxu0 %v1934
    %2290 = vmatpush.bf16.msra.mxu0 %v1930
    %2291 = vmatpush.bf16.msra.mxu0 %v1926
    %2292 = vmatmul.bf16.gmra.mxu0 %v1398
    %v2293 = vpop.f32.mrf.mxu0
    %v2294 = vadd.f32 %v1534, %v2293
    %v2295 = vpop.f32.mrf.mxu0
    %2296 = vdwg.mxu0
    %2297 = vmatpush.bf16.msra.mxu0 %v1986
    %2298 = vmatpush.bf16.msra.mxu0 %v1982
    %2299 = vmatpush.bf16.msra.mxu0 %v1978
    %2300 = vmatpush.bf16.msra.mxu0 %v1974
    %2301 = vmatpush.bf16.msra.mxu0 %v1970
    %2302 = vmatpush.bf16.msra.mxu0 %v1966
    %2303 = vmatpush.bf16.msra.mxu0 %v1962
    %2304 = vmatpush.bf16.msra.mxu0 %v1958
    %2305 = vmatmul.bf16.gmra.mxu0 %v1399
    %v2306 = vpop.f32.mrf.mxu0
    %v2307 = vadd.f32 %v2294, %v2306
    %v2308 = vpop.f32.mrf.mxu0
    %2309 = vdwg.mxu0
    %2310 = vmatpush.bf16.msra.mxu0 %v2018
    %2311 = vmatpush.bf16.msra.mxu0 %v2014
    %2312 = vmatpush.bf16.msra.mxu0 %v2010
    %2313 = vmatpush.bf16.msra.mxu0 %v2006
    %2314 = vmatpush.bf16.msra.mxu0 %v2002
    %2315 = vmatpush.bf16.msra.mxu0 %v1998
    %2316 = vmatpush.bf16.msra.mxu0 %v1994
    %2317 = vmatpush.bf16.msra.mxu0 %v1990
    %2318 = vmatmul.bf16.gmra.mxu0 %v1400
    %v2319 = vpop.f32.mrf.mxu0
    %v2320 = vadd.f32 %v2307, %v2319
    %v2321 = vpop.f32.mrf.mxu0
    %2322 = vdwg.mxu0
    %2323 = vmatpush.bf16.msra.mxu0 %v2050
    %2324 = vmatpush.bf16.msra.mxu0 %v2046
    %2325 = vmatpush.bf16.msra.mxu0 %v2042
    %2326 = vmatpush.bf16.msra.mxu0 %v2038
    %2327 = vmatpush.bf16.msra.mxu0 %v2034
    %2328 = vmatpush.bf16.msra.mxu0 %v2030
    %2329 = vmatpush.bf16.msra.mxu0 %v2026
    %2330 = vmatpush.bf16.msra.mxu0 %v2022
    %2331 = vmatmul.bf16.gmra.mxu0 %v1401
    %v2332 = vpop.f32.mrf.mxu0
    %v2333 = vadd.f32 %v2320, %v2332
    %v2334 = vpop.f32.mrf.mxu0
    %2335 = vdwg.mxu0
    %2336 = vmatpush.bf16.msra.mxu0 %v1955
    %2337 = vmatpush.bf16.msra.mxu0 %v1951
    %2338 = vmatpush.bf16.msra.mxu0 %v1947
    %2339 = vmatpush.bf16.msra.mxu0 %v1943
    %2340 = vmatpush.bf16.msra.mxu0 %v1939
    %2341 = vmatpush.bf16.msra.mxu0 %v1935
    %2342 = vmatpush.bf16.msra.mxu0 %v1931
    %2343 = vmatpush.bf16.msra.mxu0 %v1927
    %2344 = vmatmul.bf16.gmra.mxu0 %v1398
    %v2345 = vpop.f32.mrf.mxu0
    %v2346 = vadd.f32 %v1535, %v2345
    %v2347 = vpop.f32.mrf.mxu0
    %2348 = vdwg.mxu0
    %2349 = vmatpush.bf16.msra.mxu0 %v1987
    %2350 = vmatpush.bf16.msra.mxu0 %v1983
    %2351 = vmatpush.bf16.msra.mxu0 %v1979
    %2352 = vmatpush.bf16.msra.mxu0 %v1975
    %2353 = vmatpush.bf16.msra.mxu0 %v1971
    %2354 = vmatpush.bf16.msra.mxu0 %v1967
    %2355 = vmatpush.bf16.msra.mxu0 %v1963
    %2356 = vmatpush.bf16.msra.mxu0 %v1959
    %2357 = vmatmul.bf16.gmra.mxu0 %v1399
    %v2358 = vpop.f32.mrf.mxu0
    %v2359 = vadd.f32 %v2346, %v2358
    %v2360 = vpop.f32.mrf.mxu0
    %2361 = vdwg.mxu0
    %2362 = vmatpush.bf16.msra.mxu0 %v2019
    %2363 = vmatpush.bf16.msra.mxu0 %v2015
    %2364 = vmatpush.bf16.msra.mxu0 %v2011
    %2365 = vmatpush.bf16.msra.mxu0 %v2007
    %2366 = vmatpush.bf16.msra.mxu0 %v2003
    %2367 = vmatpush.bf16.msra.mxu0 %v1999
    %2368 = vmatpush.bf16.msra.mxu0 %v1995
    %2369 = vmatpush.bf16.msra.mxu0 %v1991
    %2370 = vmatmul.bf16.gmra.mxu0 %v1400
    %v2371 = vpop.f32.mrf.mxu0
    %v2372 = vadd.f32 %v2359, %v2371
    %v2373 = vpop.f32.mrf.mxu0
    %2374 = vdwg.mxu0
    %2375 = vmatpush.bf16.msra.mxu0 %v2051
    %2376 = vmatpush.bf16.msra.mxu0 %v2047
    %2377 = vmatpush.bf16.msra.mxu0 %v2043
    %2378 = vmatpush.bf16.msra.mxu0 %v2039
    %2379 = vmatpush.bf16.msra.mxu0 %v2035
    %2380 = vmatpush.bf16.msra.mxu0 %v2031
    %2381 = vmatpush.bf16.msra.mxu0 %v2027
    %2382 = vmatpush.bf16.msra.mxu0 %v2023
    %2383 = vmatmul.bf16.gmra.mxu0 %v1401
    %v2384 = vpop.f32.mrf.mxu0
    %v2385 = vadd.f32 %v2372, %v2384
    %v2386 = vpop.f32.mrf.mxu0
    %2387 = vdwg.mxu0
    %v2388 = vmax.f32 %v2229, 0.0
    %v2389 = vmax.f32 %v2281, 0.0
    %v2390 = vmax.f32 %v2333, 0.0
    %v2391 = vmax.f32 %v2385, 0.0
    %v2392 = vpack.c.bf16 %v2388, %v2388
    %v2393 = vpack.c.bf16 %v2389, %v2389
    %v2394 = vpack.c.bf16 %v2390, %v2390
    %v2395 = vpack.c.bf16 %v2391, %v2391
    %v2396 = vld [vmem:[#allocation7] sm:$0xff]
    %v2397 = vld [vmem:[#allocation7 + $0x8] sm:$0xff]
    %v2398 = vld [vmem:[#allocation7 + $0x10] sm:$0xff]
    %v2399 = vld [vmem:[#allocation7 + $0x18] sm:$0xff]
    %v2400 = vld [vmem:[#allocation7 + $0x20] sm:$0xff]
    %v2401 = vld [vmem:[#allocation7 + $0x28] sm:$0xff]
    %v2402 = vld [vmem:[#allocation7 + $0x30] sm:$0xff]
    %v2403 = vld [vmem:[#allocation7 + $0x38] sm:$0xff]
    %v2404 = vld [vmem:[#allocation7 + $0x40] sm:$0xff]
    %v2405 = vld [vmem:[#allocation7 + $0x48] sm:$0xff]
    %v2406 = vld [vmem:[#allocation7 + $0x50] sm:$0xff]
    %v2407 = vld [vmem:[#allocation7 + $0x58] sm:$0xff]
    %v2408 = vld [vmem:[#allocation7 + $0x60] sm:$0xff]
    %v2409 = vld [vmem:[#allocation7 + $0x68] sm:$0xff]
    %v2410 = vld [vmem:[#allocation7 + $0x70] sm:$0xff]
    %v2411 = vld [vmem:[#allocation7 + $0x78] sm:$0xff]
    %v2412 = vld [vmem:[#allocation7 + $0x80] sm:$0xff]
    %v2413 = vld [vmem:[#allocation7 + $0x88] sm:$0xff]
    %v2414 = vld [vmem:[#allocation7 + $0x90] sm:$0xff]
    %v2415 = vld [vmem:[#allocation7 + $0x98] sm:$0xff]
    %v2416 = vld [vmem:[#allocation7 + $0xa0] sm:$0xff]
    %v2417 = vld [vmem:[#allocation7 + $0xa8] sm:$0xff]
    %v2418 = vld [vmem:[#allocation7 + $0xb0] sm:$0xff]
    %v2419 = vld [vmem:[#allocation7 + $0xb8] sm:$0xff]
    %v2420 = vld [vmem:[#allocation7 + $0xc0] sm:$0xff]
    %v2421 = vld [vmem:[#allocation7 + $0xc8] sm:$0xff]
    %v2422 = vld [vmem:[#allocation7 + $0xd0] sm:$0xff]
    %v2423 = vld [vmem:[#allocation7 + $0xd8] sm:$0xff]
    %v2424 = vld [vmem:[#allocation7 + $0xe0] sm:$0xff]
    %v2425 = vld [vmem:[#allocation7 + $0xe8] sm:$0xff]
    %v2426 = vld [vmem:[#allocation7 + $0xf0] sm:$0xff]
    %v2427 = vld [vmem:[#allocation7 + $0xf8] sm:$0xff]
    %v2428 = vld [vmem:[#allocation7 + $0x100] sm:$0xff]
    %v2429 = vld [vmem:[#allocation7 + $0x108] sm:$0xff]
    %v2430 = vld [vmem:[#allocation7 + $0x110] sm:$0xff]
    %v2431 = vld [vmem:[#allocation7 + $0x118] sm:$0xff]
    %v2432 = vld [vmem:[#allocation7 + $0x120] sm:$0xff]
    %v2433 = vld [vmem:[#allocation7 + $0x128] sm:$0xff]
    %v2434 = vld [vmem:[#allocation7 + $0x130] sm:$0xff]
    %v2435 = vld [vmem:[#allocation7 + $0x138] sm:$0xff]
    %v2436 = vld [vmem:[#allocation7 + $0x140] sm:$0xff]
    %v2437 = vld [vmem:[#allocation7 + $0x148] sm:$0xff]
    %v2438 = vld [vmem:[#allocation7 + $0x150] sm:$0xff]
    %v2439 = vld [vmem:[#allocation7 + $0x158] sm:$0xff]
    %v2440 = vld [vmem:[#allocation7 + $0x160] sm:$0xff]
    %v2441 = vld [vmem:[#allocation7 + $0x168] sm:$0xff]
    %v2442 = vld [vmem:[#allocation7 + $0x170] sm:$0xff]
    %v2443 = vld [vmem:[#allocation7 + $0x178] sm:$0xff]
    %v2444 = vld [vmem:[#allocation7 + $0x180] sm:$0xff]
    %v2445 = vld [vmem:[#allocation7 + $0x188] sm:$0xff]
    %v2446 = vld [vmem:[#allocation7 + $0x190] sm:$0xff]
    %v2447 = vld [vmem:[#allocation7 + $0x198] sm:$0xff]
    %v2448 = vld [vmem:[#allocation7 + $0x1a0] sm:$0xff]
    %v2449 = vld [vmem:[#allocation7 + $0x1a8] sm:$0xff]
    %v2450 = vld [vmem:[#allocation7 + $0x1b0] sm:$0xff]
    %v2451 = vld [vmem:[#allocation7 + $0x1b8] sm:$0xff]
    %v2452 = vld [vmem:[#allocation7 + $0x1c0] sm:$0xff]
    %v2453 = vld [vmem:[#allocation7 + $0x1c8] sm:$0xff]
    %v2454 = vld [vmem:[#allocation7 + $0x1d0] sm:$0xff]
    %v2455 = vld [vmem:[#allocation7 + $0x1d8] sm:$0xff]
    %v2456 = vld [vmem:[#allocation7 + $0x1e0] sm:$0xff]
    %v2457 = vld [vmem:[#allocation7 + $0x1e8] sm:$0xff]
    %v2458 = vld [vmem:[#allocation7 + $0x1f0] sm:$0xff]
    %v2459 = vld [vmem:[#allocation7 + $0x1f8] sm:$0xff]
    %v2460 = vld [vmem:[%s7] sm:$0x3]
    %v2462 = vperm.slane %v2460, 0
    %v2463 = vperm.slane %v2460, 1
    %v2530 = vunpack.c.l.b16 %v2396
    %v2531 = vunpack.c.h.b16 %v2396
    %v2532 = vunpack.c.l.b16 %v2397
    %v2533 = vunpack.c.h.b16 %v2397
    %v2534 = vunpack.c.l.b16 %v2398
    %v2535 = vunpack.c.h.b16 %v2398
    %v2536 = vunpack.c.l.b16 %v2399
    %v2537 = vunpack.c.h.b16 %v2399
    %v2538 = vunpack.c.l.b16 %v2400
    %v2539 = vunpack.c.h.b16 %v2400
    %v2540 = vunpack.c.l.b16 %v2401
    %v2541 = vunpack.c.h.b16 %v2401
    %v2542 = vunpack.c.l.b16 %v2402
    %v2543 = vunpack.c.h.b16 %v2402
    %v2544 = vunpack.c.l.b16 %v2403
    %v2545 = vunpack.c.h.b16 %v2403
    %v2546 = vunpack.c.l.b16 %v2404
    %v2547 = vunpack.c.h.b16 %v2404
    %v2548 = vunpack.c.l.b16 %v2405
    %v2549 = vunpack.c.h.b16 %v2405
    %v2550 = vunpack.c.l.b16 %v2406
    %v2551 = vunpack.c.h.b16 %v2406
    %v2552 = vunpack.c.l.b16 %v2407
    %v2553 = vunpack.c.h.b16 %v2407
    %v2554 = vunpack.c.l.b16 %v2408
    %v2555 = vunpack.c.h.b16 %v2408
    %v2556 = vunpack.c.l.b16 %v2409
    %v2557 = vunpack.c.h.b16 %v2409
    %v2558 = vunpack.c.l.b16 %v2410
    %v2559 = vunpack.c.h.b16 %v2410
    %v2560 = vunpack.c.l.b16 %v2411
    %v2561 = vunpack.c.h.b16 %v2411
    %v2562 = vunpack.c.l.b16 %v2412
    %v2563 = vunpack.c.h.b16 %v2412
    %v2564 = vunpack.c.l.b16 %v2413
    %v2565 = vunpack.c.h.b16 %v2413
    %v2566 = vunpack.c.l.b16 %v2414
    %v2567 = vunpack.c.h.b16 %v2414
    %v2568 = vunpack.c.l.b16 %v2415
    %v2569 = vunpack.c.h.b16 %v2415
    %v2570 = vunpack.c.l.b16 %v2416
    %v2571 = vunpack.c.h.b16 %v2416
    %v2572 = vunpack.c.l.b16 %v2417
    %v2573 = vunpack.c.h.b16 %v2417
    %v2574 = vunpack.c.l.b16 %v2418
    %v2575 = vunpack.c.h.b16 %v2418
    %v2576 = vunpack.c.l.b16 %v2419
    %v2577 = vunpack.c.h.b16 %v2419
    %v2578 = vunpack.c.l.b16 %v2420
    %v2579 = vunpack.c.h.b16 %v2420
    %v2580 = vunpack.c.l.b16 %v2421
    %v2581 = vunpack.c.h.b16 %v2421
    %v2582 = vunpack.c.l.b16 %v2422
    %v2583 = vunpack.c.h.b16 %v2422
    %v2584 = vunpack.c.l.b16 %v2423
    %v2585 = vunpack.c.h.b16 %v2423
    %v2586 = vunpack.c.l.b16 %v2424
    %v2587 = vunpack.c.h.b16 %v2424
    %v2588 = vunpack.c.l.b16 %v2425
    %v2589 = vunpack.c.h.b16 %v2425
    %v2590 = vunpack.c.l.b16 %v2426
    %v2591 = vunpack.c.h.b16 %v2426
    %v2592 = vunpack.c.l.b16 %v2427
    %v2593 = vunpack.c.h.b16 %v2427
    %v2594 = vunpack.c.l.b16 %v2428
    %v2595 = vunpack.c.h.b16 %v2428
    %v2596 = vunpack.c.l.b16 %v2429
    %v2597 = vunpack.c.h.b16 %v2429
    %v2598 = vunpack.c.l.b16 %v2430
    %v2599 = vunpack.c.h.b16 %v2430
    %v2600 = vunpack.c.l.b16 %v2431
    %v2601 = vunpack.c.h.b16 %v2431
    %v2602 = vunpack.c.l.b16 %v2432
    %v2603 = vunpack.c.h.b16 %v2432
    %v2604 = vunpack.c.l.b16 %v2433
    %v2605 = vunpack.c.h.b16 %v2433
    %v2606 = vunpack.c.l.b16 %v2434
    %v2607 = vunpack.c.h.b16 %v2434
    %v2608 = vunpack.c.l.b16 %v2435
    %v2609 = vunpack.c.h.b16 %v2435
    %v2610 = vunpack.c.l.b16 %v2436
    %v2611 = vunpack.c.h.b16 %v2436
    %v2612 = vunpack.c.l.b16 %v2437
    %v2613 = vunpack.c.h.b16 %v2437
    %v2614 = vunpack.c.l.b16 %v2438
    %v2615 = vunpack.c.h.b16 %v2438
    %v2616 = vunpack.c.l.b16 %v2439
    %v2617 = vunpack.c.h.b16 %v2439
    %v2618 = vunpack.c.l.b16 %v2440
    %v2619 = vunpack.c.h.b16 %v2440
    %v2620 = vunpack.c.l.b16 %v2441
    %v2621 = vunpack.c.h.b16 %v2441
    %v2622 = vunpack.c.l.b16 %v2442
    %v2623 = vunpack.c.h.b16 %v2442
    %v2624 = vunpack.c.l.b16 %v2443
    %v2625 = vunpack.c.h.b16 %v2443
    %v2626 = vunpack.c.l.b16 %v2444
    %v2627 = vunpack.c.h.b16 %v2444
    %v2628 = vunpack.c.l.b16 %v2445
    %v2629 = vunpack.c.h.b16 %v2445
    %v2630 = vunpack.c.l.b16 %v2446
    %v2631 = vunpack.c.h.b16 %v2446
    %v2632 = vunpack.c.l.b16 %v2447
    %v2633 = vunpack.c.h.b16 %v2447
    %v2634 = vunpack.c.l.b16 %v2448
    %v2635 = vunpack.c.h.b16 %v2448
    %v2636 = vunpack.c.l.b16 %v2449
    %v2637 = vunpack.c.h.b16 %v2449
    %v2638 = vunpack.c.l.b16 %v2450
    %v2639 = vunpack.c.h.b16 %v2450
    %v2640 = vunpack.c.l.b16 %v2451
    %v2641 = vunpack.c.h.b16 %v2451
    %v2642 = vunpack.c.l.b16 %v2452
    %v2643 = vunpack.c.h.b16 %v2452
    %v2644 = vunpack.c.l.b16 %v2453
    %v2645 = vunpack.c.h.b16 %v2453
    %v2646 = vunpack.c.l.b16 %v2454
    %v2647 = vunpack.c.h.b16 %v2454
    %v2648 = vunpack.c.l.b16 %v2455
    %v2649 = vunpack.c.h.b16 %v2455
    %v2650 = vunpack.c.l.b16 %v2456
    %v2651 = vunpack.c.h.b16 %v2456
    %v2652 = vunpack.c.l.b16 %v2457
    %v2653 = vunpack.c.h.b16 %v2457
    %v2654 = vunpack.c.l.b16 %v2458
    %v2655 = vunpack.c.h.b16 %v2458
    %v2656 = vunpack.c.l.b16 %v2459
    %v2657 = vunpack.c.h.b16 %v2459
    %v2658 = vpack.c.b16 %v2532, %v2530
    %v2659 = vpack.c.b16 %v2533, %v2531
    %v2660 = vpack.c.b16 %v2536, %v2534
    %v2661 = vpack.c.b16 %v2537, %v2535
    %v2662 = vpack.c.b16 %v2540, %v2538
    %v2663 = vpack.c.b16 %v2541, %v2539
    %v2664 = vpack.c.b16 %v2544, %v2542
    %v2665 = vpack.c.b16 %v2545, %v2543
    %v2666 = vpack.c.b16 %v2548, %v2546
    %v2667 = vpack.c.b16 %v2549, %v2547
    %v2668 = vpack.c.b16 %v2552, %v2550
    %v2669 = vpack.c.b16 %v2553, %v2551
    %v2670 = vpack.c.b16 %v2556, %v2554
    %v2671 = vpack.c.b16 %v2557, %v2555
    %v2672 = vpack.c.b16 %v2560, %v2558
    %v2673 = vpack.c.b16 %v2561, %v2559
    %v2674 = vpack.c.b16 %v2564, %v2562
    %v2675 = vpack.c.b16 %v2565, %v2563
    %v2676 = vpack.c.b16 %v2568, %v2566
    %v2677 = vpack.c.b16 %v2569, %v2567
    %v2678 = vpack.c.b16 %v2572, %v2570
    %v2679 = vpack.c.b16 %v2573, %v2571
    %v2680 = vpack.c.b16 %v2576, %v2574
    %v2681 = vpack.c.b16 %v2577, %v2575
    %v2682 = vpack.c.b16 %v2580, %v2578
    %v2683 = vpack.c.b16 %v2581, %v2579
    %v2684 = vpack.c.b16 %v2584, %v2582
    %v2685 = vpack.c.b16 %v2585, %v2583
    %v2686 = vpack.c.b16 %v2588, %v2586
    %v2687 = vpack.c.b16 %v2589, %v2587
    %v2688 = vpack.c.b16 %v2592, %v2590
    %v2689 = vpack.c.b16 %v2593, %v2591
    %v2690 = vpack.c.b16 %v2596, %v2594
    %v2691 = vpack.c.b16 %v2597, %v2595
    %v2692 = vpack.c.b16 %v2600, %v2598
    %v2693 = vpack.c.b16 %v2601, %v2599
    %v2694 = vpack.c.b16 %v2604, %v2602
    %v2695 = vpack.c.b16 %v2605, %v2603
    %v2696 = vpack.c.b16 %v2608, %v2606
    %v2697 = vpack.c.b16 %v2609, %v2607
    %v2698 = vpack.c.b16 %v2612, %v2610
    %v2699 = vpack.c.b16 %v2613, %v2611
    %v2700 = vpack.c.b16 %v2616, %v2614
    %v2701 = vpack.c.b16 %v2617, %v2615
    %v2702 = vpack.c.b16 %v2620, %v2618
    %v2703 = vpack.c.b16 %v2621, %v2619
    %v2704 = vpack.c.b16 %v2624, %v2622
    %v2705 = vpack.c.b16 %v2625, %v2623
    %v2706 = vpack.c.b16 %v2628, %v2626
    %v2707 = vpack.c.b16 %v2629, %v2627
    %v2708 = vpack.c.b16 %v2632, %v2630
    %v2709 = vpack.c.b16 %v2633, %v2631
    %v2710 = vpack.c.b16 %v2636, %v2634
    %v2711 = vpack.c.b16 %v2637, %v2635
    %v2712 = vpack.c.b16 %v2640, %v2638
    %v2713 = vpack.c.b16 %v2641, %v2639
    %v2714 = vpack.c.b16 %v2644, %v2642
    %v2715 = vpack.c.b16 %v2645, %v2643
    %v2716 = vpack.c.b16 %v2648, %v2646
    %v2717 = vpack.c.b16 %v2649, %v2647
    %v2718 = vpack.c.b16 %v2652, %v2650
    %v2719 = vpack.c.b16 %v2653, %v2651
    %v2720 = vpack.c.b16 %v2656, %v2654
    %v2721 = vpack.c.b16 %v2657, %v2655
    %2786 = vmatpush.bf16.msra.mxu0 %v2672
    %2787 = vmatpush.bf16.msra.mxu0 %v2670
    %2788 = vmatpush.bf16.msra.mxu0 %v2668
    %2789 = vmatpush.bf16.msra.mxu0 %v2666
    %2790 = vmatpush.bf16.msra.mxu0 %v2664
    %2791 = vmatpush.bf16.msra.mxu0 %v2662
    %2792 = vmatpush.bf16.msra.mxu0 %v2660
    %2793 = vmatpush.bf16.msra.mxu0 %v2658
    %2794 = vmatmul.bf16.gmra.mxu0 %v2392
    %v2795 = vpop.f32.mrf.mxu0
    %v2796 = vadd.f32 %v2462, %v2795
    %v2797 = vpop.f32.mrf.mxu0
    %2798 = vdwg.mxu0
    %2799 = vmatpush.bf16.msra.mxu0 %v2688
    %2800 = vmatpush.bf16.msra.mxu0 %v2686
    %2801 = vmatpush.bf16.msra.mxu0 %v2684
    %2802 = vmatpush.bf16.msra.mxu0 %v2682
    %2803 = vmatpush.bf16.msra.mxu0 %v2680
    %2804 = vmatpush.bf16.msra.mxu0 %v2678
    %2805 = vmatpush.bf16.msra.mxu0 %v2676
    %2806 = vmatpush.bf16.msra.mxu0 %v2674
    %2807 = vmatmul.bf16.gmra.mxu0 %v2393
    %v2808 = vpop.f32.mrf.mxu0
    %v2809 = vadd.f32 %v2796, %v2808
    %v2810 = vpop.f32.mrf.mxu0
    %2811 = vdwg.mxu0
    %2812 = vmatpush.bf16.msra.mxu0 %v2704
    %2813 = vmatpush.bf16.msra.mxu0 %v2702
    %2814 = vmatpush.bf16.msra.mxu0 %v2700
    %2815 = vmatpush.bf16.msra.mxu0 %v2698
    %2816 = vmatpush.bf16.msra.mxu0 %v2696
    %2817 = vmatpush.bf16.msra.mxu0 %v2694
    %2818 = vmatpush.bf16.msra.mxu0 %v2692
    %2819 = vmatpush.bf16.msra.mxu0 %v2690
    %2820 = vmatmul.bf16.gmra.mxu0 %v2394
    %v2821 = vpop.f32.mrf.mxu0
    %v2822 = vadd.f32 %v2809, %v2821
    %v2823 = vpop.f32.mrf.mxu0
    %2824 = vdwg.mxu0
    %2825 = vmatpush.bf16.msra.mxu0 %v2720
    %2826 = vmatpush.bf16.msra.mxu0 %v2718
    %2827 = vmatpush.bf16.msra.mxu0 %v2716
    %2828 = vmatpush.bf16.msra.mxu0 %v2714
    %2829 = vmatpush.bf16.msra.mxu0 %v2712
    %2830 = vmatpush.bf16.msra.mxu0 %v2710
    %2831 = vmatpush.bf16.msra.mxu0 %v2708
    %2832 = vmatpush.bf16.msra.mxu0 %v2706
    %2833 = vmatmul.bf16.gmra.mxu0 %v2395
    %v2834 = vpop.f32.mrf.mxu0
    %v2835 = vadd.f32 %v2822, %v2834
    %v2836 = vpop.f32.mrf.mxu0
    %2837 = vdwg.mxu0
    %2838 = vmatpush.bf16.msra.mxu0 %v2673
    %2839 = vmatpush.bf16.msra.mxu0 %v2671
    %2840 = vmatpush.bf16.msra.mxu0 %v2669
    %2841 = vmatpush.bf16.msra.mxu0 %v2667
    %2842 = vmatpush.bf16.msra.mxu0 %v2665
    %2843 = vmatpush.bf16.msra.mxu0 %v2663
    %2844 = vmatpush.bf16.msra.mxu0 %v2661
    %2845 = vmatpush.bf16.msra.mxu0 %v2659
    %2846 = vmatmul.bf16.gmra.mxu0 %v2392
    %v2847 = vpop.f32.mrf.mxu0
    %v2848 = vadd.f32 %v2463, %v2847
    %v2849 = vpop.f32.mrf.mxu0
    %2850 = vdwg.mxu0
    %2851 = vmatpush.bf16.msra.mxu0 %v2689
    %2852 = vmatpush.bf16.msra.mxu0 %v2687
    %2853 = vmatpush.bf16.msra.mxu0 %v2685
    %2854 = vmatpush.bf16.msra.mxu0 %v2683
    %2855 = vmatpush.bf16.msra.mxu0 %v2681
    %2856 = vmatpush.bf16.msra.mxu0 %v2679
    %2857 = vmatpush.bf16.msra.mxu0 %v2677
    %2858 = vmatpush.bf16.msra.mxu0 %v2675
    %2859 = vmatmul.bf16.gmra.mxu0 %v2393
    %v2860 = vpop.f32.mrf.mxu0
    %v2861 = vadd.f32 %v2848, %v2860
    %v2862 = vpop.f32.mrf.mxu0
    %2863 = vdwg.mxu0
    %2864 = vmatpush.bf16.msra.mxu0 %v2705
    %2865 = vmatpush.bf16.msra.mxu0 %v2703
    %2866 = vmatpush.bf16.msra.mxu0 %v2701
    %2867 = vmatpush.bf16.msra.mxu0 %v2699
    %2868 = vmatpush.bf16.msra.mxu0 %v2697
    %2869 = vmatpush.bf16.msra.mxu0 %v2695
    %2870 = vmatpush.bf16.msra.mxu0 %v2693
    %2871 = vmatpush.bf16.msra.mxu0 %v2691
    %2872 = vmatmul.bf16.gmra.mxu0 %v2394
    %v2873 = vpop.f32.mrf.mxu0
    %v2874 = vadd.f32 %v2861, %v2873
    %v2875 = vpop.f32.mrf.mxu0
    %2876 = vdwg.mxu0
    %2877 = vmatpush.bf16.msra.mxu0 %v2721
    %2878 = vmatpush.bf16.msra.mxu0 %v2719
    %2879 = vmatpush.bf16.msra.mxu0 %v2717
    %2880 = vmatpush.bf16.msra.mxu0 %v2715
    %2881 = vmatpush.bf16.msra.mxu0 %v2713
    %2882 = vmatpush.bf16.msra.mxu0 %v2711
    %2883 = vmatpush.bf16.msra.mxu0 %v2709
    %2884 = vmatpush.bf16.msra.mxu0 %v2707
    %2885 = vmatmul.bf16.gmra.mxu0 %v2395
    %v2886 = vpop.f32.mrf.mxu0
    %v2887 = vadd.f32 %v2874, %v2886
    %v2888 = vpop.f32.mrf.mxu0
    %2889 = vdwg.mxu0
    %v2890 = vmul.f32 %v2887, 0.5
    %v2891 = vmul.f32 %v2890, 1.442695
    %v2892 = vpow.pop %v2891
    %v2893 = vmul.f32 %v145, %v2892
    %v2894 = vadd.f32 %v2835, %v2893
    %v2895 = vpack.c.bf16 %v2894, %v2894
    %v2896 = vld [vmem:[#allocation8] sm:$0xff]
    %v2897 = vld [vmem:[#allocation8 + $0x8] sm:$0xff]
    %v2898 = vld [vmem:[#allocation8 + $0x10] sm:$0xff]
    %v2899 = vld [vmem:[#allocation8 + $0x18] sm:$0xff]
    %v2900 = vld [vmem:[#allocation8 + $0x20] sm:$0xff]
    %v2901 = vld [vmem:[#allocation8 + $0x28] sm:$0xff]
    %v2902 = vld [vmem:[#allocation8 + $0x30] sm:$0xff]
    %v2903 = vld [vmem:[#allocation8 + $0x38] sm:$0xff]
    %v2904 = vld [vmem:[#allocation8 + $0x40] sm:$0xff]
    %v2905 = vld [vmem:[#allocation8 + $0x48] sm:$0xff]
    %v2906 = vld [vmem:[#allocation8 + $0x50] sm:$0xff]
    %v2907 = vld [vmem:[#allocation8 + $0x58] sm:$0xff]
    %v2908 = vld [vmem:[#allocation8 + $0x60] sm:$0xff]
    %v2909 = vld [vmem:[#allocation8 + $0x68] sm:$0xff]
    %v2910 = vld [vmem:[#allocation8 + $0x70] sm:$0xff]
    %v2911 = vld [vmem:[#allocation8 + $0x78] sm:$0xff]
    %v2912 = vld [vmem:[#allocation8 + $0x80] sm:$0xff]
    %v2913 = vld [vmem:[#allocation8 + $0x88] sm:$0xff]
    %v2914 = vld [vmem:[#allocation8 + $0x90] sm:$0xff]
    %v2915 = vld [vmem:[#allocation8 + $0x98] sm:$0xff]
    %v2916 = vld [vmem:[#allocation8 + $0xa0] sm:$0xff]
    %v2917 = vld [vmem:[#allocation8 + $0xa8] sm:$0xff]
    %v2918 = vld [vmem:[#allocation8 + $0xb0] sm:$0xff]
    %v2919 = vld [vmem:[#allocation8 + $0xb8] sm:$0xff]
    %v2920 = vld [vmem:[#allocation8 + $0xc0] sm:$0xff]
    %v2921 = vld [vmem:[#allocation8 + $0xc8] sm:$0xff]
    %v2922 = vld [vmem:[#allocation8 + $0xd0] sm:$0xff]
    %v2923 = vld [vmem:[#allocation8 + $0xd8] sm:$0xff]
    %v2924 = vld [vmem:[#allocation8 + $0xe0] sm:$0xff]
    %v2925 = vld [vmem:[#allocation8 + $0xe8] sm:$0xff]
    %v2926 = vld [vmem:[#allocation8 + $0xf0] sm:$0xff]
    %v2927 = vld [vmem:[#allocation8 + $0xf8] sm:$0xff]
    %v2928 = vld [vmem:[%s9] sm:$0xf]
    %v2930 = vperm.slane %v2928, 0
    %v2931 = vperm.slane %v2928, 1
    %v2932 = vperm.slane %v2928, 2
    %v2933 = vperm.slane %v2928, 3
    %v2970 = vunpack.c.l.b16 %v2896
    %v2971 = vunpack.c.h.b16 %v2896
    %v2972 = vunpack.c.l.b16 %v2897
    %v2973 = vunpack.c.h.b16 %v2897
    %v2974 = vunpack.c.l.b16 %v2898
    %v2975 = vunpack.c.h.b16 %v2898
    %v2976 = vunpack.c.l.b16 %v2899
    %v2977 = vunpack.c.h.b16 %v2899
    %v2978 = vunpack.c.l.b16 %v2900
    %v2979 = vunpack.c.h.b16 %v2900
    %v2980 = vunpack.c.l.b16 %v2901
    %v2981 = vunpack.c.h.b16 %v2901
    %v2982 = vunpack.c.l.b16 %v2902
    %v2983 = vunpack.c.h.b16 %v2902
    %v2984 = vunpack.c.l.b16 %v2903
    %v2985 = vunpack.c.h.b16 %v2903
    %v2986 = vunpack.c.l.b16 %v2904
    %v2987 = vunpack.c.h.b16 %v2904
    %v2988 = vunpack.c.l.b16 %v2905
    %v2989 = vunpack.c.h.b16 %v2905
    %v2990 = vunpack.c.l.b16 %v2906
    %v2991 = vunpack.c.h.b16 %v2906
    %v2992 = vunpack.c.l.b16 %v2907
    %v2993 = vunpack.c.h.b16 %v2907
    %v2994 = vunpack.c.l.b16 %v2908
    %v2995 = vunpack.c.h.b16 %v2908
    %v2996 = vunpack.c.l.b16 %v2909
    %v2997 = vunpack.c.h.b16 %v2909
    %v2998 = vunpack.c.l.b16 %v2910
    %v2999 = vunpack.c.h.b16 %v2910
    %v3000 = vunpack.c.l.b16 %v2911
    %v3001 = vunpack.c.h.b16 %v2911
    %v3002 = vunpack.c.l.b16 %v2912
    %v3003 = vunpack.c.h.b16 %v2912
    %v3004 = vunpack.c.l.b16 %v2913
    %v3005 = vunpack.c.h.b16 %v2913
    %v3006 = vunpack.c.l.b16 %v2914
    %v3007 = vunpack.c.h.b16 %v2914
    %v3008 = vunpack.c.l.b16 %v2915
    %v3009 = vunpack.c.h.b16 %v2915
    %v3010 = vunpack.c.l.b16 %v2916
    %v3011 = vunpack.c.h.b16 %v2916
    %v3012 = vunpack.c.l.b16 %v2917
    %v3013 = vunpack.c.h.b16 %v2917
    %v3014 = vunpack.c.l.b16 %v2918
    %v3015 = vunpack.c.h.b16 %v2918
    %v3016 = vunpack.c.l.b16 %v2919
    %v3017 = vunpack.c.h.b16 %v2919
    %v3018 = vunpack.c.l.b16 %v2920
    %v3019 = vunpack.c.h.b16 %v2920
    %v3020 = vunpack.c.l.b16 %v2921
    %v3021 = vunpack.c.h.b16 %v2921
    %v3022 = vunpack.c.l.b16 %v2922
    %v3023 = vunpack.c.h.b16 %v2922
    %v3024 = vunpack.c.l.b16 %v2923
    %v3025 = vunpack.c.h.b16 %v2923
    %v3026 = vunpack.c.l.b16 %v2924
    %v3027 = vunpack.c.h.b16 %v2924
    %v3028 = vunpack.c.l.b16 %v2925
    %v3029 = vunpack.c.h.b16 %v2925
    %v3030 = vunpack.c.l.b16 %v2926
    %v3031 = vunpack.c.h.b16 %v2926
    %v3032 = vunpack.c.l.b16 %v2927
    %v3033 = vunpack.c.h.b16 %v2927
    %v3034 = vpack.c.b16 %v2974, %v2970
    %v3035 = vpack.c.b16 %v2975, %v2971
    %v3036 = vpack.c.b16 %v2976, %v2972
    %v3037 = vpack.c.b16 %v2977, %v2973
    %v3038 = vpack.c.b16 %v2982, %v2978
    %v3039 = vpack.c.b16 %v2983, %v2979
    %v3040 = vpack.c.b16 %v2984, %v2980
    %v3041 = vpack.c.b16 %v2985, %v2981
    %v3042 = vpack.c.b16 %v2990, %v2986
    %v3043 = vpack.c.b16 %v2991, %v2987
    %v3044 = vpack.c.b16 %v2992, %v2988
    %v3045 = vpack.c.b16 %v2993, %v2989
    %v3046 = vpack.c.b16 %v2998, %v2994
    %v3047 = vpack.c.b16 %v2999, %v2995
    %v3048 = vpack.c.b16 %v3000, %v2996
    %v3049 = vpack.c.b16 %v3001, %v2997
    %v3050 = vpack.c.b16 %v3006, %v3002
    %v3051 = vpack.c.b16 %v3007, %v3003
    %v3052 = vpack.c.b16 %v3008, %v3004
    %v3053 = vpack.c.b16 %v3009, %v3005
    %v3054 = vpack.c.b16 %v3014, %v3010
    %v3055 = vpack.c.b16 %v3015, %v3011
    %v3056 = vpack.c.b16 %v3016, %v3012
    %v3057 = vpack.c.b16 %v3017, %v3013
    %v3058 = vpack.c.b16 %v3022, %v3018
    %v3059 = vpack.c.b16 %v3023, %v3019
    %v3060 = vpack.c.b16 %v3024, %v3020
    %v3061 = vpack.c.b16 %v3025, %v3021
    %v3062 = vpack.c.b16 %v3030, %v3026
    %v3063 = vpack.c.b16 %v3031, %v3027
    %v3064 = vpack.c.b16 %v3032, %v3028
    %v3065 = vpack.c.b16 %v3033, %v3029
    %3098 = vmatpush.bf16.msra.mxu0 %v3062
    %3099 = vmatpush.bf16.msra.mxu0 %v3058
    %3100 = vmatpush.bf16.msra.mxu0 %v3054
    %3101 = vmatpush.bf16.msra.mxu0 %v3050
    %3102 = vmatpush.bf16.msra.mxu0 %v3046
    %3103 = vmatpush.bf16.msra.mxu0 %v3042
    %3104 = vmatpush.bf16.msra.mxu0 %v3038
    %3105 = vmatpush.bf16.msra.mxu0 %v3034
    %3106 = vmatmul.bf16.gmra.mxu0 %v2895
    %v3107 = vpop.f32.mrf.mxu0
    %v3108 = vadd.f32 %v2930, %v3107
    %v3109 = vpop.f32.mrf.mxu0
    %3110 = vdwg.mxu0
    %3111 = vmatpush.bf16.msra.mxu0 %v3063
    %3112 = vmatpush.bf16.msra.mxu0 %v3059
    %3113 = vmatpush.bf16.msra.mxu0 %v3055
    %3114 = vmatpush.bf16.msra.mxu0 %v3051
    %3115 = vmatpush.bf16.msra.mxu0 %v3047
    %3116 = vmatpush.bf16.msra.mxu0 %v3043
    %3117 = vmatpush.bf16.msra.mxu0 %v3039
    %3118 = vmatpush.bf16.msra.mxu0 %v3035
    %3119 = vmatmul.bf16.gmra.mxu0 %v2895
    %v3120 = vpop.f32.mrf.mxu0
    %v3121 = vadd.f32 %v2931, %v3120
    %v3122 = vpop.f32.mrf.mxu0
    %3123 = vdwg.mxu0
    %3124 = vmatpush.bf16.msra.mxu0 %v3064
    %3125 = vmatpush.bf16.msra.mxu0 %v3060
    %3126 = vmatpush.bf16.msra.mxu0 %v3056
    %3127 = vmatpush.bf16.msra.mxu0 %v3052
    %3128 = vmatpush.bf16.msra.mxu0 %v3048
    %3129 = vmatpush.bf16.msra.mxu0 %v3044
    %3130 = vmatpush.bf16.msra.mxu0 %v3040
    %3131 = vmatpush.bf16.msra.mxu0 %v3036
    %3132 = vmatmul.bf16.gmra.mxu0 %v2895
    %v3133 = vpop.f32.mrf.mxu0
    %v3134 = vadd.f32 %v2932, %v3133
    %v3135 = vpop.f32.mrf.mxu0
    %3136 = vdwg.mxu0
    %3137 = vmatpush.bf16.msra.mxu0 %v3065
    %3138 = vmatpush.bf16.msra.mxu0 %v3061
    %3139 = vmatpush.bf16.msra.mxu0 %v3057
    %3140 = vmatpush.bf16.msra.mxu0 %v3053
    %3141 = vmatpush.bf16.msra.mxu0 %v3049
    %3142 = vmatpush.bf16.msra.mxu0 %v3045
    %3143 = vmatpush.bf16.msra.mxu0 %v3041
    %3144 = vmatpush.bf16.msra.mxu0 %v3037
    %3145 = vmatmul.bf16.gmra.mxu0 %v2895
    %v3146 = vpop.f32.mrf.mxu0
    %v3147 = vadd.f32 %v2933, %v3146
    %v3148 = vpop.f32.mrf.mxu0
    %3149 = vdwg.mxu0
    %v3150 = vmax.f32 %v3108, 0.0
    %v3151 = vmax.f32 %v3121, 0.0
    %v3152 = vmax.f32 %v3134, 0.0
    %v3153 = vmax.f32 %v3147, 0.0
    %v3154 = vpack.c.bf16 %v3150, %v3150
    %v3155 = vpack.c.bf16 %v3151, %v3151
    %v3156 = vpack.c.bf16 %v3152, %v3152
    %v3157 = vpack.c.bf16 %v3153, %v3153
    %v3158 = vld [vmem:[#allocation10] sm:$0xff]
    %v3159 = vld [vmem:[#allocation10 + $0x8] sm:$0xff]
    %v3160 = vld [vmem:[#allocation10 + $0x10] sm:$0xff]
    %v3161 = vld [vmem:[#allocation10 + $0x18] sm:$0xff]
    %v3162 = vld [vmem:[#allocation10 + $0x20] sm:$0xff]
    %v3163 = vld [vmem:[#allocation10 + $0x28] sm:$0xff]
    %v3164 = vld [vmem:[#allocation10 + $0x30] sm:$0xff]
    %v3165 = vld [vmem:[#allocation10 + $0x38] sm:$0xff]
    %v3166 = vld [vmem:[#allocation10 + $0x40] sm:$0xff]
    %v3167 = vld [vmem:[#allocation10 + $0x48] sm:$0xff]
    %v3168 = vld [vmem:[#allocation10 + $0x50] sm:$0xff]
    %v3169 = vld [vmem:[#allocation10 + $0x58] sm:$0xff]
    %v3170 = vld [vmem:[#allocation10 + $0x60] sm:$0xff]
    %v3171 = vld [vmem:[#allocation10 + $0x68] sm:$0xff]
    %v3172 = vld [vmem:[#allocation10 + $0x70] sm:$0xff]
    %v3173 = vld [vmem:[#allocation10 + $0x78] sm:$0xff]
    %v3174 = vld [vmem:[#allocation10 + $0x80] sm:$0xff]
    %v3175 = vld [vmem:[#allocation10 + $0x88] sm:$0xff]
    %v3176 = vld [vmem:[#allocation10 + $0x90] sm:$0xff]
    %v3177 = vld [vmem:[#allocation10 + $0x98] sm:$0xff]
    %v3178 = vld [vmem:[#allocation10 + $0xa0] sm:$0xff]
    %v3179 = vld [vmem:[#allocation10 + $0xa8] sm:$0xff]
    %v3180 = vld [vmem:[#allocation10 + $0xb0] sm:$0xff]
    %v3181 = vld [vmem:[#allocation10 + $0xb8] sm:$0xff]
    %v3182 = vld [vmem:[#allocation10 + $0xc0] sm:$0xff]
    %v3183 = vld [vmem:[#allocation10 + $0xc8] sm:$0xff]
    %v3184 = vld [vmem:[#allocation10 + $0xd0] sm:$0xff]
    %v3185 = vld [vmem:[#allocation10 + $0xd8] sm:$0xff]
    %v3186 = vld [vmem:[#allocation10 + $0xe0] sm:$0xff]
    %v3187 = vld [vmem:[#allocation10 + $0xe8] sm:$0xff]
    %v3188 = vld [vmem:[#allocation10 + $0xf0] sm:$0xff]
    %v3189 = vld [vmem:[#allocation10 + $0xf8] sm:$0xff]
    %v3190 = vld [vmem:[#allocation10 + $0x100] sm:$0xff]
    %v3191 = vld [vmem:[#allocation10 + $0x108] sm:$0xff]
    %v3192 = vld [vmem:[#allocation10 + $0x110] sm:$0xff]
    %v3193 = vld [vmem:[#allocation10 + $0x118] sm:$0xff]
    %v3194 = vld [vmem:[#allocation10 + $0x120] sm:$0xff]
    %v3195 = vld [vmem:[#allocation10 + $0x128] sm:$0xff]
    %v3196 = vld [vmem:[#allocation10 + $0x130] sm:$0xff]
    %v3197 = vld [vmem:[#allocation10 + $0x138] sm:$0xff]
    %v3198 = vld [vmem:[#allocation10 + $0x140] sm:$0xff]
    %v3199 = vld [vmem:[#allocation10 + $0x148] sm:$0xff]
    %v3200 = vld [vmem:[#allocation10 + $0x150] sm:$0xff]
    %v3201 = vld [vmem:[#allocation10 + $0x158] sm:$0xff]
    %v3202 = vld [vmem:[#allocation10 + $0x160] sm:$0xff]
    %v3203 = vld [vmem:[#allocation10 + $0x168] sm:$0xff]
    %v3204 = vld [vmem:[#allocation10 + $0x170] sm:$0xff]
    %v3205 = vld [vmem:[#allocation10 + $0x178] sm:$0xff]
    %v3206 = vld [vmem:[#allocation10 + $0x180] sm:$0xff]
    %v3207 = vld [vmem:[#allocation10 + $0x188] sm:$0xff]
    %v3208 = vld [vmem:[#allocation10 + $0x190] sm:$0xff]
    %v3209 = vld [vmem:[#allocation10 + $0x198] sm:$0xff]
    %v3210 = vld [vmem:[#allocation10 + $0x1a0] sm:$0xff]
    %v3211 = vld [vmem:[#allocation10 + $0x1a8] sm:$0xff]
    %v3212 = vld [vmem:[#allocation10 + $0x1b0] sm:$0xff]
    %v3213 = vld [vmem:[#allocation10 + $0x1b8] sm:$0xff]
    %v3214 = vld [vmem:[#allocation10 + $0x1c0] sm:$0xff]
    %v3215 = vld [vmem:[#allocation10 + $0x1c8] sm:$0xff]
    %v3216 = vld [vmem:[#allocation10 + $0x1d0] sm:$0xff]
    %v3217 = vld [vmem:[#allocation10 + $0x1d8] sm:$0xff]
    %v3218 = vld [vmem:[#allocation10 + $0x1e0] sm:$0xff]
    %v3219 = vld [vmem:[#allocation10 + $0x1e8] sm:$0xff]
    %v3220 = vld [vmem:[#allocation10 + $0x1f0] sm:$0xff]
    %v3221 = vld [vmem:[#allocation10 + $0x1f8] sm:$0xff]
    %v3222 = vld [vmem:[#allocation10 + $0x200] sm:$0xff]
    %v3223 = vld [vmem:[#allocation10 + $0x208] sm:$0xff]
    %v3224 = vld [vmem:[#allocation10 + $0x210] sm:$0xff]
    %v3225 = vld [vmem:[#allocation10 + $0x218] sm:$0xff]
    %v3226 = vld [vmem:[#allocation10 + $0x220] sm:$0xff]
    %v3227 = vld [vmem:[#allocation10 + $0x228] sm:$0xff]
    %v3228 = vld [vmem:[#allocation10 + $0x230] sm:$0xff]
    %v3229 = vld [vmem:[#allocation10 + $0x238] sm:$0xff]
    %v3230 = vld [vmem:[#allocation10 + $0x240] sm:$0xff]
    %v3231 = vld [vmem:[#allocation10 + $0x248] sm:$0xff]
    %v3232 = vld [vmem:[#allocation10 + $0x250] sm:$0xff]
    %v3233 = vld [vmem:[#allocation10 + $0x258] sm:$0xff]
    %v3234 = vld [vmem:[#allocation10 + $0x260] sm:$0xff]
    %v3235 = vld [vmem:[#allocation10 + $0x268] sm:$0xff]
    %v3236 = vld [vmem:[#allocation10 + $0x270] sm:$0xff]
    %v3237 = vld [vmem:[#allocation10 + $0x278] sm:$0xff]
    %v3238 = vld [vmem:[#allocation10 + $0x280] sm:$0xff]
    %v3239 = vld [vmem:[#allocation10 + $0x288] sm:$0xff]
    %v3240 = vld [vmem:[#allocation10 + $0x290] sm:$0xff]
    %v3241 = vld [vmem:[#allocation10 + $0x298] sm:$0xff]
    %v3242 = vld [vmem:[#allocation10 + $0x2a0] sm:$0xff]
    %v3243 = vld [vmem:[#allocation10 + $0x2a8] sm:$0xff]
    %v3244 = vld [vmem:[#allocation10 + $0x2b0] sm:$0xff]
    %v3245 = vld [vmem:[#allocation10 + $0x2b8] sm:$0xff]
    %v3246 = vld [vmem:[#allocation10 + $0x2c0] sm:$0xff]
    %v3247 = vld [vmem:[#allocation10 + $0x2c8] sm:$0xff]
    %v3248 = vld [vmem:[#allocation10 + $0x2d0] sm:$0xff]
    %v3249 = vld [vmem:[#allocation10 + $0x2d8] sm:$0xff]
    %v3250 = vld [vmem:[#allocation10 + $0x2e0] sm:$0xff]
    %v3251 = vld [vmem:[#allocation10 + $0x2e8] sm:$0xff]
    %v3252 = vld [vmem:[#allocation10 + $0x2f0] sm:$0xff]
    %v3253 = vld [vmem:[#allocation10 + $0x2f8] sm:$0xff]
    %v3254 = vld [vmem:[#allocation10 + $0x300] sm:$0xff]
    %v3255 = vld [vmem:[#allocation10 + $0x308] sm:$0xff]
    %v3256 = vld [vmem:[#allocation10 + $0x310] sm:$0xff]
    %v3257 = vld [vmem:[#allocation10 + $0x318] sm:$0xff]
    %v3258 = vld [vmem:[#allocation10 + $0x320] sm:$0xff]
    %v3259 = vld [vmem:[#allocation10 + $0x328] sm:$0xff]
    %v3260 = vld [vmem:[#allocation10 + $0x330] sm:$0xff]
    %v3261 = vld [vmem:[#allocation10 + $0x338] sm:$0xff]
    %v3262 = vld [vmem:[#allocation10 + $0x340] sm:$0xff]
    %v3263 = vld [vmem:[#allocation10 + $0x348] sm:$0xff]
    %v3264 = vld [vmem:[#allocation10 + $0x350] sm:$0xff]
    %v3265 = vld [vmem:[#allocation10 + $0x358] sm:$0xff]
    %v3266 = vld [vmem:[#allocation10 + $0x360] sm:$0xff]
    %v3267 = vld [vmem:[#allocation10 + $0x368] sm:$0xff]
    %v3268 = vld [vmem:[#allocation10 + $0x370] sm:$0xff]
    %v3269 = vld [vmem:[#allocation10 + $0x378] sm:$0xff]
    %v3270 = vld [vmem:[#allocation10 + $0x380] sm:$0xff]
    %v3271 = vld [vmem:[#allocation10 + $0x388] sm:$0xff]
    %v3272 = vld [vmem:[#allocation10 + $0x390] sm:$0xff]
    %v3273 = vld [vmem:[#allocation10 + $0x398] sm:$0xff]
    %v3274 = vld [vmem:[#allocation10 + $0x3a0] sm:$0xff]
    %v3275 = vld [vmem:[#allocation10 + $0x3a8] sm:$0xff]
    %v3276 = vld [vmem:[#allocation10 + $0x3b0] sm:$0xff]
    %v3277 = vld [vmem:[#allocation10 + $0x3b8] sm:$0xff]
    %v3278 = vld [vmem:[#allocation10 + $0x3c0] sm:$0xff]
    %v3279 = vld [vmem:[#allocation10 + $0x3c8] sm:$0xff]
    %v3280 = vld [vmem:[#allocation10 + $0x3d0] sm:$0xff]
    %v3281 = vld [vmem:[#allocation10 + $0x3d8] sm:$0xff]
    %v3282 = vld [vmem:[#allocation10 + $0x3e0] sm:$0xff]
    %v3283 = vld [vmem:[#allocation10 + $0x3e8] sm:$0xff]
    %v3284 = vld [vmem:[#allocation10 + $0x3f0] sm:$0xff]
    %v3285 = vld [vmem:[#allocation10 + $0x3f8] sm:$0xff]
    %v3286 = vld [vmem:[%s11] sm:$0xf]
    %v3288 = vperm.slane %v3286, 0
    %v3289 = vperm.slane %v3286, 1
    %v3290 = vperm.slane %v3286, 2
    %v3291 = vperm.slane %v3286, 3
    %v3424 = vunpack.c.l.b16 %v3158
    %v3425 = vunpack.c.h.b16 %v3158
    %v3426 = vunpack.c.l.b16 %v3159
    %v3427 = vunpack.c.h.b16 %v3159
    %v3428 = vunpack.c.l.b16 %v3160
    %v3429 = vunpack.c.h.b16 %v3160
    %v3430 = vunpack.c.l.b16 %v3161
    %v3431 = vunpack.c.h.b16 %v3161
    %v3432 = vunpack.c.l.b16 %v3162
    %v3433 = vunpack.c.h.b16 %v3162
    %v3434 = vunpack.c.l.b16 %v3163
    %v3435 = vunpack.c.h.b16 %v3163
    %v3436 = vunpack.c.l.b16 %v3164
    %v3437 = vunpack.c.h.b16 %v3164
    %v3438 = vunpack.c.l.b16 %v3165
    %v3439 = vunpack.c.h.b16 %v3165
    %v3440 = vunpack.c.l.b16 %v3166
    %v3441 = vunpack.c.h.b16 %v3166
    %v3442 = vunpack.c.l.b16 %v3167
    %v3443 = vunpack.c.h.b16 %v3167
    %v3444 = vunpack.c.l.b16 %v3168
    %v3445 = vunpack.c.h.b16 %v3168
    %v3446 = vunpack.c.l.b16 %v3169
    %v3447 = vunpack.c.h.b16 %v3169
    %v3448 = vunpack.c.l.b16 %v3170
    %v3449 = vunpack.c.h.b16 %v3170
    %v3450 = vunpack.c.l.b16 %v3171
    %v3451 = vunpack.c.h.b16 %v3171
    %v3452 = vunpack.c.l.b16 %v3172
    %v3453 = vunpack.c.h.b16 %v3172
    %v3454 = vunpack.c.l.b16 %v3173
    %v3455 = vunpack.c.h.b16 %v3173
    %v3456 = vunpack.c.l.b16 %v3174
    %v3457 = vunpack.c.h.b16 %v3174
    %v3458 = vunpack.c.l.b16 %v3175
    %v3459 = vunpack.c.h.b16 %v3175
    %v3460 = vunpack.c.l.b16 %v3176
    %v3461 = vunpack.c.h.b16 %v3176
    %v3462 = vunpack.c.l.b16 %v3177
    %v3463 = vunpack.c.h.b16 %v3177
    %v3464 = vunpack.c.l.b16 %v3178
    %v3465 = vunpack.c.h.b16 %v3178
    %v3466 = vunpack.c.l.b16 %v3179
    %v3467 = vunpack.c.h.b16 %v3179
    %v3468 = vunpack.c.l.b16 %v3180
    %v3469 = vunpack.c.h.b16 %v3180
    %v3470 = vunpack.c.l.b16 %v3181
    %v3471 = vunpack.c.h.b16 %v3181
    %v3472 = vunpack.c.l.b16 %v3182
    %v3473 = vunpack.c.h.b16 %v3182
    %v3474 = vunpack.c.l.b16 %v3183
    %v3475 = vunpack.c.h.b16 %v3183
    %v3476 = vunpack.c.l.b16 %v3184
    %v3477 = vunpack.c.h.b16 %v3184
    %v3478 = vunpack.c.l.b16 %v3185
    %v3479 = vunpack.c.h.b16 %v3185
    %v3480 = vunpack.c.l.b16 %v3186
    %v3481 = vunpack.c.h.b16 %v3186
    %v3482 = vunpack.c.l.b16 %v3187
    %v3483 = vunpack.c.h.b16 %v3187
    %v3484 = vunpack.c.l.b16 %v3188
    %v3485 = vunpack.c.h.b16 %v3188
    %v3486 = vunpack.c.l.b16 %v3189
    %v3487 = vunpack.c.h.b16 %v3189
    %v3488 = vunpack.c.l.b16 %v3190
    %v3489 = vunpack.c.h.b16 %v3190
    %v3490 = vunpack.c.l.b16 %v3191
    %v3491 = vunpack.c.h.b16 %v3191
    %v3492 = vunpack.c.l.b16 %v3192
    %v3493 = vunpack.c.h.b16 %v3192
    %v3494 = vunpack.c.l.b16 %v3193
    %v3495 = vunpack.c.h.b16 %v3193
    %v3496 = vunpack.c.l.b16 %v3194
    %v3497 = vunpack.c.h.b16 %v3194
    %v3498 = vunpack.c.l.b16 %v3195
    %v3499 = vunpack.c.h.b16 %v3195
    %v3500 = vunpack.c.l.b16 %v3196
    %v3501 = vunpack.c.h.b16 %v3196
    %v3502 = vunpack.c.l.b16 %v3197
    %v3503 = vunpack.c.h.b16 %v3197
    %v3504 = vunpack.c.l.b16 %v3198
    %v3505 = vunpack.c.h.b16 %v3198
    %v3506 = vunpack.c.l.b16 %v3199
    %v3507 = vunpack.c.h.b16 %v3199
    %v3508 = vunpack.c.l.b16 %v3200
    %v3509 = vunpack.c.h.b16 %v3200
    %v3510 = vunpack.c.l.b16 %v3201
    %v3511 = vunpack.c.h.b16 %v3201
    %v3512 = vunpack.c.l.b16 %v3202
    %v3513 = vunpack.c.h.b16 %v3202
    %v3514 = vunpack.c.l.b16 %v3203
    %v3515 = vunpack.c.h.b16 %v3203
    %v3516 = vunpack.c.l.b16 %v3204
    %v3517 = vunpack.c.h.b16 %v3204
    %v3518 = vunpack.c.l.b16 %v3205
    %v3519 = vunpack.c.h.b16 %v3205
    %v3520 = vunpack.c.l.b16 %v3206
    %v3521 = vunpack.c.h.b16 %v3206
    %v3522 = vunpack.c.l.b16 %v3207
    %v3523 = vunpack.c.h.b16 %v3207
    %v3524 = vunpack.c.l.b16 %v3208
    %v3525 = vunpack.c.h.b16 %v3208
    %v3526 = vunpack.c.l.b16 %v3209
    %v3527 = vunpack.c.h.b16 %v3209
    %v3528 = vunpack.c.l.b16 %v3210
    %v3529 = vunpack.c.h.b16 %v3210
    %v3530 = vunpack.c.l.b16 %v3211
    %v3531 = vunpack.c.h.b16 %v3211
    %v3532 = vunpack.c.l.b16 %v3212
    %v3533 = vunpack.c.h.b16 %v3212
    %v3534 = vunpack.c.l.b16 %v3213
    %v3535 = vunpack.c.h.b16 %v3213
    %v3536 = vunpack.c.l.b16 %v3214
    %v3537 = vunpack.c.h.b16 %v3214
    %v3538 = vunpack.c.l.b16 %v3215
    %v3539 = vunpack.c.h.b16 %v3215
    %v3540 = vunpack.c.l.b16 %v3216
    %v3541 = vunpack.c.h.b16 %v3216
    %v3542 = vunpack.c.l.b16 %v3217
    %v3543 = vunpack.c.h.b16 %v3217
    %v3544 = vunpack.c.l.b16 %v3218
    %v3545 = vunpack.c.h.b16 %v3218
    %v3546 = vunpack.c.l.b16 %v3219
    %v3547 = vunpack.c.h.b16 %v3219
    %v3548 = vunpack.c.l.b16 %v3220
    %v3549 = vunpack.c.h.b16 %v3220
    %v3550 = vunpack.c.l.b16 %v3221
    %v3551 = vunpack.c.h.b16 %v3221
    %v3552 = vunpack.c.l.b16 %v3222
    %v3553 = vunpack.c.h.b16 %v3222
    %v3554 = vunpack.c.l.b16 %v3223
    %v3555 = vunpack.c.h.b16 %v3223
    %v3556 = vunpack.c.l.b16 %v3224
    %v3557 = vunpack.c.h.b16 %v3224
    %v3558 = vunpack.c.l.b16 %v3225
    %v3559 = vunpack.c.h.b16 %v3225
    %v3560 = vunpack.c.l.b16 %v3226
    %v3561 = vunpack.c.h.b16 %v3226
    %v3562 = vunpack.c.l.b16 %v3227
    %v3563 = vunpack.c.h.b16 %v3227
    %v3564 = vunpack.c.l.b16 %v3228
    %v3565 = vunpack.c.h.b16 %v3228
    %v3566 = vunpack.c.l.b16 %v3229
    %v3567 = vunpack.c.h.b16 %v3229
    %v3568 = vunpack.c.l.b16 %v3230
    %v3569 = vunpack.c.h.b16 %v3230
    %v3570 = vunpack.c.l.b16 %v3231
    %v3571 = vunpack.c.h.b16 %v3231
    %v3572 = vunpack.c.l.b16 %v3232
    %v3573 = vunpack.c.h.b16 %v3232
    %v3574 = vunpack.c.l.b16 %v3233
    %v3575 = vunpack.c.h.b16 %v3233
    %v3576 = vunpack.c.l.b16 %v3234
    %v3577 = vunpack.c.h.b16 %v3234
    %v3578 = vunpack.c.l.b16 %v3235
    %v3579 = vunpack.c.h.b16 %v3235
    %v3580 = vunpack.c.l.b16 %v3236
    %v3581 = vunpack.c.h.b16 %v3236
    %v3582 = vunpack.c.l.b16 %v3237
    %v3583 = vunpack.c.h.b16 %v3237
    %v3584 = vunpack.c.l.b16 %v3238
    %v3585 = vunpack.c.h.b16 %v3238
    %v3586 = vunpack.c.l.b16 %v3239
    %v3587 = vunpack.c.h.b16 %v3239
    %v3588 = vunpack.c.l.b16 %v3240
    %v3589 = vunpack.c.h.b16 %v3240
    %v3590 = vunpack.c.l.b16 %v3241
    %v3591 = vunpack.c.h.b16 %v3241
    %v3592 = vunpack.c.l.b16 %v3242
    %v3593 = vunpack.c.h.b16 %v3242
    %v3594 = vunpack.c.l.b16 %v3243
    %v3595 = vunpack.c.h.b16 %v3243
    %v3596 = vunpack.c.l.b16 %v3244
    %v3597 = vunpack.c.h.b16 %v3244
    %v3598 = vunpack.c.l.b16 %v3245
    %v3599 = vunpack.c.h.b16 %v3245
    %v3600 = vunpack.c.l.b16 %v3246
    %v3601 = vunpack.c.h.b16 %v3246
    %v3602 = vunpack.c.l.b16 %v3247
    %v3603 = vunpack.c.h.b16 %v3247
    %v3604 = vunpack.c.l.b16 %v3248
    %v3605 = vunpack.c.h.b16 %v3248
    %v3606 = vunpack.c.l.b16 %v3249
    %v3607 = vunpack.c.h.b16 %v3249
    %v3608 = vunpack.c.l.b16 %v3250
    %v3609 = vunpack.c.h.b16 %v3250
    %v3610 = vunpack.c.l.b16 %v3251
    %v3611 = vunpack.c.h.b16 %v3251
    %v3612 = vunpack.c.l.b16 %v3252
    %v3613 = vunpack.c.h.b16 %v3252
    %v3614 = vunpack.c.l.b16 %v3253
    %v3615 = vunpack.c.h.b16 %v3253
    %v3616 = vunpack.c.l.b16 %v3254
    %v3617 = vunpack.c.h.b16 %v3254
    %v3618 = vunpack.c.l.b16 %v3255
    %v3619 = vunpack.c.h.b16 %v3255
    %v3620 = vunpack.c.l.b16 %v3256
    %v3621 = vunpack.c.h.b16 %v3256
    %v3622 = vunpack.c.l.b16 %v3257
    %v3623 = vunpack.c.h.b16 %v3257
    %v3624 = vunpack.c.l.b16 %v3258
    %v3625 = vunpack.c.h.b16 %v3258
    %v3626 = vunpack.c.l.b16 %v3259
    %v3627 = vunpack.c.h.b16 %v3259
    %v3628 = vunpack.c.l.b16 %v3260
    %v3629 = vunpack.c.h.b16 %v3260
    %v3630 = vunpack.c.l.b16 %v3261
    %v3631 = vunpack.c.h.b16 %v3261
    %v3632 = vunpack.c.l.b16 %v3262
    %v3633 = vunpack.c.h.b16 %v3262
    %v3634 = vunpack.c.l.b16 %v3263
    %v3635 = vunpack.c.h.b16 %v3263
    %v3636 = vunpack.c.l.b16 %v3264
    %v3637 = vunpack.c.h.b16 %v3264
    %v3638 = vunpack.c.l.b16 %v3265
    %v3639 = vunpack.c.h.b16 %v3265
    %v3640 = vunpack.c.l.b16 %v3266
    %v3641 = vunpack.c.h.b16 %v3266
    %v3642 = vunpack.c.l.b16 %v3267
    %v3643 = vunpack.c.h.b16 %v3267
    %v3644 = vunpack.c.l.b16 %v3268
    %v3645 = vunpack.c.h.b16 %v3268
    %v3646 = vunpack.c.l.b16 %v3269
    %v3647 = vunpack.c.h.b16 %v3269
    %v3648 = vunpack.c.l.b16 %v3270
    %v3649 = vunpack.c.h.b16 %v3270
    %v3650 = vunpack.c.l.b16 %v3271
    %v3651 = vunpack.c.h.b16 %v3271
    %v3652 = vunpack.c.l.b16 %v3272
    %v3653 = vunpack.c.h.b16 %v3272
    %v3654 = vunpack.c.l.b16 %v3273
    %v3655 = vunpack.c.h.b16 %v3273
    %v3656 = vunpack.c.l.b16 %v3274
    %v3657 = vunpack.c.h.b16 %v3274
    %v3658 = vunpack.c.l.b16 %v3275
    %v3659 = vunpack.c.h.b16 %v3275
    %v3660 = vunpack.c.l.b16 %v3276
    %v3661 = vunpack.c.h.b16 %v3276
    %v3662 = vunpack.c.l.b16 %v3277
    %v3663 = vunpack.c.h.b16 %v3277
    %v3664 = vunpack.c.l.b16 %v3278
    %v3665 = vunpack.c.h.b16 %v3278
    %v3666 = vunpack.c.l.b16 %v3279
    %v3667 = vunpack.c.h.b16 %v3279
    %v3668 = vunpack.c.l.b16 %v3280
    %v3669 = vunpack.c.h.b16 %v3280
    %v3670 = vunpack.c.l.b16 %v3281
    %v3671 = vunpack.c.h.b16 %v3281
    %v3672 = vunpack.c.l.b16 %v3282
    %v3673 = vunpack.c.h.b16 %v3282
    %v3674 = vunpack.c.l.b16 %v3283
    %v3675 = vunpack.c.h.b16 %v3283
    %v3676 = vunpack.c.l.b16 %v3284
    %v3677 = vunpack.c.h.b16 %v3284
    %v3678 = vunpack.c.l.b16 %v3285
    %v3679 = vunpack.c.h.b16 %v3285
    %v3680 = vpack.c.b16 %v3428, %v3424
    %v3681 = vpack.c.b16 %v3429, %v3425
    %v3682 = vpack.c.b16 %v3430, %v3426
    %v3683 = vpack.c.b16 %v3431, %v3427
    %v3684 = vpack.c.b16 %v3436, %v3432
    %v3685 = vpack.c.b16 %v3437, %v3433
    %v3686 = vpack.c.b16 %v3438, %v3434
    %v3687 = vpack.c.b16 %v3439, %v3435
    %v3688 = vpack.c.b16 %v3444, %v3440
    %v3689 = vpack.c.b16 %v3445, %v3441
    %v3690 = vpack.c.b16 %v3446, %v3442
    %v3691 = vpack.c.b16 %v3447, %v3443
    %v3692 = vpack.c.b16 %v3452, %v3448
    %v3693 = vpack.c.b16 %v3453, %v3449
    %v3694 = vpack.c.b16 %v3454, %v3450
    %v3695 = vpack.c.b16 %v3455, %v3451
    %v3696 = vpack.c.b16 %v3460, %v3456
    %v3697 = vpack.c.b16 %v3461, %v3457
    %v3698 = vpack.c.b16 %v3462, %v3458
    %v3699 = vpack.c.b16 %v3463, %v3459
    %v3700 = vpack.c.b16 %v3468, %v3464
    %v3701 = vpack.c.b16 %v3469, %v3465
    %v3702 = vpack.c.b16 %v3470, %v3466
    %v3703 = vpack.c.b16 %v3471, %v3467
    %v3704 = vpack.c.b16 %v3476, %v3472
    %v3705 = vpack.c.b16 %v3477, %v3473
    %v3706 = vpack.c.b16 %v3478, %v3474
    %v3707 = vpack.c.b16 %v3479, %v3475
    %v3708 = vpack.c.b16 %v3484, %v3480
    %v3709 = vpack.c.b16 %v3485, %v3481
    %v3710 = vpack.c.b16 %v3486, %v3482
    %v3711 = vpack.c.b16 %v3487, %v3483
    %v3712 = vpack.c.b16 %v3492, %v3488
    %v3713 = vpack.c.b16 %v3493, %v3489
    %v3714 = vpack.c.b16 %v3494, %v3490
    %v3715 = vpack.c.b16 %v3495, %v3491
    %v3716 = vpack.c.b16 %v3500, %v3496
    %v3717 = vpack.c.b16 %v3501, %v3497
    %v3718 = vpack.c.b16 %v3502, %v3498
    %v3719 = vpack.c.b16 %v3503, %v3499
    %v3720 = vpack.c.b16 %v3508, %v3504
    %v3721 = vpack.c.b16 %v3509, %v3505
    %v3722 = vpack.c.b16 %v3510, %v3506
    %v3723 = vpack.c.b16 %v3511, %v3507
    %v3724 = vpack.c.b16 %v3516, %v3512
    %v3725 = vpack.c.b16 %v3517, %v3513
    %v3726 = vpack.c.b16 %v3518, %v3514
    %v3727 = vpack.c.b16 %v3519, %v3515
    %v3728 = vpack.c.b16 %v3524, %v3520
    %v3729 = vpack.c.b16 %v3525, %v3521
    %v3730 = vpack.c.b16 %v3526, %v3522
    %v3731 = vpack.c.b16 %v3527, %v3523
    %v3732 = vpack.c.b16 %v3532, %v3528
    %v3733 = vpack.c.b16 %v3533, %v3529
    %v3734 = vpack.c.b16 %v3534, %v3530
    %v3735 = vpack.c.b16 %v3535, %v3531
    %v3736 = vpack.c.b16 %v3540, %v3536
    %v3737 = vpack.c.b16 %v3541, %v3537
    %v3738 = vpack.c.b16 %v3542, %v3538
    %v3739 = vpack.c.b16 %v3543, %v3539
    %v3740 = vpack.c.b16 %v3548, %v3544
    %v3741 = vpack.c.b16 %v3549, %v3545
    %v3742 = vpack.c.b16 %v3550, %v3546
    %v3743 = vpack.c.b16 %v3551, %v3547
    %v3744 = vpack.c.b16 %v3556, %v3552
    %v3745 = vpack.c.b16 %v3557, %v3553
    %v3746 = vpack.c.b16 %v3558, %v3554
    %v3747 = vpack.c.b16 %v3559, %v3555
    %v3748 = vpack.c.b16 %v3564, %v3560
    %v3749 = vpack.c.b16 %v3565, %v3561
    %v3750 = vpack.c.b16 %v3566, %v3562
    %v3751 = vpack.c.b16 %v3567, %v3563
    %v3752 = vpack.c.b16 %v3572, %v3568
    %v3753 = vpack.c.b16 %v3573, %v3569
    %v3754 = vpack.c.b16 %v3574, %v3570
    %v3755 = vpack.c.b16 %v3575, %v3571
    %v3756 = vpack.c.b16 %v3580, %v3576
    %v3757 = vpack.c.b16 %v3581, %v3577
    %v3758 = vpack.c.b16 %v3582, %v3578
    %v3759 = vpack.c.b16 %v3583, %v3579
    %v3760 = vpack.c.b16 %v3588, %v3584
    %v3761 = vpack.c.b16 %v3589, %v3585
    %v3762 = vpack.c.b16 %v3590, %v3586
    %v3763 = vpack.c.b16 %v3591, %v3587
    %v3764 = vpack.c.b16 %v3596, %v3592
    %v3765 = vpack.c.b16 %v3597, %v3593
    %v3766 = vpack.c.b16 %v3598, %v3594
    %v3767 = vpack.c.b16 %v3599, %v3595
    %v3768 = vpack.c.b16 %v3604, %v3600
    %v3769 = vpack.c.b16 %v3605, %v3601
    %v3770 = vpack.c.b16 %v3606, %v3602
    %v3771 = vpack.c.b16 %v3607, %v3603
    %v3772 = vpack.c.b16 %v3612, %v3608
    %v3773 = vpack.c.b16 %v3613, %v3609
    %v3774 = vpack.c.b16 %v3614, %v3610
    %v3775 = vpack.c.b16 %v3615, %v3611
    %v3776 = vpack.c.b16 %v3620, %v3616
    %v3777 = vpack.c.b16 %v3621, %v3617
    %v3778 = vpack.c.b16 %v3622, %v3618
    %v3779 = vpack.c.b16 %v3623, %v3619
    %v3780 = vpack.c.b16 %v3628, %v3624
    %v3781 = vpack.c.b16 %v3629, %v3625
    %v3782 = vpack.c.b16 %v3630, %v3626
    %v3783 = vpack.c.b16 %v3631, %v3627
    %v3784 = vpack.c.b16 %v3636, %v3632
    %v3785 = vpack.c.b16 %v3637, %v3633
    %v3786 = vpack.c.b16 %v3638, %v3634
    %v3787 = vpack.c.b16 %v3639, %v3635
    %v3788 = vpack.c.b16 %v3644, %v3640
    %v3789 = vpack.c.b16 %v3645, %v3641
    %v3790 = vpack.c.b16 %v3646, %v3642
    %v3791 = vpack.c.b16 %v3647, %v3643
    %v3792 = vpack.c.b16 %v3652, %v3648
    %v3793 = vpack.c.b16 %v3653, %v3649
    %v3794 = vpack.c.b16 %v3654, %v3650
    %v3795 = vpack.c.b16 %v3655, %v3651
    %v3796 = vpack.c.b16 %v3660, %v3656
    %v3797 = vpack.c.b16 %v3661, %v3657
    %v3798 = vpack.c.b16 %v3662, %v3658
    %v3799 = vpack.c.b16 %v3663, %v3659
    %v3800 = vpack.c.b16 %v3668, %v3664
    %v3801 = vpack.c.b16 %v3669, %v3665
    %v3802 = vpack.c.b16 %v3670, %v3666
    %v3803 = vpack.c.b16 %v3671, %v3667
    %v3804 = vpack.c.b16 %v3676, %v3672
    %v3805 = vpack.c.b16 %v3677, %v3673
    %v3806 = vpack.c.b16 %v3678, %v3674
    %v3807 = vpack.c.b16 %v3679, %v3675
    %3936 = vmatpush.bf16.msra.mxu0 %v3708
    %3937 = vmatpush.bf16.msra.mxu0 %v3704
    %3938 = vmatpush.bf16.msra.mxu0 %v3700
    %3939 = vmatpush.bf16.msra.mxu0 %v3696
    %3940 = vmatpush.bf16.msra.mxu0 %v3692
    %3941 = vmatpush.bf16.msra.mxu0 %v3688
    %3942 = vmatpush.bf16.msra.mxu0 %v3684
    %3943 = vmatpush.bf16.msra.mxu0 %v3680
    %3944 = vmatmul.bf16.gmra.mxu0 %v3154
    %v3945 = vpop.f32.mrf.mxu0
    %v3946 = vadd.f32 %v3288, %v3945
    %v3947 = vpop.f32.mrf.mxu0
    %3948 = vdwg.mxu0
    %3949 = vmatpush.bf16.msra.mxu0 %v3740
    %3950 = vmatpush.bf16.msra.mxu0 %v3736
    %3951 = vmatpush.bf16.msra.mxu0 %v3732
    %3952 = vmatpush.bf16.msra.mxu0 %v3728
    %3953 = vmatpush.bf16.msra.mxu0 %v3724
    %3954 = vmatpush.bf16.msra.mxu0 %v3720
    %3955 = vmatpush.bf16.msra.mxu0 %v3716
    %3956 = vmatpush.bf16.msra.mxu0 %v3712
    %3957 = vmatmul.bf16.gmra.mxu0 %v3155
    %v3958 = vpop.f32.mrf.mxu0
    %v3959 = vadd.f32 %v3946, %v3958
    %v3960 = vpop.f32.mrf.mxu0
    %3961 = vdwg.mxu0
    %3962 = vmatpush.bf16.msra.mxu0 %v3772
    %3963 = vmatpush.bf16.msra.mxu0 %v3768
    %3964 = vmatpush.bf16.msra.mxu0 %v3764
    %3965 = vmatpush.bf16.msra.mxu0 %v3760
    %3966 = vmatpush.bf16.msra.mxu0 %v3756
    %3967 = vmatpush.bf16.msra.mxu0 %v3752
    %3968 = vmatpush.bf16.msra.mxu0 %v3748
    %3969 = vmatpush.bf16.msra.mxu0 %v3744
    %3970 = vmatmul.bf16.gmra.mxu0 %v3156
    %v3971 = vpop.f32.mrf.mxu0
    %v3972 = vadd.f32 %v3959, %v3971
    %v3973 = vpop.f32.mrf.mxu0
    %3974 = vdwg.mxu0
    %3975 = vmatpush.bf16.msra.mxu0 %v3804
    %3976 = vmatpush.bf16.msra.mxu0 %v3800
    %3977 = vmatpush.bf16.msra.mxu0 %v3796
    %3978 = vmatpush.bf16.msra.mxu0 %v3792
    %3979 = vmatpush.bf16.msra.mxu0 %v3788
    %3980 = vmatpush.bf16.msra.mxu0 %v3784
    %3981 = vmatpush.bf16.msra.mxu0 %v3780
    %3982 = vmatpush.bf16.msra.mxu0 %v3776
    %3983 = vmatmul.bf16.gmra.mxu0 %v3157
    %v3984 = vpop.f32.mrf.mxu0
    %v3985 = vadd.f32 %v3972, %v3984
    %v3986 = vpop.f32.mrf.mxu0
    %3987 = vdwg.mxu0
    %3988 = vmatpush.bf16.msra.mxu0 %v3709
    %3989 = vmatpush.bf16.msra.mxu0 %v3705
    %3990 = vmatpush.bf16.msra.mxu0 %v3701
    %3991 = vmatpush.bf16.msra.mxu0 %v3697
    %3992 = vmatpush.bf16.msra.mxu0 %v3693
    %3993 = vmatpush.bf16.msra.mxu0 %v3689
    %3994 = vmatpush.bf16.msra.mxu0 %v3685
    %3995 = vmatpush.bf16.msra.mxu0 %v3681
    %3996 = vmatmul.bf16.gmra.mxu0 %v3154
    %v3997 = vpop.f32.mrf.mxu0
    %v3998 = vadd.f32 %v3289, %v3997
    %v3999 = vpop.f32.mrf.mxu0
    %4000 = vdwg.mxu0
    %4001 = vmatpush.bf16.msra.mxu0 %v3741
    %4002 = vmatpush.bf16.msra.mxu0 %v3737
    %4003 = vmatpush.bf16.msra.mxu0 %v3733
    %4004 = vmatpush.bf16.msra.mxu0 %v3729
    %4005 = vmatpush.bf16.msra.mxu0 %v3725
    %4006 = vmatpush.bf16.msra.mxu0 %v3721
    %4007 = vmatpush.bf16.msra.mxu0 %v3717
    %4008 = vmatpush.bf16.msra.mxu0 %v3713
    %4009 = vmatmul.bf16.gmra.mxu0 %v3155
    %v4010 = vpop.f32.mrf.mxu0
    %v4011 = vadd.f32 %v3998, %v4010
    %v4012 = vpop.f32.mrf.mxu0
    %4013 = vdwg.mxu0
    %4014 = vmatpush.bf16.msra.mxu0 %v3773
    %4015 = vmatpush.bf16.msra.mxu0 %v3769
    %4016 = vmatpush.bf16.msra.mxu0 %v3765
    %4017 = vmatpush.bf16.msra.mxu0 %v3761
    %4018 = vmatpush.bf16.msra.mxu0 %v3757
    %4019 = vmatpush.bf16.msra.mxu0 %v3753
    %4020 = vmatpush.bf16.msra.mxu0 %v3749
    %4021 = vmatpush.bf16.msra.mxu0 %v3745
    %4022 = vmatmul.bf16.gmra.mxu0 %v3156
    %v4023 = vpop.f32.mrf.mxu0
    %v4024 = vadd.f32 %v4011, %v4023
    %v4025 = vpop.f32.mrf.mxu0
    %4026 = vdwg.mxu0
    %4027 = vmatpush.bf16.msra.mxu0 %v3805
    %4028 = vmatpush.bf16.msra.mxu0 %v3801
    %4029 = vmatpush.bf16.msra.mxu0 %v3797
    %4030 = vmatpush.bf16.msra.mxu0 %v3793
    %4031 = vmatpush.bf16.msra.mxu0 %v3789
    %4032 = vmatpush.bf16.msra.mxu0 %v3785
    %4033 = vmatpush.bf16.msra.mxu0 %v3781
    %4034 = vmatpush.bf16.msra.mxu0 %v3777
    %4035 = vmatmul.bf16.gmra.mxu0 %v3157
    %v4036 = vpop.f32.mrf.mxu0
    %v4037 = vadd.f32 %v4024, %v4036
    %v4038 = vpop.f32.mrf.mxu0
    %4039 = vdwg.mxu0
    %4040 = vmatpush.bf16.msra.mxu0 %v3710
    %4041 = vmatpush.bf16.msra.mxu0 %v3706
    %4042 = vmatpush.bf16.msra.mxu0 %v3702
    %4043 = vmatpush.bf16.msra.mxu0 %v3698
    %4044 = vmatpush.bf16.msra.mxu0 %v3694
    %4045 = vmatpush.bf16.msra.mxu0 %v3690
    %4046 = vmatpush.bf16.msra.mxu0 %v3686
    %4047 = vmatpush.bf16.msra.mxu0 %v3682
    %4048 = vmatmul.bf16.gmra.mxu0 %v3154
    %v4049 = vpop.f32.mrf.mxu0
    %v4050 = vadd.f32 %v3290, %v4049
    %v4051 = vpop.f32.mrf.mxu0
    %4052 = vdwg.mxu0
    %4053 = vmatpush.bf16.msra.mxu0 %v3742
    %4054 = vmatpush.bf16.msra.mxu0 %v3738
    %4055 = vmatpush.bf16.msra.mxu0 %v3734
    %4056 = vmatpush.bf16.msra.mxu0 %v3730
    %4057 = vmatpush.bf16.msra.mxu0 %v3726
    %4058 = vmatpush.bf16.msra.mxu0 %v3722
    %4059 = vmatpush.bf16.msra.mxu0 %v3718
    %4060 = vmatpush.bf16.msra.mxu0 %v3714
    %4061 = vmatmul.bf16.gmra.mxu0 %v3155
    %v4062 = vpop.f32.mrf.mxu0
    %v4063 = vadd.f32 %v4050, %v4062
    %v4064 = vpop.f32.mrf.mxu0
    %4065 = vdwg.mxu0
    %4066 = vmatpush.bf16.msra.mxu0 %v3774
    %4067 = vmatpush.bf16.msra.mxu0 %v3770
    %4068 = vmatpush.bf16.msra.mxu0 %v3766
    %4069 = vmatpush.bf16.msra.mxu0 %v3762
    %4070 = vmatpush.bf16.msra.mxu0 %v3758
    %4071 = vmatpush.bf16.msra.mxu0 %v3754
    %4072 = vmatpush.bf16.msra.mxu0 %v3750
    %4073 = vmatpush.bf16.msra.mxu0 %v3746
    %4074 = vmatmul.bf16.gmra.mxu0 %v3156
    %v4075 = vpop.f32.mrf.mxu0
    %v4076 = vadd.f32 %v4063, %v4075
    %v4077 = vpop.f32.mrf.mxu0
    %4078 = vdwg.mxu0
    %4079 = vmatpush.bf16.msra.mxu0 %v3806
    %4080 = vmatpush.bf16.msra.mxu0 %v3802
    %4081 = vmatpush.bf16.msra.mxu0 %v3798
    %4082 = vmatpush.bf16.msra.mxu0 %v3794
    %4083 = vmatpush.bf16.msra.mxu0 %v3790
    %4084 = vmatpush.bf16.msra.mxu0 %v3786
    %4085 = vmatpush.bf16.msra.mxu0 %v3782
    %4086 = vmatpush.bf16.msra.mxu0 %v3778
    %4087 = vmatmul.bf16.gmra.mxu0 %v3157
    %v4088 = vpop.f32.mrf.mxu0
    %v4089 = vadd.f32 %v4076, %v4088
    %v4090 = vpop.f32.mrf.mxu0
    %4091 = vdwg.mxu0
    %4092 = vmatpush.bf16.msra.mxu0 %v3711
    %4093 = vmatpush.bf16.msra.mxu0 %v3707
    %4094 = vmatpush.bf16.msra.mxu0 %v3703
    %4095 = vmatpush.bf16.msra.mxu0 %v3699
    %4096 = vmatpush.bf16.msra.mxu0 %v3695
    %4097 = vmatpush.bf16.msra.mxu0 %v3691
    %4098 = vmatpush.bf16.msra.mxu0 %v3687
    %4099 = vmatpush.bf16.msra.mxu0 %v3683
    %4100 = vmatmul.bf16.gmra.mxu0 %v3154
    %v4101 = vpop.f32.mrf.mxu0
    %v4102 = vadd.f32 %v3291, %v4101
    %v4103 = vpop.f32.mrf.mxu0
    %4104 = vdwg.mxu0
    %4105 = vmatpush.bf16.msra.mxu0 %v3743
    %4106 = vmatpush.bf16.msra.mxu0 %v3739
    %4107 = vmatpush.bf16.msra.mxu0 %v3735
    %4108 = vmatpush.bf16.msra.mxu0 %v3731
    %4109 = vmatpush.bf16.msra.mxu0 %v3727
    %4110 = vmatpush.bf16.msra.mxu0 %v3723
    %4111 = vmatpush.bf16.msra.mxu0 %v3719
    %4112 = vmatpush.bf16.msra.mxu0 %v3715
    %4113 = vmatmul.bf16.gmra.mxu0 %v3155
    %v4114 = vpop.f32.mrf.mxu0
    %v4115 = vadd.f32 %v4102, %v4114
    %v4116 = vpop.f32.mrf.mxu0
    %4117 = vdwg.mxu0
    %4118 = vmatpush.bf16.msra.mxu0 %v3775
    %4119 = vmatpush.bf16.msra.mxu0 %v3771
    %4120 = vmatpush.bf16.msra.mxu0 %v3767
    %4121 = vmatpush.bf16.msra.mxu0 %v3763
    %4122 = vmatpush.bf16.msra.mxu0 %v3759
    %4123 = vmatpush.bf16.msra.mxu0 %v3755
    %4124 = vmatpush.bf16.msra.mxu0 %v3751
    %4125 = vmatpush.bf16.msra.mxu0 %v3747
    %4126 = vmatmul.bf16.gmra.mxu0 %v3156
    %v4127 = vpop.f32.mrf.mxu0
    %v4128 = vadd.f32 %v4115, %v4127
    %v4129 = vpop.f32.mrf.mxu0
    %4130 = vdwg.mxu0
    %4131 = vmatpush.bf16.msra.mxu0 %v3807
    %4132 = vmatpush.bf16.msra.mxu0 %v3803
    %4133 = vmatpush.bf16.msra.mxu0 %v3799
    %4134 = vmatpush.bf16.msra.mxu0 %v3795
    %4135 = vmatpush.bf16.msra.mxu0 %v3791
    %4136 = vmatpush.bf16.msra.mxu0 %v3787
    %4137 = vmatpush.bf16.msra.mxu0 %v3783
    %4138 = vmatpush.bf16.msra.mxu0 %v3779
    %4139 = vmatmul.bf16.gmra.mxu0 %v3157
    %v4140 = vpop.f32.mrf.mxu0
    %v4141 = vadd.f32 %v4128, %v4140
    %v4142 = vpop.f32.mrf.mxu0
    %4143 = vdwg.mxu0
    %v4144 = vmax.f32 %v3985, 0.0
    %v4145 = vmax.f32 %v4037, 0.0
    %v4146 = vmax.f32 %v4089, 0.0
    %v4147 = vmax.f32 %v4141, 0.0
    %v4148 = vpack.c.bf16 %v4144, %v4144
    %v4149 = vpack.c.bf16 %v4145, %v4145
    %v4150 = vpack.c.bf16 %v4146, %v4146
    %v4151 = vpack.c.bf16 %v4147, %v4147
    %v4152 = vld [vmem:[#allocation11] sm:$0xff]
    %v4153 = vld [vmem:[#allocation11 + $0x8] sm:$0xff]
    %v4154 = vld [vmem:[#allocation11 + $0x10] sm:$0xf]
    %v4155 = vld [vmem:[#allocation11 + $0x14] sm:$0xff]
    %v4156 = vld [vmem:[#allocation11 + $0x1c] sm:$0xff]
    %v4157 = vld [vmem:[#allocation11 + $0x24] sm:$0xf]
    %v4158 = vld [vmem:[#allocation11 + $0x28] sm:$0xff]
    %v4159 = vld [vmem:[#allocation11 + $0x30] sm:$0xff]
    %v4160 = vld [vmem:[#allocation11 + $0x38] sm:$0xf]
    %v4161 = vld [vmem:[#allocation11 + $0x3c] sm:$0xff]
    %v4162 = vld [vmem:[#allocation11 + $0x44] sm:$0xff]
    %v4163 = vld [vmem:[#allocation11 + $0x4c] sm:$0xf]
    %v4164 = vld [vmem:[#allocation11 + $0x50] sm:$0xff]
    %v4165 = vld [vmem:[#allocation11 + $0x58] sm:$0xff]
    %v4166 = vld [vmem:[#allocation11 + $0x60] sm:$0xf]
    %v4167 = vld [vmem:[#allocation11 + $0x64] sm:$0xff]
    %v4168 = vld [vmem:[#allocation11 + $0x6c] sm:$0xff]
    %v4169 = vld [vmem:[#allocation11 + $0x74] sm:$0xf]
    %v4170 = vld [vmem:[#allocation11 + $0x78] sm:$0xff]
    %v4171 = vld [vmem:[#allocation11 + $0x80] sm:$0xff]
    %v4172 = vld [vmem:[#allocation11 + $0x88] sm:$0xf]
    %v4173 = vld [vmem:[#allocation11 + $0x8c] sm:$0xff]
    %v4174 = vld [vmem:[#allocation11 + $0x94] sm:$0xff]
    %v4175 = vld [vmem:[#allocation11 + $0x9c] sm:$0xf]
    %v4176 = vld [vmem:[#allocation11 + $0xa0] sm:$0xff]
    %v4177 = vld [vmem:[#allocation11 + $0xa8] sm:$0xff]
    %v4178 = vld [vmem:[#allocation11 + $0xb0] sm:$0xf]
    %v4179 = vld [vmem:[#allocation11 + $0xb4] sm:$0xff]
    %v4180 = vld [vmem:[#allocation11 + $0xbc] sm:$0xff]
    %v4181 = vld [vmem:[#allocation11 + $0xc4] sm:$0xf]
    %v4182 = vld [vmem:[#allocation11 + $0xc8] sm:$0xff]
    %v4183 = vld [vmem:[#allocation11 + $0xd0] sm:$0xff]
    %v4184 = vld [vmem:[#allocation11 + $0xd8] sm:$0xf]
    %v4185 = vld [vmem:[#allocation11 + $0xdc] sm:$0xff]
    %v4186 = vld [vmem:[#allocation11 + $0xe4] sm:$0xff]
    %v4187 = vld [vmem:[#allocation11 + $0xec] sm:$0xf]
    %v4188 = vld [vmem:[#allocation11 + $0xf0] sm:$0xff]
    %v4189 = vld [vmem:[#allocation11 + $0xf8] sm:$0xff]
    %v4190 = vld [vmem:[#allocation11 + $0x100] sm:$0xf]
    %v4191 = vld [vmem:[#allocation11 + $0x104] sm:$0xff]
    %v4192 = vld [vmem:[#allocation11 + $0x10c] sm:$0xff]
    %v4193 = vld [vmem:[#allocation11 + $0x114] sm:$0xf]
    %v4194 = vld [vmem:[#allocation11 + $0x118] sm:$0xff]
    %v4195 = vld [vmem:[#allocation11 + $0x120] sm:$0xff]
    %v4196 = vld [vmem:[#allocation11 + $0x128] sm:$0xf]
    %v4197 = vld [vmem:[#allocation11 + $0x12c] sm:$0xff]
    %v4198 = vld [vmem:[#allocation11 + $0x134] sm:$0xff]
    %v4199 = vld [vmem:[#allocation11 + $0x13c] sm:$0xf]
    %v4200 = vld [vmem:[#allocation11 + $0x140] sm:$0xff]
    %v4201 = vld [vmem:[#allocation11 + $0x148] sm:$0xff]
    %v4202 = vld [vmem:[#allocation11 + $0x150] sm:$0xf]
    %v4203 = vld [vmem:[#allocation11 + $0x154] sm:$0xff]
    %v4204 = vld [vmem:[#allocation11 + $0x15c] sm:$0xff]
    %v4205 = vld [vmem:[#allocation11 + $0x164] sm:$0xf]
    %v4206 = vld [vmem:[#allocation11 + $0x168] sm:$0xff]
    %v4207 = vld [vmem:[#allocation11 + $0x170] sm:$0xff]
    %v4208 = vld [vmem:[#allocation11 + $0x178] sm:$0xf]
    %v4209 = vld [vmem:[#allocation11 + $0x17c] sm:$0xff]
    %v4210 = vld [vmem:[#allocation11 + $0x184] sm:$0xff]
    %v4211 = vld [vmem:[#allocation11 + $0x18c] sm:$0xf]
    %v4212 = vld [vmem:[#allocation11 + $0x190] sm:$0xff]
    %v4213 = vld [vmem:[#allocation11 + $0x198] sm:$0xff]
    %v4214 = vld [vmem:[#allocation11 + $0x1a0] sm:$0xf]
    %v4215 = vld [vmem:[#allocation11 + $0x1a4] sm:$0xff]
    %v4216 = vld [vmem:[#allocation11 + $0x1ac] sm:$0xff]
    %v4217 = vld [vmem:[#allocation11 + $0x1b4] sm:$0xf]
    %v4218 = vld [vmem:[#allocation11 + $0x1b8] sm:$0xff]
    %v4219 = vld [vmem:[#allocation11 + $0x1c0] sm:$0xff]
    %v4220 = vld [vmem:[#allocation11 + $0x1c8] sm:$0xf]
    %v4221 = vld [vmem:[#allocation11 + $0x1cc] sm:$0xff]
    %v4222 = vld [vmem:[#allocation11 + $0x1d4] sm:$0xff]
    %v4223 = vld [vmem:[#allocation11 + $0x1dc] sm:$0xf]
    %v4224 = vld [vmem:[#allocation11 + $0x1e0] sm:$0xff]
    %v4225 = vld [vmem:[#allocation11 + $0x1e8] sm:$0xff]
    %v4226 = vld [vmem:[#allocation11 + $0x1f0] sm:$0xf]
    %v4227 = vld [vmem:[#allocation11 + $0x1f4] sm:$0xff]
    %v4228 = vld [vmem:[#allocation11 + $0x1fc] sm:$0xff]
    %v4229 = vld [vmem:[#allocation11 + $0x204] sm:$0xf]
    %v4230 = vld [vmem:[#allocation11 + $0x208] sm:$0xff]
    %v4231 = vld [vmem:[#allocation11 + $0x210] sm:$0xff]
    %v4232 = vld [vmem:[#allocation11 + $0x218] sm:$0xf]
    %v4233 = vld [vmem:[#allocation11 + $0x21c] sm:$0xff]
    %v4234 = vld [vmem:[#allocation11 + $0x224] sm:$0xff]
    %v4235 = vld [vmem:[#allocation11 + $0x22c] sm:$0xf]
    %v4236 = vld [vmem:[#allocation11 + $0x230] sm:$0xff]
    %v4237 = vld [vmem:[#allocation11 + $0x238] sm:$0xff]
    %v4238 = vld [vmem:[#allocation11 + $0x240] sm:$0xf]
    %v4239 = vld [vmem:[#allocation11 + $0x244] sm:$0xff]
    %v4240 = vld [vmem:[#allocation11 + $0x24c] sm:$0xff]
    %v4241 = vld [vmem:[#allocation11 + $0x254] sm:$0xf]
    %v4242 = vld [vmem:[#allocation11 + $0x258] sm:$0xff]
    %v4243 = vld [vmem:[#allocation11 + $0x260] sm:$0xff]
    %v4244 = vld [vmem:[#allocation11 + $0x268] sm:$0xf]
    %v4245 = vld [vmem:[#allocation11 + $0x26c] sm:$0xff]
    %v4246 = vld [vmem:[#allocation11 + $0x274] sm:$0xff]
    %v4247 = vld [vmem:[#allocation11 + $0x27c] sm:$0xf]
    %v4248 = vld [vmem:[#allocation11 + $0x280] sm:$0xff]
    %v4249 = vld [vmem:[#allocation11 + $0x288] sm:$0xff]
    %v4250 = vld [vmem:[#allocation11 + $0x290] sm:$0xf]
    %v4251 = vld [vmem:[#allocation11 + $0x294] sm:$0xff]
    %v4252 = vld [vmem:[#allocation11 + $0x29c] sm:$0xff]
    %v4253 = vld [vmem:[#allocation11 + $0x2a4] sm:$0xf]
    %v4254 = vld [vmem:[#allocation11 + $0x2a8] sm:$0xff]
    %v4255 = vld [vmem:[#allocation11 + $0x2b0] sm:$0xff]
    %v4256 = vld [vmem:[#allocation11 + $0x2b8] sm:$0xf]
    %v4257 = vld [vmem:[#allocation11 + $0x2bc] sm:$0xff]
    %v4258 = vld [vmem:[#allocation11 + $0x2c4] sm:$0xff]
    %v4259 = vld [vmem:[#allocation11 + $0x2cc] sm:$0xf]
    %v4260 = vld [vmem:[#allocation11 + $0x2d0] sm:$0xff]
    %v4261 = vld [vmem:[#allocation11 + $0x2d8] sm:$0xff]
    %v4262 = vld [vmem:[#allocation11 + $0x2e0] sm:$0xf]
    %v4263 = vld [vmem:[#allocation11 + $0x2e4] sm:$0xff]
    %v4264 = vld [vmem:[#allocation11 + $0x2ec] sm:$0xff]
    %v4265 = vld [vmem:[#allocation11 + $0x2f4] sm:$0xf]
    %v4266 = vld [vmem:[#allocation11 + $0x2f8] sm:$0xff]
    %v4267 = vld [vmem:[#allocation11 + $0x300] sm:$0xff]
    %v4268 = vld [vmem:[#allocation11 + $0x308] sm:$0xf]
    %v4269 = vld [vmem:[#allocation11 + $0x30c] sm:$0xff]
    %v4270 = vld [vmem:[#allocation11 + $0x314] sm:$0xff]
    %v4271 = vld [vmem:[#allocation11 + $0x31c] sm:$0xf]
    %v4272 = vld [vmem:[#allocation11 + $0x320] sm:$0xff]
    %v4273 = vld [vmem:[#allocation11 + $0x328] sm:$0xff]
    %v4274 = vld [vmem:[#allocation11 + $0x330] sm:$0xf]
    %v4275 = vld [vmem:[#allocation11 + $0x334] sm:$0xff]
    %v4276 = vld [vmem:[#allocation11 + $0x33c] sm:$0xff]
    %v4277 = vld [vmem:[#allocation11 + $0x344] sm:$0xf]
    %v4278 = vld [vmem:[#allocation11 + $0x348] sm:$0xff]
    %v4279 = vld [vmem:[#allocation11 + $0x350] sm:$0xff]
    %v4280 = vld [vmem:[#allocation11 + $0x358] sm:$0xf]
    %v4281 = vld [vmem:[#allocation11 + $0x35c] sm:$0xff]
    %v4282 = vld [vmem:[#allocation11 + $0x364] sm:$0xff]
    %v4283 = vld [vmem:[#allocation11 + $0x36c] sm:$0xf]
    %v4284 = vld [vmem:[#allocation11 + $0x370] sm:$0xff]
    %v4285 = vld [vmem:[#allocation11 + $0x378] sm:$0xff]
    %v4286 = vld [vmem:[#allocation11 + $0x380] sm:$0xf]
    %v4287 = vld [vmem:[#allocation11 + $0x384] sm:$0xff]
    %v4288 = vld [vmem:[#allocation11 + $0x38c] sm:$0xff]
    %v4289 = vld [vmem:[#allocation11 + $0x394] sm:$0xf]
    %v4290 = vld [vmem:[#allocation11 + $0x398] sm:$0xff]
    %v4291 = vld [vmem:[#allocation11 + $0x3a0] sm:$0xff]
    %v4292 = vld [vmem:[#allocation11 + $0x3a8] sm:$0xf]
    %v4293 = vld [vmem:[#allocation11 + $0x3ac] sm:$0xff]
    %v4294 = vld [vmem:[#allocation11 + $0x3b4] sm:$0xff]
    %v4295 = vld [vmem:[#allocation11 + $0x3bc] sm:$0xf]
    %v4296 = vld [vmem:[#allocation11 + $0x3c0] sm:$0xff]
    %v4297 = vld [vmem:[#allocation11 + $0x3c8] sm:$0xff]
    %v4298 = vld [vmem:[#allocation11 + $0x3d0] sm:$0xf]
    %v4299 = vld [vmem:[#allocation11 + $0x3d4] sm:$0xff]
    %v4300 = vld [vmem:[#allocation11 + $0x3dc] sm:$0xff]
    %v4301 = vld [vmem:[#allocation11 + $0x3e4] sm:$0xf]
    %v4302 = vld [vmem:[#allocation11 + $0x3e8] sm:$0xff]
    %v4303 = vld [vmem:[#allocation11 + $0x3f0] sm:$0xff]
    %v4304 = vld [vmem:[#allocation11 + $0x3f8] sm:$0xf]
    %v4305 = vld [vmem:[#allocation11 + $0x3fc] sm:$0xff]
    %v4306 = vld [vmem:[#allocation11 + $0x404] sm:$0xff]
    %v4307 = vld [vmem:[#allocation11 + $0x40c] sm:$0xf]
    %v4308 = vld [vmem:[#allocation11 + $0x410] sm:$0xff]
    %v4309 = vld [vmem:[#allocation11 + $0x418] sm:$0xff]
    %v4310 = vld [vmem:[#allocation11 + $0x420] sm:$0xf]
    %v4311 = vld [vmem:[#allocation11 + $0x424] sm:$0xff]
    %v4312 = vld [vmem:[#allocation11 + $0x42c] sm:$0xff]
    %v4313 = vld [vmem:[#allocation11 + $0x434] sm:$0xf]
    %v4314 = vld [vmem:[#allocation11 + $0x438] sm:$0xff]
    %v4315 = vld [vmem:[#allocation11 + $0x440] sm:$0xff]
    %v4316 = vld [vmem:[#allocation11 + $0x448] sm:$0xf]
    %v4317 = vld [vmem:[#allocation11 + $0x44c] sm:$0xff]
    %v4318 = vld [vmem:[#allocation11 + $0x454] sm:$0xff]
    %v4319 = vld [vmem:[#allocation11 + $0x45c] sm:$0xf]
    %v4320 = vld [vmem:[#allocation11 + $0x460] sm:$0xff]
    %v4321 = vld [vmem:[#allocation11 + $0x468] sm:$0xff]
    %v4322 = vld [vmem:[#allocation11 + $0x470] sm:$0xf]
    %v4323 = vld [vmem:[#allocation11 + $0x474] sm:$0xff]
    %v4324 = vld [vmem:[#allocation11 + $0x47c] sm:$0xff]
    %v4325 = vld [vmem:[#allocation11 + $0x484] sm:$0xf]
    %v4326 = vld [vmem:[#allocation11 + $0x488] sm:$0xff]
    %v4327 = vld [vmem:[#allocation11 + $0x490] sm:$0xff]
    %v4328 = vld [vmem:[#allocation11 + $0x498] sm:$0xf]
    %v4329 = vld [vmem:[#allocation11 + $0x49c] sm:$0xff]
    %v4330 = vld [vmem:[#allocation11 + $0x4a4] sm:$0xff]
    %v4331 = vld [vmem:[#allocation11 + $0x4ac] sm:$0xf]
    %v4332 = vld [vmem:[#allocation11 + $0x4b0] sm:$0xff]
    %v4333 = vld [vmem:[#allocation11 + $0x4b8] sm:$0xff]
    %v4334 = vld [vmem:[#allocation11 + $0x4c0] sm:$0xf]
    %v4335 = vld [vmem:[#allocation11 + $0x4c4] sm:$0xff]
    %v4336 = vld [vmem:[#allocation11 + $0x4cc] sm:$0xff]
    %v4337 = vld [vmem:[#allocation11 + $0x4d4] sm:$0xf]
    %v4338 = vld [vmem:[#allocation11 + $0x4d8] sm:$0xff]
    %v4339 = vld [vmem:[#allocation11 + $0x4e0] sm:$0xff]
    %v4340 = vld [vmem:[#allocation11 + $0x4e8] sm:$0xf]
    %v4341 = vld [vmem:[#allocation11 + $0x4ec] sm:$0xff]
    %v4342 = vld [vmem:[#allocation11 + $0x4f4] sm:$0xff]
    %v4343 = vld [vmem:[#allocation11 + $0x4fc] sm:$0xf]
    %v4344 = vld [vmem:[%s13] sm:$0x1f]
    %v4346 = vperm.slane %v4344, 0
    %v4347 = vperm.slane %v4344, 1
    %v4348 = vperm.slane %v4344, 2
    %v4349 = vperm.slane %v4344, 3
    %v4350 = vperm.slane %v4344, 4
    %v4548 = vunpack.c.l.b16 %v4152
    %v4549 = vunpack.c.h.b16 %v4152
    %v4550 = vunpack.c.l.b16 %v4153
    %v4551 = vunpack.c.h.b16 %v4153
    %v4552 = vunpack.c.l.b16 %v4154
    %v4553 = vunpack.c.l.b16 %v4155
    %v4554 = vunpack.c.h.b16 %v4155
    %v4555 = vunpack.c.l.b16 %v4156
    %v4556 = vunpack.c.h.b16 %v4156
    %v4557 = vunpack.c.l.b16 %v4157
    %v4558 = vunpack.c.l.b16 %v4158
    %v4559 = vunpack.c.h.b16 %v4158
    %v4560 = vunpack.c.l.b16 %v4159
    %v4561 = vunpack.c.h.b16 %v4159
    %v4562 = vunpack.c.l.b16 %v4160
    %v4563 = vunpack.c.l.b16 %v4161
    %v4564 = vunpack.c.h.b16 %v4161
    %v4565 = vunpack.c.l.b16 %v4162
    %v4566 = vunpack.c.h.b16 %v4162
    %v4567 = vunpack.c.l.b16 %v4163
    %v4568 = vunpack.c.l.b16 %v4164
    %v4569 = vunpack.c.h.b16 %v4164
    %v4570 = vunpack.c.l.b16 %v4165
    %v4571 = vunpack.c.h.b16 %v4165
    %v4572 = vunpack.c.l.b16 %v4166
    %v4573 = vunpack.c.l.b16 %v4167
    %v4574 = vunpack.c.h.b16 %v4167
    %v4575 = vunpack.c.l.b16 %v4168
    %v4576 = vunpack.c.h.b16 %v4168
    %v4577 = vunpack.c.l.b16 %v4169
    %v4578 = vunpack.c.l.b16 %v4170
    %v4579 = vunpack.c.h.b16 %v4170
    %v4580 = vunpack.c.l.b16 %v4171
    %v4581 = vunpack.c.h.b16 %v4171
    %v4582 = vunpack.c.l.b16 %v4172
    %v4583 = vunpack.c.l.b16 %v4173
    %v4584 = vunpack.c.h.b16 %v4173
    %v4585 = vunpack.c.l.b16 %v4174
    %v4586 = vunpack.c.h.b16 %v4174
    %v4587 = vunpack.c.l.b16 %v4175
    %v4588 = vunpack.c.l.b16 %v4176
    %v4589 = vunpack.c.h.b16 %v4176
    %v4590 = vunpack.c.l.b16 %v4177
    %v4591 = vunpack.c.h.b16 %v4177
    %v4592 = vunpack.c.l.b16 %v4178
    %v4593 = vunpack.c.l.b16 %v4179
    %v4594 = vunpack.c.h.b16 %v4179
    %v4595 = vunpack.c.l.b16 %v4180
    %v4596 = vunpack.c.h.b16 %v4180
    %v4597 = vunpack.c.l.b16 %v4181
    %v4598 = vunpack.c.l.b16 %v4182
    %v4599 = vunpack.c.h.b16 %v4182
    %v4600 = vunpack.c.l.b16 %v4183
    %v4601 = vunpack.c.h.b16 %v4183
    %v4602 = vunpack.c.l.b16 %v4184
    %v4603 = vunpack.c.l.b16 %v4185
    %v4604 = vunpack.c.h.b16 %v4185
    %v4605 = vunpack.c.l.b16 %v4186
    %v4606 = vunpack.c.h.b16 %v4186
    %v4607 = vunpack.c.l.b16 %v4187
    %v4608 = vunpack.c.l.b16 %v4188
    %v4609 = vunpack.c.h.b16 %v4188
    %v4610 = vunpack.c.l.b16 %v4189
    %v4611 = vunpack.c.h.b16 %v4189
    %v4612 = vunpack.c.l.b16 %v4190
    %v4613 = vunpack.c.l.b16 %v4191
    %v4614 = vunpack.c.h.b16 %v4191
    %v4615 = vunpack.c.l.b16 %v4192
    %v4616 = vunpack.c.h.b16 %v4192
    %v4617 = vunpack.c.l.b16 %v4193
    %v4618 = vunpack.c.l.b16 %v4194
    %v4619 = vunpack.c.h.b16 %v4194
    %v4620 = vunpack.c.l.b16 %v4195
    %v4621 = vunpack.c.h.b16 %v4195
    %v4622 = vunpack.c.l.b16 %v4196
    %v4623 = vunpack.c.l.b16 %v4197
    %v4624 = vunpack.c.h.b16 %v4197
    %v4625 = vunpack.c.l.b16 %v4198
    %v4626 = vunpack.c.h.b16 %v4198
    %v4627 = vunpack.c.l.b16 %v4199
    %v4628 = vunpack.c.l.b16 %v4200
    %v4629 = vunpack.c.h.b16 %v4200
    %v4630 = vunpack.c.l.b16 %v4201
    %v4631 = vunpack.c.h.b16 %v4201
    %v4632 = vunpack.c.l.b16 %v4202
    %v4633 = vunpack.c.l.b16 %v4203
    %v4634 = vunpack.c.h.b16 %v4203
    %v4635 = vunpack.c.l.b16 %v4204
    %v4636 = vunpack.c.h.b16 %v4204
    %v4637 = vunpack.c.l.b16 %v4205
    %v4638 = vunpack.c.l.b16 %v4206
    %v4639 = vunpack.c.h.b16 %v4206
    %v4640 = vunpack.c.l.b16 %v4207
    %v4641 = vunpack.c.h.b16 %v4207
    %v4642 = vunpack.c.l.b16 %v4208
    %v4643 = vunpack.c.l.b16 %v4209
    %v4644 = vunpack.c.h.b16 %v4209
    %v4645 = vunpack.c.l.b16 %v4210
    %v4646 = vunpack.c.h.b16 %v4210
    %v4647 = vunpack.c.l.b16 %v4211
    %v4648 = vunpack.c.l.b16 %v4212
    %v4649 = vunpack.c.h.b16 %v4212
    %v4650 = vunpack.c.l.b16 %v4213
    %v4651 = vunpack.c.h.b16 %v4213
    %v4652 = vunpack.c.l.b16 %v4214
    %v4653 = vunpack.c.l.b16 %v4215
    %v4654 = vunpack.c.h.b16 %v4215
    %v4655 = vunpack.c.l.b16 %v4216
    %v4656 = vunpack.c.h.b16 %v4216
    %v4657 = vunpack.c.l.b16 %v4217
    %v4658 = vunpack.c.l.b16 %v4218
    %v4659 = vunpack.c.h.b16 %v4218
    %v4660 = vunpack.c.l.b16 %v4219
    %v4661 = vunpack.c.h.b16 %v4219
    %v4662 = vunpack.c.l.b16 %v4220
    %v4663 = vunpack.c.l.b16 %v4221
    %v4664 = vunpack.c.h.b16 %v4221
    %v4665 = vunpack.c.l.b16 %v4222
    %v4666 = vunpack.c.h.b16 %v4222
    %v4667 = vunpack.c.l.b16 %v4223
    %v4668 = vunpack.c.l.b16 %v4224
    %v4669 = vunpack.c.h.b16 %v4224
    %v4670 = vunpack.c.l.b16 %v4225
    %v4671 = vunpack.c.h.b16 %v4225
    %v4672 = vunpack.c.l.b16 %v4226
    %v4673 = vunpack.c.l.b16 %v4227
    %v4674 = vunpack.c.h.b16 %v4227
    %v4675 = vunpack.c.l.b16 %v4228
    %v4676 = vunpack.c.h.b16 %v4228
    %v4677 = vunpack.c.l.b16 %v4229
    %v4678 = vunpack.c.l.b16 %v4230
    %v4679 = vunpack.c.h.b16 %v4230
    %v4680 = vunpack.c.l.b16 %v4231
    %v4681 = vunpack.c.h.b16 %v4231
    %v4682 = vunpack.c.l.b16 %v4232
    %v4683 = vunpack.c.l.b16 %v4233
    %v4684 = vunpack.c.h.b16 %v4233
    %v4685 = vunpack.c.l.b16 %v4234
    %v4686 = vunpack.c.h.b16 %v4234
    %v4687 = vunpack.c.l.b16 %v4235
    %v4688 = vunpack.c.l.b16 %v4236
    %v4689 = vunpack.c.h.b16 %v4236
    %v4690 = vunpack.c.l.b16 %v4237
    %v4691 = vunpack.c.h.b16 %v4237
    %v4692 = vunpack.c.l.b16 %v4238
    %v4693 = vunpack.c.l.b16 %v4239
    %v4694 = vunpack.c.h.b16 %v4239
    %v4695 = vunpack.c.l.b16 %v4240
    %v4696 = vunpack.c.h.b16 %v4240
    %v4697 = vunpack.c.l.b16 %v4241
    %v4698 = vunpack.c.l.b16 %v4242
    %v4699 = vunpack.c.h.b16 %v4242
    %v4700 = vunpack.c.l.b16 %v4243
    %v4701 = vunpack.c.h.b16 %v4243
    %v4702 = vunpack.c.l.b16 %v4244
    %v4703 = vunpack.c.l.b16 %v4245
    %v4704 = vunpack.c.h.b16 %v4245
    %v4705 = vunpack.c.l.b16 %v4246
    %v4706 = vunpack.c.h.b16 %v4246
    %v4707 = vunpack.c.l.b16 %v4247
    %v4708 = vunpack.c.l.b16 %v4248
    %v4709 = vunpack.c.h.b16 %v4248
    %v4710 = vunpack.c.l.b16 %v4249
    %v4711 = vunpack.c.h.b16 %v4249
    %v4712 = vunpack.c.l.b16 %v4250
    %v4713 = vunpack.c.l.b16 %v4251
    %v4714 = vunpack.c.h.b16 %v4251
    %v4715 = vunpack.c.l.b16 %v4252
    %v4716 = vunpack.c.h.b16 %v4252
    %v4717 = vunpack.c.l.b16 %v4253
    %v4718 = vunpack.c.l.b16 %v4254
    %v4719 = vunpack.c.h.b16 %v4254
    %v4720 = vunpack.c.l.b16 %v4255
    %v4721 = vunpack.c.h.b16 %v4255
    %v4722 = vunpack.c.l.b16 %v4256
    %v4723 = vunpack.c.l.b16 %v4257
    %v4724 = vunpack.c.h.b16 %v4257
    %v4725 = vunpack.c.l.b16 %v4258
    %v4726 = vunpack.c.h.b16 %v4258
    %v4727 = vunpack.c.l.b16 %v4259
    %v4728 = vunpack.c.l.b16 %v4260
    %v4729 = vunpack.c.h.b16 %v4260
    %v4730 = vunpack.c.l.b16 %v4261
    %v4731 = vunpack.c.h.b16 %v4261
    %v4732 = vunpack.c.l.b16 %v4262
    %v4733 = vunpack.c.l.b16 %v4263
    %v4734 = vunpack.c.h.b16 %v4263
    %v4735 = vunpack.c.l.b16 %v4264
    %v4736 = vunpack.c.h.b16 %v4264
    %v4737 = vunpack.c.l.b16 %v4265
    %v4738 = vunpack.c.l.b16 %v4266
    %v4739 = vunpack.c.h.b16 %v4266
    %v4740 = vunpack.c.l.b16 %v4267
    %v4741 = vunpack.c.h.b16 %v4267
    %v4742 = vunpack.c.l.b16 %v4268
    %v4743 = vunpack.c.l.b16 %v4269
    %v4744 = vunpack.c.h.b16 %v4269
    %v4745 = vunpack.c.l.b16 %v4270
    %v4746 = vunpack.c.h.b16 %v4270
    %v4747 = vunpack.c.l.b16 %v4271
    %v4748 = vunpack.c.l.b16 %v4272
    %v4749 = vunpack.c.h.b16 %v4272
    %v4750 = vunpack.c.l.b16 %v4273
    %v4751 = vunpack.c.h.b16 %v4273
    %v4752 = vunpack.c.l.b16 %v4274
    %v4753 = vunpack.c.l.b16 %v4275
    %v4754 = vunpack.c.h.b16 %v4275
    %v4755 = vunpack.c.l.b16 %v4276
    %v4756 = vunpack.c.h.b16 %v4276
    %v4757 = vunpack.c.l.b16 %v4277
    %v4758 = vunpack.c.l.b16 %v4278
    %v4759 = vunpack.c.h.b16 %v4278
    %v4760 = vunpack.c.l.b16 %v4279
    %v4761 = vunpack.c.h.b16 %v4279
    %v4762 = vunpack.c.l.b16 %v4280
    %v4763 = vunpack.c.l.b16 %v4281
    %v4764 = vunpack.c.h.b16 %v4281
    %v4765 = vunpack.c.l.b16 %v4282
    %v4766 = vunpack.c.h.b16 %v4282
    %v4767 = vunpack.c.l.b16 %v4283
    %v4768 = vunpack.c.l.b16 %v4284
    %v4769 = vunpack.c.h.b16 %v4284
    %v4770 = vunpack.c.l.b16 %v4285
    %v4771 = vunpack.c.h.b16 %v4285
    %v4772 = vunpack.c.l.b16 %v4286
    %v4773 = vunpack.c.l.b16 %v4287
    %v4774 = vunpack.c.h.b16 %v4287
    %v4775 = vunpack.c.l.b16 %v4288
    %v4776 = vunpack.c.h.b16 %v4288
    %v4777 = vunpack.c.l.b16 %v4289
    %v4778 = vunpack.c.l.b16 %v4290
    %v4779 = vunpack.c.h.b16 %v4290
    %v4780 = vunpack.c.l.b16 %v4291
    %v4781 = vunpack.c.h.b16 %v4291
    %v4782 = vunpack.c.l.b16 %v4292
    %v4783 = vunpack.c.l.b16 %v4293
    %v4784 = vunpack.c.h.b16 %v4293
    %v4785 = vunpack.c.l.b16 %v4294
    %v4786 = vunpack.c.h.b16 %v4294
    %v4787 = vunpack.c.l.b16 %v4295
    %v4788 = vunpack.c.l.b16 %v4296
    %v4789 = vunpack.c.h.b16 %v4296
    %v4790 = vunpack.c.l.b16 %v4297
    %v4791 = vunpack.c.h.b16 %v4297
    %v4792 = vunpack.c.l.b16 %v4298
    %v4793 = vunpack.c.l.b16 %v4299
    %v4794 = vunpack.c.h.b16 %v4299
    %v4795 = vunpack.c.l.b16 %v4300
    %v4796 = vunpack.c.h.b16 %v4300
    %v4797 = vunpack.c.l.b16 %v4301
    %v4798 = vunpack.c.l.b16 %v4302
    %v4799 = vunpack.c.h.b16 %v4302
    %v4800 = vunpack.c.l.b16 %v4303
    %v4801 = vunpack.c.h.b16 %v4303
    %v4802 = vunpack.c.l.b16 %v4304
    %v4803 = vunpack.c.l.b16 %v4305
    %v4804 = vunpack.c.h.b16 %v4305
    %v4805 = vunpack.c.l.b16 %v4306
    %v4806 = vunpack.c.h.b16 %v4306
    %v4807 = vunpack.c.l.b16 %v4307
    %v4808 = vunpack.c.l.b16 %v4308
    %v4809 = vunpack.c.h.b16 %v4308
    %v4810 = vunpack.c.l.b16 %v4309
    %v4811 = vunpack.c.h.b16 %v4309
    %v4812 = vunpack.c.l.b16 %v4310
    %v4813 = vunpack.c.l.b16 %v4311
    %v4814 = vunpack.c.h.b16 %v4311
    %v4815 = vunpack.c.l.b16 %v4312
    %v4816 = vunpack.c.h.b16 %v4312
    %v4817 = vunpack.c.l.b16 %v4313
    %v4818 = vunpack.c.l.b16 %v4314
    %v4819 = vunpack.c.h.b16 %v4314
    %v4820 = vunpack.c.l.b16 %v4315
    %v4821 = vunpack.c.h.b16 %v4315
    %v4822 = vunpack.c.l.b16 %v4316
    %v4823 = vunpack.c.l.b16 %v4317
    %v4824 = vunpack.c.h.b16 %v4317
    %v4825 = vunpack.c.l.b16 %v4318
    %v4826 = vunpack.c.h.b16 %v4318
    %v4827 = vunpack.c.l.b16 %v4319
    %v4828 = vunpack.c.l.b16 %v4320
    %v4829 = vunpack.c.h.b16 %v4320
    %v4830 = vunpack.c.l.b16 %v4321
    %v4831 = vunpack.c.h.b16 %v4321
    %v4832 = vunpack.c.l.b16 %v4322
    %v4833 = vunpack.c.l.b16 %v4323
    %v4834 = vunpack.c.h.b16 %v4323
    %v4835 = vunpack.c.l.b16 %v4324
    %v4836 = vunpack.c.h.b16 %v4324
    %v4837 = vunpack.c.l.b16 %v4325
    %v4838 = vunpack.c.l.b16 %v4326
    %v4839 = vunpack.c.h.b16 %v4326
    %v4840 = vunpack.c.l.b16 %v4327
    %v4841 = vunpack.c.h.b16 %v4327
    %v4842 = vunpack.c.l.b16 %v4328
    %v4843 = vunpack.c.l.b16 %v4329
    %v4844 = vunpack.c.h.b16 %v4329
    %v4845 = vunpack.c.l.b16 %v4330
    %v4846 = vunpack.c.h.b16 %v4330
    %v4847 = vunpack.c.l.b16 %v4331
    %v4848 = vunpack.c.l.b16 %v4332
    %v4849 = vunpack.c.h.b16 %v4332
    %v4850 = vunpack.c.l.b16 %v4333
    %v4851 = vunpack.c.h.b16 %v4333
    %v4852 = vunpack.c.l.b16 %v4334
    %v4853 = vunpack.c.l.b16 %v4335
    %v4854 = vunpack.c.h.b16 %v4335
    %v4855 = vunpack.c.l.b16 %v4336
    %v4856 = vunpack.c.h.b16 %v4336
    %v4857 = vunpack.c.l.b16 %v4337
    %v4858 = vunpack.c.l.b16 %v4338
    %v4859 = vunpack.c.h.b16 %v4338
    %v4860 = vunpack.c.l.b16 %v4339
    %v4861 = vunpack.c.h.b16 %v4339
    %v4862 = vunpack.c.l.b16 %v4340
    %v4863 = vunpack.c.l.b16 %v4341
    %v4864 = vunpack.c.h.b16 %v4341
    %v4865 = vunpack.c.l.b16 %v4342
    %v4866 = vunpack.c.h.b16 %v4342
    %v4867 = vunpack.c.l.b16 %v4343
    %v4868 = vpack.c.b16 %v4553, %v4548
    %v4869 = vpack.c.b16 %v4554, %v4549
    %v4870 = vpack.c.b16 %v4555, %v4550
    %v4871 = vpack.c.b16 %v4556, %v4551
    %v4872 = vpack.c.b16 %v4557, %v4552
    %v4873 = vpack.c.b16 %v4563, %v4558
    %v4874 = vpack.c.b16 %v4564, %v4559
    %v4875 = vpack.c.b16 %v4565, %v4560
    %v4876 = vpack.c.b16 %v4566, %v4561
    %v4877 = vpack.c.b16 %v4567, %v4562
    %v4878 = vpack.c.b16 %v4573, %v4568
    %v4879 = vpack.c.b16 %v4574, %v4569
    %v4880 = vpack.c.b16 %v4575, %v4570
    %v4881 = vpack.c.b16 %v4576, %v4571
    %v4882 = vpack.c.b16 %v4577, %v4572
    %v4883 = vpack.c.b16 %v4583, %v4578
    %v4884 = vpack.c.b16 %v4584, %v4579
    %v4885 = vpack.c.b16 %v4585, %v4580
    %v4886 = vpack.c.b16 %v4586, %v4581
    %v4887 = vpack.c.b16 %v4587, %v4582
    %v4888 = vpack.c.b16 %v4593, %v4588
    %v4889 = vpack.c.b16 %v4594, %v4589
    %v4890 = vpack.c.b16 %v4595, %v4590
    %v4891 = vpack.c.b16 %v4596, %v4591
    %v4892 = vpack.c.b16 %v4597, %v4592
    %v4893 = vpack.c.b16 %v4603, %v4598
    %v4894 = vpack.c.b16 %v4604, %v4599
    %v4895 = vpack.c.b16 %v4605, %v4600
    %v4896 = vpack.c.b16 %v4606, %v4601
    %v4897 = vpack.c.b16 %v4607, %v4602
    %v4898 = vpack.c.b16 %v4613, %v4608
    %v4899 = vpack.c.b16 %v4614, %v4609
    %v4900 = vpack.c.b16 %v4615, %v4610
    %v4901 = vpack.c.b16 %v4616, %v4611
    %v4902 = vpack.c.b16 %v4617, %v4612
    %v4903 = vpack.c.b16 %v4623, %v4618
    %v4904 = vpack.c.b16 %v4624, %v4619
    %v4905 = vpack.c.b16 %v4625, %v4620
    %v4906 = vpack.c.b16 %v4626, %v4621
    %v4907 = vpack.c.b16 %v4627, %v4622
    %v4908 = vpack.c.b16 %v4633, %v4628
    %v4909 = vpack.c.b16 %v4634, %v4629
    %v4910 = vpack.c.b16 %v4635, %v4630
    %v4911 = vpack.c.b16 %v4636, %v4631
    %v4912 = vpack.c.b16 %v4637, %v4632
    %v4913 = vpack.c.b16 %v4643, %v4638
    %v4914 = vpack.c.b16 %v4644, %v4639
    %v4915 = vpack.c.b16 %v4645, %v4640
    %v4916 = vpack.c.b16 %v4646, %v4641
    %v4917 = vpack.c.b16 %v4647, %v4642
    %v4918 = vpack.c.b16 %v4653, %v4648
    %v4919 = vpack.c.b16 %v4654, %v4649
    %v4920 = vpack.c.b16 %v4655, %v4650
    %v4921 = vpack.c.b16 %v4656, %v4651
    %v4922 = vpack.c.b16 %v4657, %v4652
    %v4923 = vpack.c.b16 %v4663, %v4658
    %v4924 = vpack.c.b16 %v4664, %v4659
    %v4925 = vpack.c.b16 %v4665, %v4660
    %v4926 = vpack.c.b16 %v4666, %v4661
    %v4927 = vpack.c.b16 %v4667, %v4662
    %v4928 = vpack.c.b16 %v4673, %v4668
    %v4929 = vpack.c.b16 %v4674, %v4669
    %v4930 = vpack.c.b16 %v4675, %v4670
    %v4931 = vpack.c.b16 %v4676, %v4671
    %v4932 = vpack.c.b16 %v4677, %v4672
    %v4933 = vpack.c.b16 %v4683, %v4678
    %v4934 = vpack.c.b16 %v4684, %v4679
    %v4935 = vpack.c.b16 %v4685, %v4680
    %v4936 = vpack.c.b16 %v4686, %v4681
    %v4937 = vpack.c.b16 %v4687, %v4682
    %v4938 = vpack.c.b16 %v4693, %v4688
    %v4939 = vpack.c.b16 %v4694, %v4689
    %v4940 = vpack.c.b16 %v4695, %v4690
    %v4941 = vpack.c.b16 %v4696, %v4691
    %v4942 = vpack.c.b16 %v4697, %v4692
    %v4943 = vpack.c.b16 %v4703, %v4698
    %v4944 = vpack.c.b16 %v4704, %v4699
    %v4945 = vpack.c.b16 %v4705, %v4700
    %v4946 = vpack.c.b16 %v4706, %v4701
    %v4947 = vpack.c.b16 %v4707, %v4702
    %v4948 = vpack.c.b16 %v4713, %v4708
    %v4949 = vpack.c.b16 %v4714, %v4709
    %v4950 = vpack.c.b16 %v4715, %v4710
    %v4951 = vpack.c.b16 %v4716, %v4711
    %v4952 = vpack.c.b16 %v4717, %v4712
    %v4953 = vpack.c.b16 %v4723, %v4718
    %v4954 = vpack.c.b16 %v4724, %v4719
    %v4955 = vpack.c.b16 %v4725, %v4720
    %v4956 = vpack.c.b16 %v4726, %v4721
    %v4957 = vpack.c.b16 %v4727, %v4722
    %v4958 = vpack.c.b16 %v4733, %v4728
    %v4959 = vpack.c.b16 %v4734, %v4729
    %v4960 = vpack.c.b16 %v4735, %v4730
    %v4961 = vpack.c.b16 %v4736, %v4731
    %v4962 = vpack.c.b16 %v4737, %v4732
    %v4963 = vpack.c.b16 %v4743, %v4738
    %v4964 = vpack.c.b16 %v4744, %v4739
    %v4965 = vpack.c.b16 %v4745, %v4740
    %v4966 = vpack.c.b16 %v4746, %v4741
    %v4967 = vpack.c.b16 %v4747, %v4742
    %v4968 = vpack.c.b16 %v4753, %v4748
    %v4969 = vpack.c.b16 %v4754, %v4749
    %v4970 = vpack.c.b16 %v4755, %v4750
    %v4971 = vpack.c.b16 %v4756, %v4751
    %v4972 = vpack.c.b16 %v4757, %v4752
    %v4973 = vpack.c.b16 %v4763, %v4758
    %v4974 = vpack.c.b16 %v4764, %v4759
    %v4975 = vpack.c.b16 %v4765, %v4760
    %v4976 = vpack.c.b16 %v4766, %v4761
    %v4977 = vpack.c.b16 %v4767, %v4762
    %v4978 = vpack.c.b16 %v4773, %v4768
    %v4979 = vpack.c.b16 %v4774, %v4769
    %v4980 = vpack.c.b16 %v4775, %v4770
    %v4981 = vpack.c.b16 %v4776, %v4771
    %v4982 = vpack.c.b16 %v4777, %v4772
    %v4983 = vpack.c.b16 %v4783, %v4778
    %v4984 = vpack.c.b16 %v4784, %v4779
    %v4985 = vpack.c.b16 %v4785, %v4780
    %v4986 = vpack.c.b16 %v4786, %v4781
    %v4987 = vpack.c.b16 %v4787, %v4782
    %v4988 = vpack.c.b16 %v4793, %v4788
    %v4989 = vpack.c.b16 %v4794, %v4789
    %v4990 = vpack.c.b16 %v4795, %v4790
    %v4991 = vpack.c.b16 %v4796, %v4791
    %v4992 = vpack.c.b16 %v4797, %v4792
    %v4993 = vpack.c.b16 %v4803, %v4798
    %v4994 = vpack.c.b16 %v4804, %v4799
    %v4995 = vpack.c.b16 %v4805, %v4800
    %v4996 = vpack.c.b16 %v4806, %v4801
    %v4997 = vpack.c.b16 %v4807, %v4802
    %v4998 = vpack.c.b16 %v4813, %v4808
    %v4999 = vpack.c.b16 %v4814, %v4809
    %v5000 = vpack.c.b16 %v4815, %v4810
    %v5001 = vpack.c.b16 %v4816, %v4811
    %v5002 = vpack.c.b16 %v4817, %v4812
    %v5003 = vpack.c.b16 %v4823, %v4818
    %v5004 = vpack.c.b16 %v4824, %v4819
    %v5005 = vpack.c.b16 %v4825, %v4820
    %v5006 = vpack.c.b16 %v4826, %v4821
    %v5007 = vpack.c.b16 %v4827, %v4822
    %v5008 = vpack.c.b16 %v4833, %v4828
    %v5009 = vpack.c.b16 %v4834, %v4829
    %v5010 = vpack.c.b16 %v4835, %v4830
    %v5011 = vpack.c.b16 %v4836, %v4831
    %v5012 = vpack.c.b16 %v4837, %v4832
    %v5013 = vpack.c.b16 %v4843, %v4838
    %v5014 = vpack.c.b16 %v4844, %v4839
    %v5015 = vpack.c.b16 %v4845, %v4840
    %v5016 = vpack.c.b16 %v4846, %v4841
    %v5017 = vpack.c.b16 %v4847, %v4842
    %v5018 = vpack.c.b16 %v4853, %v4848
    %v5019 = vpack.c.b16 %v4854, %v4849
    %v5020 = vpack.c.b16 %v4855, %v4850
    %v5021 = vpack.c.b16 %v4856, %v4851
    %v5022 = vpack.c.b16 %v4857, %v4852
    %v5023 = vpack.c.b16 %v4863, %v4858
    %v5024 = vpack.c.b16 %v4864, %v4859
    %v5025 = vpack.c.b16 %v4865, %v4860
    %v5026 = vpack.c.b16 %v4866, %v4861
    %v5027 = vpack.c.b16 %v4867, %v4862
    %5188 = vmatpush.bf16.msra.mxu0 %v4903
    %5189 = vmatpush.bf16.msra.mxu0 %v4898
    %5190 = vmatpush.bf16.msra.mxu0 %v4893
    %5191 = vmatpush.bf16.msra.mxu0 %v4888
    %5192 = vmatpush.bf16.msra.mxu0 %v4883
    %5193 = vmatpush.bf16.msra.mxu0 %v4878
    %5194 = vmatpush.bf16.msra.mxu0 %v4873
    %5195 = vmatpush.bf16.msra.mxu0 %v4868
    %5196 = vmatmul.bf16.gmra.mxu0 %v4148
    %v5197 = vpop.f32.mrf.mxu0
    %v5198 = vadd.f32 %v4346, %v5197
    %v5199 = vpop.f32.mrf.mxu0
    %5200 = vdwg.mxu0
    %5201 = vmatpush.bf16.msra.mxu0 %v4943
    %5202 = vmatpush.bf16.msra.mxu0 %v4938
    %5203 = vmatpush.bf16.msra.mxu0 %v4933
    %5204 = vmatpush.bf16.msra.mxu0 %v4928
    %5205 = vmatpush.bf16.msra.mxu0 %v4923
    %5206 = vmatpush.bf16.msra.mxu0 %v4918
    %5207 = vmatpush.bf16.msra.mxu0 %v4913
    %5208 = vmatpush.bf16.msra.mxu0 %v4908
    %5209 = vmatmul.bf16.gmra.mxu0 %v4149
    %v5210 = vpop.f32.mrf.mxu0
    %v5211 = vadd.f32 %v5198, %v5210
    %v5212 = vpop.f32.mrf.mxu0
    %5213 = vdwg.mxu0
    %5214 = vmatpush.bf16.msra.mxu0 %v4983
    %5215 = vmatpush.bf16.msra.mxu0 %v4978
    %5216 = vmatpush.bf16.msra.mxu0 %v4973
    %5217 = vmatpush.bf16.msra.mxu0 %v4968
    %5218 = vmatpush.bf16.msra.mxu0 %v4963
    %5219 = vmatpush.bf16.msra.mxu0 %v4958
    %5220 = vmatpush.bf16.msra.mxu0 %v4953
    %5221 = vmatpush.bf16.msra.mxu0 %v4948
    %5222 = vmatmul.bf16.gmra.mxu0 %v4150
    %v5223 = vpop.f32.mrf.mxu0
    %v5224 = vadd.f32 %v5211, %v5223
    %v5225 = vpop.f32.mrf.mxu0
    %5226 = vdwg.mxu0
    %5227 = vmatpush.bf16.msra.mxu0 %v5023
    %5228 = vmatpush.bf16.msra.mxu0 %v5018
    %5229 = vmatpush.bf16.msra.mxu0 %v5013
    %5230 = vmatpush.bf16.msra.mxu0 %v5008
    %5231 = vmatpush.bf16.msra.mxu0 %v5003
    %5232 = vmatpush.bf16.msra.mxu0 %v4998
    %5233 = vmatpush.bf16.msra.mxu0 %v4993
    %5234 = vmatpush.bf16.msra.mxu0 %v4988
    %5235 = vmatmul.bf16.gmra.mxu0 %v4151
    %v5236 = vpop.f32.mrf.mxu0
    %v5237 = vadd.f32 %v5224, %v5236
    %v5238 = vpop.f32.mrf.mxu0
    %5239 = vdwg.mxu0
    %5240 = vmatpush.bf16.msra.mxu0 %v4904
    %5241 = vmatpush.bf16.msra.mxu0 %v4899
    %5242 = vmatpush.bf16.msra.mxu0 %v4894
    %5243 = vmatpush.bf16.msra.mxu0 %v4889
    %5244 = vmatpush.bf16.msra.mxu0 %v4884
    %5245 = vmatpush.bf16.msra.mxu0 %v4879
    %5246 = vmatpush.bf16.msra.mxu0 %v4874
    %5247 = vmatpush.bf16.msra.mxu0 %v4869
    %5248 = vmatmul.bf16.gmra.mxu0 %v4148
    %v5249 = vpop.f32.mrf.mxu0
    %v5250 = vadd.f32 %v4347, %v5249
    %v5251 = vpop.f32.mrf.mxu0
    %5252 = vdwg.mxu0
    %5253 = vmatpush.bf16.msra.mxu0 %v4944
    %5254 = vmatpush.bf16.msra.mxu0 %v4939
    %5255 = vmatpush.bf16.msra.mxu0 %v4934
    %5256 = vmatpush.bf16.msra.mxu0 %v4929
    %5257 = vmatpush.bf16.msra.mxu0 %v4924
    %5258 = vmatpush.bf16.msra.mxu0 %v4919
    %5259 = vmatpush.bf16.msra.mxu0 %v4914
    %5260 = vmatpush.bf16.msra.mxu0 %v4909
    %5261 = vmatmul.bf16.gmra.mxu0 %v4149
    %v5262 = vpop.f32.mrf.mxu0
    %v5263 = vadd.f32 %v5250, %v5262
    %v5264 = vpop.f32.mrf.mxu0
    %5265 = vdwg.mxu0
    %5266 = vmatpush.bf16.msra.mxu0 %v4984
    %5267 = vmatpush.bf16.msra.mxu0 %v4979
    %5268 = vmatpush.bf16.msra.mxu0 %v4974
    %5269 = vmatpush.bf16.msra.mxu0 %v4969
    %5270 = vmatpush.bf16.msra.mxu0 %v4964
    %5271 = vmatpush.bf16.msra.mxu0 %v4959
    %5272 = vmatpush.bf16.msra.mxu0 %v4954
    %5273 = vmatpush.bf16.msra.mxu0 %v4949
    %5274 = vmatmul.bf16.gmra.mxu0 %v4150
    %v5275 = vpop.f32.mrf.mxu0
    %v5276 = vadd.f32 %v5263, %v5275
    %v5277 = vpop.f32.mrf.mxu0
    %5278 = vdwg.mxu0
    %5279 = vmatpush.bf16.msra.mxu0 %v5024
    %5280 = vmatpush.bf16.msra.mxu0 %v5019
    %5281 = vmatpush.bf16.msra.mxu0 %v5014
    %5282 = vmatpush.bf16.msra.mxu0 %v5009
    %5283 = vmatpush.bf16.msra.mxu0 %v5004
    %5284 = vmatpush.bf16.msra.mxu0 %v4999
    %5285 = vmatpush.bf16.msra.mxu0 %v4994
    %5286 = vmatpush.bf16.msra.mxu0 %v4989
    %5287 = vmatmul.bf16.gmra.mxu0 %v4151
    %v5288 = vpop.f32.mrf.mxu0
    %v5289 = vadd.f32 %v5276, %v5288
    %v5290 = vpop.f32.mrf.mxu0
    %5291 = vdwg.mxu0
    %5292 = vmatpush.bf16.msra.mxu0 %v4905
    %5293 = vmatpush.bf16.msra.mxu0 %v4900
    %5294 = vmatpush.bf16.msra.mxu0 %v4895
    %5295 = vmatpush.bf16.msra.mxu0 %v4890
    %5296 = vmatpush.bf16.msra.mxu0 %v4885
    %5297 = vmatpush.bf16.msra.mxu0 %v4880
    %5298 = vmatpush.bf16.msra.mxu0 %v4875
    %5299 = vmatpush.bf16.msra.mxu0 %v4870
    %5300 = vmatmul.bf16.gmra.mxu0 %v4148
    %v5301 = vpop.f32.mrf.mxu0
    %v5302 = vadd.f32 %v4348, %v5301
    %v5303 = vpop.f32.mrf.mxu0
    %5304 = vdwg.mxu0
    %5305 = vmatpush.bf16.msra.mxu0 %v4945
    %5306 = vmatpush.bf16.msra.mxu0 %v4940
    %5307 = vmatpush.bf16.msra.mxu0 %v4935
    %5308 = vmatpush.bf16.msra.mxu0 %v4930
    %5309 = vmatpush.bf16.msra.mxu0 %v4925
    %5310 = vmatpush.bf16.msra.mxu0 %v4920
    %5311 = vmatpush.bf16.msra.mxu0 %v4915
    %5312 = vmatpush.bf16.msra.mxu0 %v4910
    %5313 = vmatmul.bf16.gmra.mxu0 %v4149
    %v5314 = vpop.f32.mrf.mxu0
    %v5315 = vadd.f32 %v5302, %v5314
    %v5316 = vpop.f32.mrf.mxu0
    %5317 = vdwg.mxu0
    %5318 = vmatpush.bf16.msra.mxu0 %v4985
    %5319 = vmatpush.bf16.msra.mxu0 %v4980
    %5320 = vmatpush.bf16.msra.mxu0 %v4975
    %5321 = vmatpush.bf16.msra.mxu0 %v4970
    %5322 = vmatpush.bf16.msra.mxu0 %v4965
    %5323 = vmatpush.bf16.msra.mxu0 %v4960
    %5324 = vmatpush.bf16.msra.mxu0 %v4955
    %5325 = vmatpush.bf16.msra.mxu0 %v4950
    %5326 = vmatmul.bf16.gmra.mxu0 %v4150
    %v5327 = vpop.f32.mrf.mxu0
    %v5328 = vadd.f32 %v5315, %v5327
    %v5329 = vpop.f32.mrf.mxu0
    %5330 = vdwg.mxu0
    %5331 = vmatpush.bf16.msra.mxu0 %v5025
    %5332 = vmatpush.bf16.msra.mxu0 %v5020
    %5333 = vmatpush.bf16.msra.mxu0 %v5015
    %5334 = vmatpush.bf16.msra.mxu0 %v5010
    %5335 = vmatpush.bf16.msra.mxu0 %v5005
    %5336 = vmatpush.bf16.msra.mxu0 %v5000
    %5337 = vmatpush.bf16.msra.mxu0 %v4995
    %5338 = vmatpush.bf16.msra.mxu0 %v4990
    %5339 = vmatmul.bf16.gmra.mxu0 %v4151
    %v5340 = vpop.f32.mrf.mxu0
    %v5341 = vadd.f32 %v5328, %v5340
    %v5342 = vpop.f32.mrf.mxu0
    %5343 = vdwg.mxu0
    %5344 = vmatpush.bf16.msra.mxu0 %v4906
    %5345 = vmatpush.bf16.msra.mxu0 %v4901
    %5346 = vmatpush.bf16.msra.mxu0 %v4896
    %5347 = vmatpush.bf16.msra.mxu0 %v4891
    %5348 = vmatpush.bf16.msra.mxu0 %v4886
    %5349 = vmatpush.bf16.msra.mxu0 %v4881
    %5350 = vmatpush.bf16.msra.mxu0 %v4876
    %5351 = vmatpush.bf16.msra.mxu0 %v4871
    %5352 = vmatmul.bf16.gmra.mxu0 %v4148
    %v5353 = vpop.f32.mrf.mxu0
    %v5354 = vadd.f32 %v4349, %v5353
    %v5355 = vpop.f32.mrf.mxu0
    %5356 = vdwg.mxu0
    %5357 = vmatpush.bf16.msra.mxu0 %v4946
    %5358 = vmatpush.bf16.msra.mxu0 %v4941
    %5359 = vmatpush.bf16.msra.mxu0 %v4936
    %5360 = vmatpush.bf16.msra.mxu0 %v4931
    %5361 = vmatpush.bf16.msra.mxu0 %v4926
    %5362 = vmatpush.bf16.msra.mxu0 %v4921
    %5363 = vmatpush.bf16.msra.mxu0 %v4916
    %5364 = vmatpush.bf16.msra.mxu0 %v4911
    %5365 = vmatmul.bf16.gmra.mxu0 %v4149
    %v5366 = vpop.f32.mrf.mxu0
    %v5367 = vadd.f32 %v5354, %v5366
    %v5368 = vpop.f32.mrf.mxu0
    %5369 = vdwg.mxu0
    %5370 = vmatpush.bf16.msra.mxu0 %v4986
    %5371 = vmatpush.bf16.msra.mxu0 %v4981
    %5372 = vmatpush.bf16.msra.mxu0 %v4976
    %5373 = vmatpush.bf16.msra.mxu0 %v4971
    %5374 = vmatpush.bf16.msra.mxu0 %v4966
    %5375 = vmatpush.bf16.msra.mxu0 %v4961
    %5376 = vmatpush.bf16.msra.mxu0 %v4956
    %5377 = vmatpush.bf16.msra.mxu0 %v4951
    %5378 = vmatmul.bf16.gmra.mxu0 %v4150
    %v5379 = vpop.f32.mrf.mxu0
    %v5380 = vadd.f32 %v5367, %v5379
    %v5381 = vpop.f32.mrf.mxu0
    %5382 = vdwg.mxu0
    %5383 = vmatpush.bf16.msra.mxu0 %v5026
    %5384 = vmatpush.bf16.msra.mxu0 %v5021
    %5385 = vmatpush.bf16.msra.mxu0 %v5016
    %5386 = vmatpush.bf16.msra.mxu0 %v5011
    %5387 = vmatpush.bf16.msra.mxu0 %v5006
    %5388 = vmatpush.bf16.msra.mxu0 %v5001
    %5389 = vmatpush.bf16.msra.mxu0 %v4996
    %5390 = vmatpush.bf16.msra.mxu0 %v4991
    %5391 = vmatmul.bf16.gmra.mxu0 %v4151
    %v5392 = vpop.f32.mrf.mxu0
    %v5393 = vadd.f32 %v5380, %v5392
    %v5394 = vpop.f32.mrf.mxu0
    %5395 = vdwg.mxu0
    %5396 = vmatpush.bf16.msra.mxu0 %v4907
    %5397 = vmatpush.bf16.msra.mxu0 %v4902
    %5398 = vmatpush.bf16.msra.mxu0 %v4897
    %5399 = vmatpush.bf16.msra.mxu0 %v4892
    %5400 = vmatpush.bf16.msra.mxu0 %v4887
    %5401 = vmatpush.bf16.msra.mxu0 %v4882
    %5402 = vmatpush.bf16.msra.mxu0 %v4877
    %5403 = vmatpush.bf16.msra.mxu0 %v4872
    %5404 = vmatmul.bf16.gmra.mxu0 %v4148
    %v5405 = vpop.f32.mrf.mxu0
    %v5406 = vadd.f32 %v4350, %v5405
    %v5407 = vpop.f32.mrf.mxu0
    %5408 = vdwg.mxu0
    %5409 = vmatpush.bf16.msra.mxu0 %v4947
    %5410 = vmatpush.bf16.msra.mxu0 %v4942
    %5411 = vmatpush.bf16.msra.mxu0 %v4937
    %5412 = vmatpush.bf16.msra.mxu0 %v4932
    %5413 = vmatpush.bf16.msra.mxu0 %v4927
    %5414 = vmatpush.bf16.msra.mxu0 %v4922
    %5415 = vmatpush.bf16.msra.mxu0 %v4917
    %5416 = vmatpush.bf16.msra.mxu0 %v4912
    %5417 = vmatmul.bf16.gmra.mxu0 %v4149
    %v5418 = vpop.f32.mrf.mxu0
    %v5419 = vadd.f32 %v5406, %v5418
    %v5420 = vpop.f32.mrf.mxu0
    %5421 = vdwg.mxu0
    %5422 = vmatpush.bf16.msra.mxu0 %v4987
    %5423 = vmatpush.bf16.msra.mxu0 %v4982
    %5424 = vmatpush.bf16.msra.mxu0 %v4977
    %5425 = vmatpush.bf16.msra.mxu0 %v4972
    %5426 = vmatpush.bf16.msra.mxu0 %v4967
    %5427 = vmatpush.bf16.msra.mxu0 %v4962
    %5428 = vmatpush.bf16.msra.mxu0 %v4957
    %5429 = vmatpush.bf16.msra.mxu0 %v4952
    %5430 = vmatmul.bf16.gmra.mxu0 %v4150
    %v5431 = vpop.f32.mrf.mxu0
    %v5432 = vadd.f32 %v5419, %v5431
    %v5433 = vpop.f32.mrf.mxu0
    %5434 = vdwg.mxu0
    %5435 = vmatpush.bf16.msra.mxu0 %v5027
    %5436 = vmatpush.bf16.msra.mxu0 %v5022
    %5437 = vmatpush.bf16.msra.mxu0 %v5017
    %5438 = vmatpush.bf16.msra.mxu0 %v5012
    %5439 = vmatpush.bf16.msra.mxu0 %v5007
    %5440 = vmatpush.bf16.msra.mxu0 %v5002
    %5441 = vmatpush.bf16.msra.mxu0 %v4997
    %5442 = vmatpush.bf16.msra.mxu0 %v4992
    %5443 = vmatmul.bf16.gmra.mxu0 %v4151
    %v5444 = vpop.f32.mrf.mxu0
    %v5445 = vadd.f32 %v5432, %v5444
    %v5446 = vpop.f32.mrf.mxu0
    %5447 = vdwg.mxu0
    %v5448 = vxor.u32 %v5237, 2147483648
    %v5449 = vxor.u32 %v5289, 2147483648
    %v5450 = vxor.u32 %v5341, 2147483648
    %v5451 = vxor.u32 %v5393, 2147483648
    %v5452 = vxor.u32 %v5445, 2147483648
    %v5453 = vmul.f32 %v5448, 1.442695
    %v5454 = vpow.pop %v5453
    %v5455 = vmul.f32 %v5449, 1.442695
    %v5456 = vpow.pop %v5455
    %v5457 = vmul.f32 %v5450, 1.442695
    %v5458 = vpow.pop %v5457
    %v5459 = vmul.f32 %v5451, 1.442695
    %v5460 = vpow.pop %v5459
    %v5461 = vmul.f32 %v5452, 1.442695
    %v5462 = vpow.pop %v5461
    %v5463 = vadd.f32 %v5454, 1.0
    %v5464 = vadd.f32 %v5456, 1.0
    %v5465 = vadd.f32 %v5458, 1.0
    %v5466 = vadd.f32 %v5460, 1.0
    %v5467 = vadd.f32 %v5462, 1.0
    %v5468 = vrcp.pop %v5463
    %v5469 = vmul.f32 %v5463, %v5468
    %v5470 = vsub.f32 1.0, %v5469
    %v5471 = vmul.f32 %v5468, %v5470
    %v5472 = vadd.f32 %v5468, %v5471
    %vm5473 = vweird.f32 %v5463
    %vm5474 = vweird.f32 %v5468
    %vm5475 = vmor %vm5473, %vm5474
    %v5476 = vsel %vm5475, %v5468, %v5472
    %v5477 = vand.u32 2147483647, %v5463
    %vm5478 = vcmp.eq.f32.partialorder %v5477, 8.507059e+37
    %v5479 = vand.u32 %v5463, 2147483648
    %v5480 = vor.u32 1.1754944e-38, %v5479
    %v5481 = vsel %vm5478, %v5480, %v5476
    %v5482 = vmul.f32 1.0, %v5481
    %v5483 = vrcp.pop %v5464
    %v5484 = vmul.f32 %v5464, %v5483
    %v5485 = vsub.f32 1.0, %v5484
    %v5486 = vmul.f32 %v5483, %v5485
    %v5487 = vadd.f32 %v5483, %v5486
    %vm5488 = vweird.f32 %v5464
    %vm5489 = vweird.f32 %v5483
    %vm5490 = vmor %vm5488, %vm5489
    %v5491 = vsel %vm5490, %v5483, %v5487
    %v5492 = vand.u32 2147483647, %v5464
    %vm5493 = vcmp.eq.f32.partialorder %v5492, 8.507059e+37
    %v5494 = vand.u32 %v5464, 2147483648
    %v5495 = vor.u32 1.1754944e-38, %v5494
    %v5496 = vsel %vm5493, %v5495, %v5491
    %v5497 = vmul.f32 1.0, %v5496
    %v5498 = vrcp.pop %v5465
    %v5499 = vmul.f32 %v5465, %v5498
    %v5500 = vsub.f32 1.0, %v5499
    %v5501 = vmul.f32 %v5498, %v5500
    %v5502 = vadd.f32 %v5498, %v5501
    %vm5503 = vweird.f32 %v5465
    %vm5504 = vweird.f32 %v5498
    %vm5505 = vmor %vm5503, %vm5504
    %v5506 = vsel %vm5505, %v5498, %v5502
    %v5507 = vand.u32 2147483647, %v5465
    %vm5508 = vcmp.eq.f32.partialorder %v5507, 8.507059e+37
    %v5509 = vand.u32 %v5465, 2147483648
    %v5510 = vor.u32 1.1754944e-38, %v5509
    %v5511 = vsel %vm5508, %v5510, %v5506
    %v5512 = vmul.f32 1.0, %v5511
    %v5513 = vrcp.pop %v5466
    %v5514 = vmul.f32 %v5466, %v5513
    %v5515 = vsub.f32 1.0, %v5514
    %v5516 = vmul.f32 %v5513, %v5515
    %v5517 = vadd.f32 %v5513, %v5516
    %vm5518 = vweird.f32 %v5466
    %vm5519 = vweird.f32 %v5513
    %vm5520 = vmor %vm5518, %vm5519
    %v5521 = vsel %vm5520, %v5513, %v5517
    %v5522 = vand.u32 2147483647, %v5466
    %vm5523 = vcmp.eq.f32.partialorder %v5522, 8.507059e+37
    %v5524 = vand.u32 %v5466, 2147483648
    %v5525 = vor.u32 1.1754944e-38, %v5524
    %v5526 = vsel %vm5523, %v5525, %v5521
    %v5527 = vmul.f32 1.0, %v5526
    %v5528 = vrcp.pop %v5467
    %v5529 = vmul.f32 %v5467, %v5528
    %v5530 = vsub.f32 1.0, %v5529
    %v5531 = vmul.f32 %v5528, %v5530
    %v5532 = vadd.f32 %v5528, %v5531
    %vm5533 = vweird.f32 %v5467
    %vm5534 = vweird.f32 %v5528
    %vm5535 = vmor %vm5533, %vm5534
    %v5536 = vsel %vm5535, %v5528, %v5532
    %v5537 = vand.u32 2147483647, %v5467
    %vm5538 = vcmp.eq.f32.partialorder %v5537, 8.507059e+37
    %v5539 = vand.u32 %v5467, 2147483648
    %v5540 = vor.u32 1.1754944e-38, %v5539
    %v5541 = vsel %vm5538, %v5540, %v5536
    %v5542 = vmul.f32 1.0, %v5541
    %5543 = vst [vmem:[#allocation13] sm:$0xff] %v5482
    %5544 = vst [vmem:[#allocation13 + $0x8] sm:$0xff] %v5497
    %5545 = vst [vmem:[#allocation13 + $0x10] sm:$0xff] %v5512
    %5546 = vst [vmem:[#allocation13 + $0x18] sm:$0xff] %v5527
    %5547 = vst [vmem:[#allocation13 + $0x20] sm:$0xff] %v5542
    // Predicated region
    $region82: #{vae_forward.1} parent=1 // pred_check
      _
    $region83: #{vae_forward.1} parent=1 // pred_check_branch
      %5549 = sbr.rel (0) target = $region85
    $region84: #{vae_forward.1} parent=1 // pred_region
      %5551 = vsyncadd [#allocation4], 0
      %s5553 = sshll.u32 [#allocation13], 4
      %s5554 = int_to_ptr.vmem [resolvable:$true] %s5553
      %s5555 = sshll.u32 %s14, 4
      %s5556 = int_to_ptr.hbm [resolvable:$true] %s5555
      %5558 = dma.vmem_to_hbm [thread:$0]  %s5554, 640, %s5556, [#allocation4]
    $region85: #{vae_forward.1} parent=1 // pred_fallthru
      _
    // Predicated region
    $region86: #{vae_forward.1} parent=1 // pred_check
      _
    $region87: #{vae_forward.1} parent=1 // pred_check_branch
      %5560 = sbr.rel (0) target = $region89
    $region88: #{vae_forward.1} parent=1 // pred_region
      %5562 = dma.done [#allocation4], 640
    $region89: #{vae_forward.1} parent=1 // pred_fallthru
      _
    %5563 = vsyncpa [#allocation3], 1
    %5564 = vsyncpa [#allocation6], 1
    %5565 = vsyncpa [#allocation9], 1
    %5566 = vsyncpa [#allocation12], 1
    %5567 = vsyncpa [#allocation4], 1

</llo_original>
